<compile_context>
chip_gen: v6e
topology: v6e:2x2x1
jax: 0.10.0
libtpu: 0.0.40
codegen_flags: <defaults>
</compile_context>

<pallas_src>
import jax
import jax.numpy as jnp
from jax.experimental import pallas as pl
from jax.experimental.pallas import tpu as pltpu


LIN_DIM = 768               # nn.Linear(768, 768)
LIN_SPLIT = 2               # column split of the Linear (2 TCs on v7x)
LIN_BLK = LIN_DIM // LIN_SPLIT   # 384 = 3*128 -> lane-aligned, unmasked stores


# ---------------------------------------------------------------------------
# Fused GCN kernel. Everything is VMEM-resident for each grid step.
#   feat : (N, F_in) f32       a    : (N, N)   bf16 (exact 0/1, self-loops = 1)
#   dinv : (N, 1)    f32       w1   : (F_in,H) bf16     b1 : (1, H)   f32
#   w2   : (H, C)    bf16      b2   : (1, C)   f32
#   wlt  : (C, LIN_BLK) bf16 block  (nn.Linear weight pre-transposed, column slice i)
#   bl   : (1, LIN_BLK) f32 block
#   y    : (N, LIN_BLK) f32 block = relu(linear(conv2(relu(conv1(feat)))))[:, slice i]
# ---------------------------------------------------------------------------
def _fused_gcn_kernel(feat_ref, a_ref, dinv_ref, w1_ref, b1_ref,
                      w2_ref, b2_ref, wlt_ref, bl_ref, y_ref):
    f32 = jnp.float32
    bf16 = jnp.bfloat16

    a = a_ref[...]                                # (N, N) bf16, exact binary
    d = dinv_ref[...]                             # (N, 1) f32, D^-1/2
    x = feat_ref[...]                             # (N, F_in) f32

    # ---- conv1: relu( D^-1/2 A D^-1/2 X W1 + b1 ), re-associated (A @ X) @ W1 ----
    xs = (d * x).astype(bf16)                                             # row-scale
    ax = d * jnp.dot(a, xs, preferred_element_type=f32)                   # (N, F_in)
    h1 = jnp.dot(ax.astype(bf16), w1_ref[...], preferred_element_type=f32)
    h1 = jnp.maximum(h1 + b1_ref[...], 0.0)                               # (N, H) f32

    # F.dropout(p=0.5, training=self.training) -> identity at inference.
    # TODO(synk): training-mode dropout (pltpu.prng_*) not implemented; eval no-op.

    # ---- conv2: D^-1/2 A D^-1/2 h1 W2 + b2 ----
    hs = (d * h1).astype(bf16)
    ah = d * jnp.dot(a, hs, preferred_element_type=f32)                   # (N, H)
    h2 = jnp.dot(ah.astype(bf16), w2_ref[...], preferred_element_type=f32)
    h2 = h2 + b2_ref[...]                                                 # (N, C) f32

    # ---- nn.Linear(768, 768) + ReLU, column slice owned by this grid step ----
    y = jnp.dot(h2.astype(bf16), wlt_ref[...], preferred_element_type=f32)
    y_ref[...] = jnp.maximum(y + bl_ref[...], 0.0).astype(y_ref.dtype)


def fused_gcn(feature, a_bin_bf16, d_inv_sqrt, prep):
    N, F_in = feature.shape
    H = prep["w1"].shape[1]
    C = prep["w2"].shape[1]                       # conv2 output width (= 768)
    return pl.pallas_call(
        _fused_gcn_kernel,
        out_shape=jax.ShapeDtypeStruct((N, LIN_DIM), jnp.float32),
        grid=(LIN_SPLIT,),
        in_specs=[
            pl.BlockSpec((N, F_in), lambda i: (0, 0)),       # feature
            pl.BlockSpec((N, N), lambda i: (0, 0)),          # binary A (bf16)
            pl.BlockSpec((N, 1), lambda i: (0, 0)),          # D^-1/2 (f32)
            pl.BlockSpec((F_in, H), lambda i: (0, 0)),       # w1
            pl.BlockSpec((1, H), lambda i: (0, 0)),          # b1
            pl.BlockSpec((H, C), lambda i: (0, 0)),          # w2
            pl.BlockSpec((1, C), lambda i: (0, 0)),          # b2
            pl.BlockSpec((C, LIN_BLK), lambda i: (0, i)),    # wl^T column slice
            pl.BlockSpec((1, LIN_BLK), lambda i: (0, i)),    # bl column slice
        ],
        out_specs=pl.BlockSpec((N, LIN_BLK), lambda i: (0, i)),
        compiler_params=pltpu.CompilerParams(
            dimension_semantics=("parallel",),               # 2-TC sharding on v7x
        ),
    )(
        feature, a_bin_bf16, d_inv_sqrt,
        prep["w1"], prep["b1"],
        prep["w2"], prep["b2"],
        prep["wlt"], prep["bl"],
    )


# ---------------------------------------------------------------------------
# Glue: binary adjacency via one-hot matmul (no XLA scatter) + D^-1/2 vector.
# Semantics: torch_geometric gcn_norm (add_remaining_self_loops, symmetric norm)
# for unweighted simple graphs; the normalization itself is applied in-kernel.
# ---------------------------------------------------------------------------
def binary_adjacency(edge_index, num_nodes):
    src, dst = edge_index[0], edge_index[1]
    oh_dst = jax.nn.one_hot(dst, num_nodes, dtype=jnp.float32)   # (E, N)
    oh_src = jax.nn.one_hot(src, num_nodes, dtype=jnp.float32)   # (E, N)
    a = jnp.minimum(jnp.dot(oh_dst.T, oh_src), 1.0)              # A[dst, src] = 1
    a = jnp.maximum(a, jnp.eye(num_nodes, dtype=jnp.float32))    # self-loops = 1.0
    deg = a.sum(axis=1)
    d_inv_sqrt = jnp.where(deg > 0.0, jax.lax.rsqrt(deg), 0.0)
    # binary values are exact in bf16; the f32 D^-1/2 goes in separately.
    return a.astype(jnp.bfloat16), d_inv_sqrt.reshape(num_nodes, 1)


# ---------------------------------------------------------------------------
# Full GCN forward (inference semantics).
# ---------------------------------------------------------------------------
@jax.jit
def gcn_forward(feature, edge_index, prep):
    a_bin, d_inv_sqrt = binary_adjacency(edge_index, feature.shape[0])
    y = fused_gcn(feature, a_bin, d_inv_sqrt, prep)      # (N, 768) f32, one Pallas call
    return jnp.concatenate([feature, y], axis=1)          # torch.cat((feature, x), dim=1)


# ---------------------------------------------------------------------------
# Deterministic parameter init (PyTorch layouts) + one-time prep (bf16 casts,
# Linear weight pre-transposed to (in, out)).
# ---------------------------------------------------------------------------
def init_params(key, input_dim, hidden_dim, output_dim):
    ks = jax.random.split(key, 6)
    scale = 0.05
    return {
        "w1": scale * jax.random.normal(ks[0], (input_dim, hidden_dim), jnp.float32),
        "b1": scale * jax.random.normal(ks[1], (hidden_dim,), jnp.float32),
        "w2": scale * jax.random.normal(ks[2], (hidden_dim, output_dim), jnp.float32),
        "b2": scale * jax.random.normal(ks[3], (output_dim,), jnp.float32),
        "wl": scale * jax.random.normal(ks[4], (768, 768), jnp.float32),   # (out, in)
        "bl": scale * jax.random.normal(ks[5], (768,), jnp.float32),
    }


def prepare_params(params):
    return {
        "w1": params["w1"].astype(jnp.bfloat16),
        "b1": params["b1"].reshape(1, -1).astype(jnp.float32),
        "w2": params["w2"].astype(jnp.bfloat16),
        "b2": params["b2"].reshape(1, -1).astype(jnp.float32),
        "wlt": params["wl"].T.astype(jnp.bfloat16),      # transpose ONCE at prep time
        "bl": params["bl"].reshape(1, -1).astype(jnp.float32),
    }


if __name__ == "__main__":
    key = jax.random.PRNGKey(0)
    k_feat, k_param = jax.random.split(key)

    num_nodes = 128
    input_dim = 16
    hidden_dim = 32
    output_dim = 768          # forced by nn.Linear(768, 768) in the module

    feature = jax.random.normal(k_feat, (num_nodes, input_dim), jnp.float32)

    # deterministic bidirectional ring graph: i <-> (i+1) % N
    i = jnp.arange(num_nodes, dtype=jnp.int32)
    j = (i + 1) % num_nodes
    edge_index = jnp.stack(
        [jnp.concatenate([i, j]), jnp.concatenate([j, i])], axis=0
    )  # shape (2, 2*N)

    params = init_params(k_param, input_dim, hidden_dim, output_dim)
    prep = prepare_params(params)

    out = gcn_forward(feature, edge_index, prep)
    out = jax.block_until_ready(out)

    assert out.shape == (num_nodes, input_dim + 768), out.shape
    assert out.dtype == jnp.float32
    assert bool(jnp.all(jnp.isfinite(out)))
    print("KERNEL_OK")
</pallas_src>

<mosaic_0001>
module attributes {stable_mosaic.version = 11 : i64} {
  func.func @_fused_gcn_kernel(%arg0: i32, %arg1: memref<128x16xf32, #tpu.memory_space<vmem>>, %arg2: memref<128x128xbf16, #tpu.memory_space<vmem>>, %arg3: memref<128x1xf32, #tpu.memory_space<vmem>>, %arg4: memref<16x32xbf16, #tpu.memory_space<vmem>>, %arg5: memref<1x32xf32, #tpu.memory_space<vmem>>, %arg6: memref<32x768xbf16, #tpu.memory_space<vmem>>, %arg7: memref<1x768xf32, #tpu.memory_space<vmem>>, %arg8: memref<768x384xbf16, #tpu.memory_space<vmem>>, %arg9: memref<1x384xf32, #tpu.memory_space<vmem>>, %arg10: memref<128x384xf32, #tpu.memory_space<vmem>>) attributes {dimension_semantics = [#tpu.dimension_semantics<parallel>], iteration_bounds = array<i64: 2>, scalar_prefetch = 0 : i64, scratch_operands = 0 : i64, tpu.core_type = #tpu.core_type<tc>, window_params = [{pipeline_mode = #tpu.pipeline_mode<synchronous>, transform_indices = @transform_0, window_bounds = array<i64: 128, 16>}, {pipeline_mode = #tpu.pipeline_mode<synchronous>, transform_indices = @transform_1, window_bounds = array<i64: 128, 128>}, {pipeline_mode = #tpu.pipeline_mode<synchronous>, transform_indices = @transform_2, window_bounds = array<i64: 128, 1>}, {pipeline_mode = #tpu.pipeline_mode<synchronous>, transform_indices = @transform_3, window_bounds = array<i64: 16, 32>}, {pipeline_mode = #tpu.pipeline_mode<synchronous>, transform_indices = @transform_4, window_bounds = array<i64: 1, 32>}, {pipeline_mode = #tpu.pipeline_mode<synchronous>, transform_indices = @transform_5, window_bounds = array<i64: 32, 768>}, {pipeline_mode = #tpu.pipeline_mode<synchronous>, transform_indices = @transform_6, window_bounds = array<i64: 1, 768>}, {transform_indices = @transform_7, window_bounds = array<i64: 768, 384>}, {transform_indices = @transform_8, window_bounds = array<i64: 1, 384>}, {transform_indices = @transform_9, window_bounds = array<i64: 128, 384>}]} {
    %c0 = arith.constant 0 : index
    %c0_0 = arith.constant 0 : index
    %0 = vector.load %arg2[%c0, %c0_0] : memref<128x128xbf16, #tpu.memory_space<vmem>>, vector<128x128xbf16>
    %c0_1 = arith.constant 0 : index
    %c0_2 = arith.constant 0 : index
    %1 = vector.load %arg3[%c0_1, %c0_2] : memref<128x1xf32, #tpu.memory_space<vmem>>, vector<128x1xf32>
    %c0_3 = arith.constant 0 : index
    %c0_4 = arith.constant 0 : index
    %2 = vector.load %arg1[%c0_3, %c0_4] : memref<128x16xf32, #tpu.memory_space<vmem>>, vector<128x16xf32>
    %3 = vector.broadcast %1 : vector<128x1xf32> to vector<128x16xf32>
    %4 = arith.mulf %3, %2 : vector<128x16xf32>
    %5 = arith.truncf %4 : vector<128x16xf32> to vector<128x16xbf16>
    %cst = arith.constant dense<0.000000e+00> : vector<128x16xf32>
    %6 = tpu.matmul %0, %5, %cst {dimension_numbers = #tpu.dot_dimension_numbers<[1], [0], [0], [1], [0, 0, 1, 1], [], []>} : vector<128x128xbf16>, vector<128x16xbf16>, vector<128x16xf32> -> vector<128x16xf32>
    %7 = vector.broadcast %1 : vector<128x1xf32> to vector<128x16xf32>
    %8 = arith.mulf %7, %6 : vector<128x16xf32>
    %9 = arith.truncf %8 : vector<128x16xf32> to vector<128x16xbf16>
    %c0_5 = arith.constant 0 : index
    %c0_6 = arith.constant 0 : index
    %10 = vector.load %arg4[%c0_5, %c0_6] : memref<16x32xbf16, #tpu.memory_space<vmem>>, vector<16x32xbf16>
    %cst_7 = arith.constant dense<0.000000e+00> : vector<128x32xf32>
    %11 = tpu.matmul %9, %10, %cst_7 {dimension_numbers = #tpu.dot_dimension_numbers<[1], [0], [0], [1], [0, 0, 1, 1], [], []>} : vector<128x16xbf16>, vector<16x32xbf16>, vector<128x32xf32> -> vector<128x32xf32>
    %c0_8 = arith.constant 0 : index
    %c0_9 = arith.constant 0 : index
    %12 = vector.load %arg5[%c0_8, %c0_9] : memref<1x32xf32, #tpu.memory_space<vmem>>, vector<1x32xf32>
    %13 = vector.broadcast %12 : vector<1x32xf32> to vector<128x32xf32>
    %14 = arith.addf %11, %13 : vector<128x32xf32>
    %cst_10 = arith.constant 0.000000e+00 : f32
    %15 = vector.broadcast %cst_10 : f32 to vector<128x32xf32>
    %16 = arith.maximumf %14, %15 : vector<128x32xf32>
    %17 = vector.broadcast %1 : vector<128x1xf32> to vector<128x32xf32>
    %18 = arith.mulf %17, %16 : vector<128x32xf32>
    %19 = arith.truncf %18 : vector<128x32xf32> to vector<128x32xbf16>
    %cst_11 = arith.constant dense<0.000000e+00> : vector<128x32xf32>
    %20 = tpu.matmul %0, %19, %cst_11 {dimension_numbers = #tpu.dot_dimension_numbers<[1], [0], [0], [1], [0, 0, 1, 1], [], []>} : vector<128x128xbf16>, vector<128x32xbf16>, vector<128x32xf32> -> vector<128x32xf32>
    %21 = vector.broadcast %1 : vector<128x1xf32> to vector<128x32xf32>
    %22 = arith.mulf %21, %20 : vector<128x32xf32>
    %23 = arith.truncf %22 : vector<128x32xf32> to vector<128x32xbf16>
    %c0_12 = arith.constant 0 : index
    %c0_13 = arith.constant 0 : index
    %24 = vector.load %arg6[%c0_12, %c0_13] : memref<32x768xbf16, #tpu.memory_space<vmem>>, vector<32x768xbf16>
    %cst_14 = arith.constant dense<0.000000e+00> : vector<128x768xf32>
    %25 = tpu.matmul %23, %24, %cst_14 {dimension_numbers = #tpu.dot_dimension_numbers<[1], [0], [0], [1], [0, 0, 1, 1], [], []>} : vector<128x32xbf16>, vector<32x768xbf16>, vector<128x768xf32> -> vector<128x768xf32>
    %c0_15 = arith.constant 0 : index
    %c0_16 = arith.constant 0 : index
    %26 = vector.load %arg7[%c0_15, %c0_16] : memref<1x768xf32, #tpu.memory_space<vmem>>, vector<1x768xf32>
    %27 = vector.broadcast %26 : vector<1x768xf32> to vector<128x768xf32>
    %28 = arith.addf %25, %27 : vector<128x768xf32>
    %29 = arith.truncf %28 : vector<128x768xf32> to vector<128x768xbf16>
    %c0_17 = arith.constant 0 : index
    %c0_18 = arith.constant 0 : index
    %30 = vector.load %arg8[%c0_17, %c0_18] : memref<768x384xbf16, #tpu.memory_space<vmem>>, vector<768x384xbf16>
    %cst_19 = arith.constant dense<0.000000e+00> : vector<128x384xf32>
    %31 = tpu.matmul %29, %30, %cst_19 {dimension_numbers = #tpu.dot_dimension_numbers<[1], [0], [0], [1], [0, 0, 1, 1], [], []>} : vector<128x768xbf16>, vector<768x384xbf16>, vector<128x384xf32> -> vector<128x384xf32>
    %c0_20 = arith.constant 0 : index
    %c0_21 = arith.constant 0 : index
    %32 = vector.load %arg9[%c0_20, %c0_21] : memref<1x384xf32, #tpu.memory_space<vmem>>, vector<1x384xf32>
    %33 = vector.broadcast %32 : vector<1x384xf32> to vector<128x384xf32>
    %34 = arith.addf %31, %33 : vector<128x384xf32>
    %cst_22 = arith.constant 0.000000e+00 : f32
    %35 = vector.broadcast %cst_22 : f32 to vector<128x384xf32>
    %36 = arith.maximumf %34, %35 : vector<128x384xf32>
    %c0_23 = arith.constant 0 : index
    %c0_24 = arith.constant 0 : index
    %37 = vector.load %arg10[%c0_23, %c0_24] : memref<128x384xf32, #tpu.memory_space<vmem>>, vector<128x384xf32>
    tpu.vector_store %arg10[%c0_23, %c0_24], %36 {strides = array<i32>} : memref<128x384xf32, #tpu.memory_space<vmem>>, vector<128x384xf32>,
    return
  }
  func.func @transform_0(%arg0: i32) -> (i32, i32) {
    %c0_i32 = arith.constant 0 : i32
    %c0_i32_0 = arith.constant 0 : i32
    %c0_i32_1 = arith.constant 0 : i32
    return %c0_i32, %c0_i32_0 : i32, i32
  }
  func.func @transform_1(%arg0: i32) -> (i32, i32) {
    %c0_i32 = arith.constant 0 : i32
    %c0_i32_0 = arith.constant 0 : i32
    %c0_i32_1 = arith.constant 0 : i32
    return %c0_i32, %c0_i32_0 : i32, i32
  }
  func.func @transform_2(%arg0: i32) -> (i32, i32) {
    %c0_i32 = arith.constant 0 : i32
    %c0_i32_0 = arith.constant 0 : i32
    %c0_i32_1 = arith.constant 0 : i32
    return %c0_i32, %c0_i32_0 : i32, i32
  }
  func.func @transform_3(%arg0: i32) -> (i32, i32) {
    %c0_i32 = arith.constant 0 : i32
    %c0_i32_0 = arith.constant 0 : i32
    %c0_i32_1 = arith.constant 0 : i32
    return %c0_i32, %c0_i32_0 : i32, i32
  }
  func.func @transform_4(%arg0: i32) -> (i32, i32) {
    %c0_i32 = arith.constant 0 : i32
    %c0_i32_0 = arith.constant 0 : i32
    %c0_i32_1 = arith.constant 0 : i32
    return %c0_i32, %c0_i32_0 : i32, i32
  }
  func.func @transform_5(%arg0: i32) -> (i32, i32) {
    %c0_i32 = arith.constant 0 : i32
    %c0_i32_0 = arith.constant 0 : i32
    %c0_i32_1 = arith.constant 0 : i32
    return %c0_i32, %c0_i32_0 : i32, i32
  }
  func.func @transform_6(%arg0: i32) -> (i32, i32) {
    %c0_i32 = arith.constant 0 : i32
    %c0_i32_0 = arith.constant 0 : i32
    %c0_i32_1 = arith.constant 0 : i32
    return %c0_i32, %c0_i32_0 : i32, i32
  }
  func.func @transform_7(%arg0: i32) -> (i32, i32) {
    %c0_i32 = arith.constant 0 : i32
    %c0_i32_0 = arith.constant 0 : i32
    return %c0_i32, %arg0 : i32, i32
  }
  func.func @transform_8(%arg0: i32) -> (i32, i32) {
    %c0_i32 = arith.constant 0 : i32
    %c0_i32_0 = arith.constant 0 : i32
    return %c0_i32, %arg0 : i32, i32
  }
  func.func @transform_9(%arg0: i32) -> (i32, i32) {
    %c0_i32 = arith.constant 0 : i32
    %c0_i32_0 = arith.constant 0 : i32
    return %c0_i32, %arg0 : i32, i32
  }
}

</mosaic_0001>

<llo_original>
// kernel: gcn_forward.1
$region0: #{gcn_forward.1}
  #allocation0 [shape = 'u32[]', space=smem, size = 0x4, offset = 0x4, fixed_abs, tag = 'smem constant byte address 0x4 - core index']
  #allocation1 [shape = 'u32[144,128]{1,0:T(1,128)}', space=vmem, size = 0x12000, scoped, tag = 'internal scratch']
  %s0 = inlined_call_operand.vmem [shape: f32[128,16], index: 0, kind: input, shape index: {}]
  %s1 = inlined_call_operand.vmem [shape: bf16[128,128], index: 1, kind: input, shape index: {}]
  %s2 = inlined_call_operand.vmem [shape: f32[128,1], index: 2, kind: input, shape index: {}]
  %s3 = inlined_call_operand.hbm [shape: bf16[16,32], index: 3, kind: input, shape index: {}]
  %s4 = inlined_call_operand.hbm [shape: f32[1,32], index: 4, kind: input, shape index: {}]
  %s5 = inlined_call_operand.hbm [shape: bf16[32,768], index: 5, kind: input, shape index: {}]
  %s6 = inlined_call_operand.hbm [shape: f32[1,768], index: 6, kind: input, shape index: {}]
  %s7 = inlined_call_operand.hbm [shape: bf16[768,768], index: 7, kind: input, shape index: {}]
  %s8 = inlined_call_operand.hbm [shape: f32[1,768], index: 8, kind: input, shape index: {}]
  %s9 = inlined_call_operand.vmem [shape: f32[128,768], index: 9, kind: output, shape index: {}]
  %s10 = sld [smem:[#allocation0]]
  $region112: #{gcn_forward.1} parent=0
    _
  %s12 = ssub.s32 1, %s10
  %s13 = scalar_select 0, %s12, %s10
  $region1: #{gcn_forward.1} parent=0
    #allocation2 [shape = 'u8[4096]{0}', space=vmem, size = 0x1000, scoped, tag = 'input window, operand 3, single buffered']
    #allocation3 [shape = 's32[2]{0}', space=sflag, size = 0x8, scoped, tag = 'scoped memory for gcn_forward.1']
    #allocation4 [shape = 'u8[512]{0}', space=vmem, size = 0x400, scoped, tag = 'input window, operand 4, single buffered']
    #allocation5 [shape = 's32[1]{0}', space=sflag, size = 0x4, scoped, tag = 'scoped memory for gcn_forward.1']
    #allocation6 [shape = 'u8[49152]{0}', space=vmem, size = 0xc000, scoped, tag = 'input window, operand 5, single buffered']
    #allocation7 [shape = 'u8[3072]{0}', space=vmem, size = 0xc00, scoped, tag = 'input window, operand 6, single buffered']
    #allocation8 [shape = 's32[1]{0}', space=sflag, size = 0x4, scoped, tag = 'scoped memory for gcn_forward.1']
    #allocation9 [shape = 'u8[1179648]{0}', space=vmem, size = 0x120000, scoped, tag = 'input window, operand 7']
    #allocation10 [shape = 'u8[3072]{0}', space=vmem, size = 0xc00, scoped, tag = 'input window, operand 8']
    #allocation11 [shape = 'u8[393216]{0}', space=vmem, size = 0x60000, scoped, tag = 'output window, operand 0']
    %14 = vsyncpa [#allocation3], 0
    %15 = vsyncpa [#allocation5], 0
    %16 = vsyncpa [#allocation8], 0
    loop: start=0, step=1, limit=4
    $region2: #{gcn_forward.1} parent=1 // loop_pre_header
      _
    $region3: #{gcn_forward.1} parent=1 // loop_header
      %s18 = sphi 0, %s22
      %p19 = scmp.ge.s32.totalorder %s18, 4
      %s26 = sphi 0, %s26
      %s28 = sphi 0, %s26
      %s29 = sphi 0, %s28
      %s43 = sphi 0, %s29
      %s47 = sphi 0, %s47
      %s49 = sphi 0, %s47
      %s50 = sphi 0, %s49
      %s64 = sphi 0, %s50
      %s68 = sphi 0, %s68
      %s70 = sphi 0, %s68
      %s71 = sphi 0, %s70
      %s85 = sphi 0, %s71
      %s89 = sphi 0, %s89
      %s91 = sphi 0, %s89
      %s92 = sphi 0, %s91
      %s106 = sphi 0, %s92
      %s110 = sphi 0, %s110
      %s112 = sphi 0, %s110
      %s113 = sphi 0, %s112
      %s127 = sphi 0, %s113
      %s131 = sphi 0, %s131
      %s133 = sphi 0, %s131
      %s134 = sphi 0, %s133
      %s148 = sphi 0, %s134
      %s152 = sphi 0, %s152
      %s154 = sphi 0, %s152
      %s155 = sphi 0, %s154
      %s169 = sphi 0, %s155
      %s175 = sphi 0, %s177
      %s178 = sphi 0, %s175
      %s179 = sphi 0, %s178
      %s195 = sphi 0, %s179
      %s201 = sphi 0, %s203
      %s204 = sphi 0, %s201
      %s205 = sphi 0, %s204
      %s221 = sphi 0, %s205
      %s227 = sphi 0, %s229
      %s230 = sphi 0, %s227
      %s231 = sphi 0, %s230
      %s247 = sphi 0, %s231
    $region4: #{gcn_forward.1} parent=1 // loop_header_branch
      %21 = sbr.rel (%p19) target = $region8
    $region5: #{gcn_forward.1} parent=1 // loop_body
      %s23 = ssub.s32 %s18, 1
      %s24 = ssub.s32 %s18, 2
      %s25 = sadd.s32 %s18, 1
      %s27 = sadd.s32 %s26, 1
      %p30 = scmp.eq.s32.totalorder %s18, 1
      %p31 = scmp.ne.s32.totalorder %s26, %s28
      %p32 = scmp.eq.s32.totalorder %s18, 0
      %p33 = por %p31, %p32
      %p34 = scmp.ne.s32.totalorder %s26, %s28
      %p35 = scmp.eq.s32.totalorder %s23, 1
      %p36 = por %p34, %p35
      %p37 = scmp.ne.s32.totalorder %s28, %s29
      %p38 = scmp.eq.s32.totalorder %s23, 0
      %p39 = por %p37, %p38
      %p40 = scmp.ne.s32.totalorder %s28, %s29
      %p41 = scmp.eq.s32.totalorder %s24, 1
      %p42 = por %p40, %p41
      %p44 = scmp.ne.s32.totalorder %s29, %s43
      %p45 = scmp.eq.s32.totalorder %s24, 0
      %p46 = por %p44, %p45
      %s48 = sadd.s32 %s47, 1
      %p51 = scmp.eq.s32.totalorder %s18, 1
      %p52 = scmp.ne.s32.totalorder %s47, %s49
      %p53 = scmp.eq.s32.totalorder %s18, 0
      %p54 = por %p52, %p53
      %p55 = scmp.ne.s32.totalorder %s47, %s49
      %p56 = scmp.eq.s32.totalorder %s23, 1
      %p57 = por %p55, %p56
      %p58 = scmp.ne.s32.totalorder %s49, %s50
      %p59 = scmp.eq.s32.totalorder %s23, 0
      %p60 = por %p58, %p59
      %p61 = scmp.ne.s32.totalorder %s49, %s50
      %p62 = scmp.eq.s32.totalorder %s24, 1
      %p63 = por %p61, %p62
      %p65 = scmp.ne.s32.totalorder %s50, %s64
      %p66 = scmp.eq.s32.totalorder %s24, 0
      %p67 = por %p65, %p66
      %s69 = sadd.s32 %s68, 1
      %p72 = scmp.eq.s32.totalorder %s18, 1
      %p73 = scmp.ne.s32.totalorder %s68, %s70
      %p74 = scmp.eq.s32.totalorder %s18, 0
      %p75 = por %p73, %p74
      %p76 = scmp.ne.s32.totalorder %s68, %s70
      %p77 = scmp.eq.s32.totalorder %s23, 1
      %p78 = por %p76, %p77
      %p79 = scmp.ne.s32.totalorder %s70, %s71
      %p80 = scmp.eq.s32.totalorder %s23, 0
      %p81 = por %p79, %p80
      %p82 = scmp.ne.s32.totalorder %s70, %s71
      %p83 = scmp.eq.s32.totalorder %s24, 1
      %p84 = por %p82, %p83
      %p86 = scmp.ne.s32.totalorder %s71, %s85
      %p87 = scmp.eq.s32.totalorder %s24, 0
      %p88 = por %p86, %p87
      %s90 = sadd.s32 %s89, 1
      %p93 = scmp.eq.s32.totalorder %s18, 1
      %p94 = scmp.ne.s32.totalorder %s89, %s91
      %p95 = scmp.eq.s32.totalorder %s18, 0
      %p96 = por %p94, %p95
      %p97 = scmp.ne.s32.totalorder %s89, %s91
      %p98 = scmp.eq.s32.totalorder %s23, 1
      %p99 = por %p97, %p98
      %p100 = scmp.ne.s32.totalorder %s91, %s92
      %p101 = scmp.eq.s32.totalorder %s23, 0
      %p102 = por %p100, %p101
      %p103 = scmp.ne.s32.totalorder %s91, %s92
      %p104 = scmp.eq.s32.totalorder %s24, 1
      %p105 = por %p103, %p104
      %p107 = scmp.ne.s32.totalorder %s92, %s106
      %p108 = scmp.eq.s32.totalorder %s24, 0
      %p109 = por %p107, %p108
      %s111 = sadd.s32 %s110, 1
      %p114 = scmp.eq.s32.totalorder %s18, 1
      %p115 = scmp.ne.s32.totalorder %s110, %s112
      %p116 = scmp.eq.s32.totalorder %s18, 0
      %p117 = por %p115, %p116
      %p118 = scmp.ne.s32.totalorder %s110, %s112
      %p119 = scmp.eq.s32.totalorder %s23, 1
      %p120 = por %p118, %p119
      %p121 = scmp.ne.s32.totalorder %s112, %s113
      %p122 = scmp.eq.s32.totalorder %s23, 0
      %p123 = por %p121, %p122
      %p124 = scmp.ne.s32.totalorder %s112, %s113
      %p125 = scmp.eq.s32.totalorder %s24, 1
      %p126 = por %p124, %p125
      %p128 = scmp.ne.s32.totalorder %s113, %s127
      %p129 = scmp.eq.s32.totalorder %s24, 0
      %p130 = por %p128, %p129
      %s132 = sadd.s32 %s131, 1
      %p135 = scmp.eq.s32.totalorder %s18, 1
      %p136 = scmp.ne.s32.totalorder %s131, %s133
      %p137 = scmp.eq.s32.totalorder %s18, 0
      %p138 = por %p136, %p137
      %p139 = scmp.ne.s32.totalorder %s131, %s133
      %p140 = scmp.eq.s32.totalorder %s23, 1
      %p141 = por %p139, %p140
      %p142 = scmp.ne.s32.totalorder %s133, %s134
      %p143 = scmp.eq.s32.totalorder %s23, 0
      %p144 = por %p142, %p143
      %p145 = scmp.ne.s32.totalorder %s133, %s134
      %p146 = scmp.eq.s32.totalorder %s24, 1
      %p147 = por %p145, %p146
      %p149 = scmp.ne.s32.totalorder %s134, %s148
      %p150 = scmp.eq.s32.totalorder %s24, 0
      %p151 = por %p149, %p150
      %s153 = sadd.s32 %s152, 1
      %p156 = scmp.eq.s32.totalorder %s18, 1
      %p157 = scmp.ne.s32.totalorder %s152, %s154
      %p158 = scmp.eq.s32.totalorder %s18, 0
      %p159 = por %p157, %p158
      %p160 = scmp.ne.s32.totalorder %s152, %s154
      %p161 = scmp.eq.s32.totalorder %s23, 1
      %p162 = por %p160, %p161
      %p163 = scmp.ne.s32.totalorder %s154, %s155
      %p164 = scmp.eq.s32.totalorder %s23, 0
      %p165 = por %p163, %p164
      %p166 = scmp.ne.s32.totalorder %s154, %s155
      %p167 = scmp.eq.s32.totalorder %s24, 1
      %p168 = por %p166, %p167
      %p170 = scmp.ne.s32.totalorder %s155, %s169
      %p171 = scmp.eq.s32.totalorder %s24, 0
      %p172 = por %p170, %p171
      %s173 = ssub.s32 %s18, %s25
      %p174 = scmp.eq.s32.totalorder %s173, 0
      %s176 = sadd.s32 %s175, 1
      %s177 = scalar_select %p174, %s175, %s176
      %p180 = pneg %p174
      %p181 = scmp.eq.s32.totalorder %s18, 1
      %p182 = por %p180, %p181
      %p183 = scmp.ne.s32.totalorder %s175, %s178
      %p184 = scmp.eq.s32.totalorder %s18, 0
      %p185 = por %p183, %p184
      %p186 = scmp.ne.s32.totalorder %s175, %s178
      %p187 = scmp.eq.s32.totalorder %s23, 1
      %p188 = por %p186, %p187
      %p189 = scmp.ne.s32.totalorder %s178, %s179
      %p190 = scmp.eq.s32.totalorder %s23, 0
      %p191 = por %p189, %p190
      %p192 = scmp.ne.s32.totalorder %s178, %s179
      %p193 = scmp.eq.s32.totalorder %s24, 1
      %p194 = por %p192, %p193
      %p196 = scmp.ne.s32.totalorder %s179, %s195
      %p197 = scmp.eq.s32.totalorder %s24, 0
      %p198 = por %p196, %p197
      %s199 = ssub.s32 %s18, %s25
      %p200 = scmp.eq.s32.totalorder %s199, 0
      %s202 = sadd.s32 %s201, 1
      %s203 = scalar_select %p200, %s201, %s202
      %p206 = pneg %p200
      %p207 = scmp.eq.s32.totalorder %s18, 1
      %p208 = por %p206, %p207
      %p209 = scmp.ne.s32.totalorder %s201, %s204
      %p210 = scmp.eq.s32.totalorder %s18, 0
      %p211 = por %p209, %p210
      %p212 = scmp.ne.s32.totalorder %s201, %s204
      %p213 = scmp.eq.s32.totalorder %s23, 1
      %p214 = por %p212, %p213
      %p215 = scmp.ne.s32.totalorder %s204, %s205
      %p216 = scmp.eq.s32.totalorder %s23, 0
      %p217 = por %p215, %p216
      %p218 = scmp.ne.s32.totalorder %s204, %s205
      %p219 = scmp.eq.s32.totalorder %s24, 1
      %p220 = por %p218, %p219
      %p222 = scmp.ne.s32.totalorder %s205, %s221
      %p223 = scmp.eq.s32.totalorder %s24, 0
      %p224 = por %p222, %p223
      %s225 = ssub.s32 %s18, %s25
      %p226 = scmp.eq.s32.totalorder %s225, 0
      %s228 = sadd.s32 %s227, 1
      %s229 = scalar_select %p226, %s227, %s228
      %p232 = pneg %p226
      %p233 = scmp.eq.s32.totalorder %s18, 1
      %p234 = por %p232, %p233
      %p235 = scmp.ne.s32.totalorder %s227, %s230
      %p236 = scmp.eq.s32.totalorder %s18, 0
      %p237 = por %p235, %p236
      %p238 = scmp.ne.s32.totalorder %s227, %s230
      %p239 = scmp.eq.s32.totalorder %s23, 1
      %p240 = por %p238, %p239
      %p241 = scmp.ne.s32.totalorder %s230, %s231
      %p242 = scmp.eq.s32.totalorder %s23, 0
      %p243 = por %p241, %p242
      %p244 = scmp.ne.s32.totalorder %s230, %s231
      %p245 = scmp.eq.s32.totalorder %s24, 1
      %p246 = por %p244, %p245
      %p248 = scmp.ne.s32.totalorder %s231, %s247
      %p249 = scmp.eq.s32.totalorder %s24, 0
      %p250 = por %p248, %p249
      %p251 = scmp.le.s32.totalorder 1, %s18
      %p252 = scmp.lt.s32.totalorder %s18, 3
      %p253 = pnand %p251, %p252
      %p254 = pneg %p253
      // Predicated region
      $region9: #{gcn_forward.1} parent=5 // pred_check
        _
      $region10: #{gcn_forward.1} parent=5 // pred_check_branch
        %256 = sbr.rel (%p253) target = $region12
      $region11: #{gcn_forward.1} parent=5 // pred_region
        %s257 = ssub.s32 %s18, 1
        // Predicated region
        $region13: #{gcn_forward.1} parent=11 // pred_check
          %p258 = pneg %p39
        $region14: #{gcn_forward.1} parent=11 // pred_check_branch
          %260 = sbr.rel (%p258) target = $region16
        $region15: #{gcn_forward.1} parent=11 // pred_region
          _
        $region16: #{gcn_forward.1} parent=11 // pred_fallthru
          _
        // Predicated region
        $region17: #{gcn_forward.1} parent=11 // pred_check
          %p261 = pneg %p60
        $region18: #{gcn_forward.1} parent=11 // pred_check_branch
          %263 = sbr.rel (%p261) target = $region20
        $region19: #{gcn_forward.1} parent=11 // pred_region
          _
        $region20: #{gcn_forward.1} parent=11 // pred_fallthru
          _
        // Predicated region
        $region21: #{gcn_forward.1} parent=11 // pred_check
          %p264 = pneg %p81
        $region22: #{gcn_forward.1} parent=11 // pred_check_branch
          %266 = sbr.rel (%p264) target = $region24
        $region23: #{gcn_forward.1} parent=11 // pred_region
          _
        $region24: #{gcn_forward.1} parent=11 // pred_fallthru
          _
        // Predicated region
        $region25: #{gcn_forward.1} parent=11 // pred_check
          %p267 = pneg %p102
        $region26: #{gcn_forward.1} parent=11 // pred_check_branch
          %269 = sbr.rel (%p267) target = $region28
        $region27: #{gcn_forward.1} parent=11 // pred_region
          %s271 = ssub.s32 128, 128
          %272 = vsyncadd [#allocation3], %s271
          %s273 = sshll.u32 [#allocation2], 4
          %s274 = int_to_ptr.vmem [resolvable:$true] %s273
          %279 = dma.hbm_to_vmem [thread:$0]  %s3, 128, %s274, [#allocation3], 64, 64, 4
        $region28: #{gcn_forward.1} parent=11 // pred_fallthru
          _
        // Predicated region
        $region29: #{gcn_forward.1} parent=11 // pred_check
          %p280 = pneg %p123
        $region30: #{gcn_forward.1} parent=11 // pred_check_branch
          %282 = sbr.rel (%p280) target = $region32
        $region31: #{gcn_forward.1} parent=11 // pred_region
          %s284 = ssub.s32 16, 16
          %285 = vsyncadd [#allocation5], %s284
          %s287 = sshll.u32 [#allocation4], 4
          %s288 = int_to_ptr.vmem [resolvable:$true] %s287
          %290 = dma.hbm_to_vmem [thread:$0]  %s4, 16, %s288, [#allocation5]
        $region32: #{gcn_forward.1} parent=11 // pred_fallthru
          _
        // Predicated region
        $region33: #{gcn_forward.1} parent=11 // pred_check
          %p291 = pneg %p144
        $region34: #{gcn_forward.1} parent=11 // pred_check_branch
          %293 = sbr.rel (%p291) target = $region36
        $region35: #{gcn_forward.1} parent=11 // pred_region
          %s295 = ssub.s32 1536, 1536
          %296 = vsyncadd [#allocation5], %s295
          %s297 = sshll.u32 [#allocation6], 4
          %s298 = int_to_ptr.vmem [resolvable:$true] %s297
          %303 = dma.hbm_to_vmem [thread:$0]  %s5, 1536, %s298, [#allocation5], 384, 384, 24
        $region36: #{gcn_forward.1} parent=11 // pred_fallthru
          _
        // Predicated region
        $region37: #{gcn_forward.1} parent=11 // pred_check
          %p304 = pneg %p165
        $region38: #{gcn_forward.1} parent=11 // pred_check_branch
          %306 = sbr.rel (%p304) target = $region40
        $region39: #{gcn_forward.1} parent=11 // pred_region
          %s308 = ssub.s32 96, 96
          %309 = vsyncadd [#allocation8], %s308
          %s311 = sshll.u32 [#allocation7], 4
          %s312 = int_to_ptr.vmem [resolvable:$true] %s311
          %314 = dma.hbm_to_vmem [thread:$0]  %s6, 96, %s312, [#allocation8]
        $region40: #{gcn_forward.1} parent=11 // pred_fallthru
          _
      $region12: #{gcn_forward.1} parent=5 // pred_fallthru
        _
      %p315 = scmp.lt.s32.totalorder %s18, 2
      // Predicated region
      $region41: #{gcn_forward.1} parent=5 // pred_check
        %p316 = pneg %p315
      $region42: #{gcn_forward.1} parent=5 // pred_check_branch
        %318 = sbr.rel (%p316) target = $region44
      $region43: #{gcn_forward.1} parent=5 // pred_region
        // Predicated region
        $region45: #{gcn_forward.1} parent=43 // pred_check
          %p319 = pneg %p185
        $region46: #{gcn_forward.1} parent=43 // pred_check_branch
          %321 = sbr.rel (%p319) target = $region48
        $region47: #{gcn_forward.1} parent=43 // pred_region
          %s322 = sand.u32 %s18, 1
          %s323 = scalar_lea.sflag [#allocation3], %s322
          %s324 = sand.u32 %s175, 1
          %s325 = smul.addr %s324, 1152
          %s326 = scalar_lea.vmem [#allocation9], %s325
          %s327 = smul.u32 3, %s18
          %s329 = ssub.s32 18432, 18432
          %330 = vsyncadd %s323, %s329
          %s331 = smul.addr %s327, 64
          %s332 = scalar_lea.hbm %s7, %s331
          %s333 = sshll.u32 %s326, 4
          %s334 = int_to_ptr.vmem [resolvable:$true] %s333
          %339 = dma.hbm_to_vmem [thread:$0]  %s332, 18432, %s334, %s323, 384, 192, 12
        $region48: #{gcn_forward.1} parent=43 // pred_fallthru
          _
        // Predicated region
        $region49: #{gcn_forward.1} parent=43 // pred_check
          %p340 = pneg %p211
        $region50: #{gcn_forward.1} parent=43 // pred_check_branch
          %342 = sbr.rel (%p340) target = $region52
        $region51: #{gcn_forward.1} parent=43 // pred_region
          %s343 = sand.u32 %s18, 1
          %s344 = scalar_lea.sflag [#allocation3], %s343
          %s345 = sand.u32 %s201, 1
          %s346 = smul.addr %s345, 3
          %s347 = scalar_lea.vmem [#allocation10], %s346
          %s348 = smul.u32 3, %s18
          %s350 = ssub.s32 48, 48
          %351 = vsyncadd %s344, %s350
          %s352 = smul.addr %s348, 16
          %s353 = scalar_lea.hbm %s8, %s352
          %s355 = sshll.u32 %s347, 4
          %s356 = int_to_ptr.vmem [resolvable:$true] %s355
          %358 = dma.hbm_to_vmem [thread:$0]  %s353, 48, %s356, %s344
        $region52: #{gcn_forward.1} parent=43 // pred_fallthru
          _
      $region44: #{gcn_forward.1} parent=5 // pred_fallthru
        _
      %p359 = scmp.le.s32.totalorder 1, %s18
      %p360 = scmp.lt.s32.totalorder %s18, 3
      %p361 = pnand %p359, %p360
      %p362 = pneg %p361
      // Predicated region
      $region53: #{gcn_forward.1} parent=5 // pred_check
        _
      $region54: #{gcn_forward.1} parent=5 // pred_check_branch
        %364 = sbr.rel (%p361) target = $region56
      $region55: #{gcn_forward.1} parent=5 // pred_region
        %s365 = ssub.s32 %s18, 1
        // Predicated region
        $region57: #{gcn_forward.1} parent=55 // pred_check
          %p366 = pneg %p102
        $region58: #{gcn_forward.1} parent=55 // pred_check_branch
          %368 = sbr.rel (%p366) target = $region60
        $region59: #{gcn_forward.1} parent=55 // pred_region
          %369 = dma.done [#allocation3], 128
        $region60: #{gcn_forward.1} parent=55 // pred_fallthru
          _
        // Predicated region
        $region61: #{gcn_forward.1} parent=55 // pred_check
          %p370 = pneg %p123
        $region62: #{gcn_forward.1} parent=55 // pred_check_branch
          %372 = sbr.rel (%p370) target = $region64
        $region63: #{gcn_forward.1} parent=55 // pred_region
          %373 = dma.done [#allocation5], 16
        $region64: #{gcn_forward.1} parent=55 // pred_fallthru
          _
        // Predicated region
        $region65: #{gcn_forward.1} parent=55 // pred_check
          %p374 = pneg %p144
        $region66: #{gcn_forward.1} parent=55 // pred_check_branch
          %376 = sbr.rel (%p374) target = $region68
        $region67: #{gcn_forward.1} parent=55 // pred_region
          %377 = dma.done [#allocation5], 1536
        $region68: #{gcn_forward.1} parent=55 // pred_fallthru
          _
        // Predicated region
        $region69: #{gcn_forward.1} parent=55 // pred_check
          %p378 = pneg %p165
        $region70: #{gcn_forward.1} parent=55 // pred_check_branch
          %380 = sbr.rel (%p378) target = $region72
        $region71: #{gcn_forward.1} parent=55 // pred_region
          %381 = dma.done [#allocation8], 96
        $region72: #{gcn_forward.1} parent=55 // pred_fallthru
          _
        %s382 = sand.u32 %s23, 1
        %s383 = scalar_lea.sflag [#allocation3], %s382
        %s384 = sand.u32 %s178, 1
        %s385 = smul.addr %s384, 1152
        %s386 = scalar_lea.vmem [#allocation9], %s385
        // Predicated region
        $region73: #{gcn_forward.1} parent=55 // pred_check
          %p387 = pneg %p191
        $region74: #{gcn_forward.1} parent=55 // pred_check_branch
          %389 = sbr.rel (%p387) target = $region76
        $region75: #{gcn_forward.1} parent=55 // pred_region
          %390 = dma.done %s383, 18432
        $region76: #{gcn_forward.1} parent=55 // pred_fallthru
          _
        %s391 = sand.u32 %s23, 1
        %s392 = scalar_lea.sflag [#allocation3], %s391
        %s393 = sand.u32 %s204, 1
        %s394 = smul.addr %s393, 3
        %s395 = scalar_lea.vmem [#allocation10], %s394
        // Predicated region
        $region77: #{gcn_forward.1} parent=55 // pred_check
          %p396 = pneg %p217
        $region78: #{gcn_forward.1} parent=55 // pred_check_branch
          %398 = sbr.rel (%p396) target = $region80
        $region79: #{gcn_forward.1} parent=55 // pred_region
          %399 = dma.done %s392, 48
        $region80: #{gcn_forward.1} parent=55 // pred_fallthru
          _
        %p400 = pneg %p39
        %p401 = pneg %p36
        %p402 = pneg %p60
        %p403 = pneg %p57
        %p404 = pneg %p81
        %p405 = pneg %p78
        %p406 = pneg %p102
        %p407 = pneg %p99
        %p408 = pneg %p123
        %p409 = pneg %p120
        %p410 = pneg %p144
        %p411 = pneg %p141
        %p412 = pneg %p165
        %p413 = pneg %p162
        %s414 = sand.u32 %s23, 1
        %s415 = scalar_lea.sflag [#allocation3], %s414
        %s416 = sand.u32 %s178, 1
        %s417 = smul.addr %s416, 1152
        %s418 = scalar_lea.vmem [#allocation9], %s417
        %p419 = pneg %p191
        %p420 = pneg %p188
        %s421 = sand.u32 %s23, 1
        %s422 = scalar_lea.sflag [#allocation3], %s421
        %s423 = sand.u32 %s204, 1
        %s424 = smul.addr %s423, 3
        %s425 = scalar_lea.vmem [#allocation10], %s424
        %p426 = pneg %p217
        %p427 = pneg %p214
        %p428 = pneg %p243
        %p429 = pneg %p240
        %s430 = sand.u32 %s230, 1
        %s431 = sand.u32 %s230, 1
        %s432 = smul.addr %s431, 384
        %s433 = scalar_lea.vmem [#allocation11], %s432
        %s434 = smul.u32 3, %s23
        %s435 = smul.u32 3, %s23
        %s436 = smul.u32 3, %s23
        %v438 = vld [vmem:[%s1] sm:$0xf]
        %v439 = vld [vmem:[%s1 + $0x4] sm:$0xf]
        %v440 = vld [vmem:[%s1 + $0x8] sm:$0xf]
        %v441 = vld [vmem:[%s1 + $0xc] sm:$0xf]
        %v442 = vld [vmem:[%s1 + $0x10] sm:$0xf]
        %v443 = vld [vmem:[%s1 + $0x14] sm:$0xf]
        %v444 = vld [vmem:[%s1 + $0x18] sm:$0xf]
        %v445 = vld [vmem:[%s1 + $0x1c] sm:$0xf]
        %v446 = vld [vmem:[%s1 + $0x20] sm:$0xf]
        %v447 = vld [vmem:[%s1 + $0x24] sm:$0xf]
        %v448 = vld [vmem:[%s1 + $0x28] sm:$0xf]
        %v449 = vld [vmem:[%s1 + $0x2c] sm:$0xf]
        %v450 = vld [vmem:[%s1 + $0x30] sm:$0xf]
        %v451 = vld [vmem:[%s1 + $0x34] sm:$0xf]
        %v452 = vld [vmem:[%s1 + $0x38] sm:$0xf]
        %v453 = vld [vmem:[%s1 + $0x3c] sm:$0xf]
        %v454 = vld [vmem:[%s2] sm:$0xff]
        %v455 = vld [vmem:[%s2 + $0x8] sm:$0xff]
        %v456 = vld [vmem:[%s2 + $0x10] sm:$0xff]
        %v457 = vld [vmem:[%s2 + $0x18] sm:$0xff]
        %v458 = vld [vmem:[%s2 + $0x20] sm:$0xff]
        %v459 = vld [vmem:[%s2 + $0x28] sm:$0xff]
        %v460 = vld [vmem:[%s2 + $0x30] sm:$0xff]
        %v461 = vld [vmem:[%s2 + $0x38] sm:$0xff]
        %v462 = vld [vmem:[%s2 + $0x40] sm:$0xff]
        %v463 = vld [vmem:[%s2 + $0x48] sm:$0xff]
        %v464 = vld [vmem:[%s2 + $0x50] sm:$0xff]
        %v465 = vld [vmem:[%s2 + $0x58] sm:$0xff]
        %v466 = vld [vmem:[%s2 + $0x60] sm:$0xff]
        %v467 = vld [vmem:[%s2 + $0x68] sm:$0xff]
        %v468 = vld [vmem:[%s2 + $0x70] sm:$0xff]
        %v469 = vld [vmem:[%s2 + $0x78] sm:$0xff]
        %v470 = vld [vmem:[%s0] sm:$0xff]
        %v471 = vld [vmem:[%s0 + $0x8] sm:$0xff]
        %v472 = vld [vmem:[%s0 + $0x10] sm:$0xff]
        %v473 = vld [vmem:[%s0 + $0x18] sm:$0xff]
        %v474 = vld [vmem:[%s0 + $0x20] sm:$0xff]
        %v475 = vld [vmem:[%s0 + $0x28] sm:$0xff]
        %v476 = vld [vmem:[%s0 + $0x30] sm:$0xff]
        %v477 = vld [vmem:[%s0 + $0x38] sm:$0xff]
        %v478 = vld [vmem:[%s0 + $0x40] sm:$0xff]
        %v479 = vld [vmem:[%s0 + $0x48] sm:$0xff]
        %v480 = vld [vmem:[%s0 + $0x50] sm:$0xff]
        %v481 = vld [vmem:[%s0 + $0x58] sm:$0xff]
        %v482 = vld [vmem:[%s0 + $0x60] sm:$0xff]
        %v483 = vld [vmem:[%s0 + $0x68] sm:$0xff]
        %v484 = vld [vmem:[%s0 + $0x70] sm:$0xff]
        %v485 = vld [vmem:[%s0 + $0x78] sm:$0xff]
        %487 = vset.pattern.permute.xlu0 0
        %488 = vperm.xlu0 %487, %v454
        %v489 = vpop.permute.xlu0 %488
        %492 = vset.pattern.permute.xlu0 0
        %493 = vperm.xlu0 %492, %v455
        %v494 = vpop.permute.xlu0 %493
        %497 = vset.pattern.permute.xlu0 0
        %498 = vperm.xlu0 %497, %v456
        %v499 = vpop.permute.xlu0 %498
        %502 = vset.pattern.permute.xlu0 0
        %503 = vperm.xlu0 %502, %v457
        %v504 = vpop.permute.xlu0 %503
        %507 = vset.pattern.permute.xlu0 0
        %508 = vperm.xlu0 %507, %v458
        %v509 = vpop.permute.xlu0 %508
        %512 = vset.pattern.permute.xlu0 0
        %513 = vperm.xlu0 %512, %v459
        %v514 = vpop.permute.xlu0 %513
        %517 = vset.pattern.permute.xlu0 0
        %518 = vperm.xlu0 %517, %v460
        %v519 = vpop.permute.xlu0 %518
        %522 = vset.pattern.permute.xlu0 0
        %523 = vperm.xlu0 %522, %v461
        %v524 = vpop.permute.xlu0 %523
        %527 = vset.pattern.permute.xlu0 0
        %528 = vperm.xlu0 %527, %v462
        %v529 = vpop.permute.xlu0 %528
        %532 = vset.pattern.permute.xlu0 0
        %533 = vperm.xlu0 %532, %v463
        %v534 = vpop.permute.xlu0 %533
        %537 = vset.pattern.permute.xlu0 0
        %538 = vperm.xlu0 %537, %v464
        %v539 = vpop.permute.xlu0 %538
        %542 = vset.pattern.permute.xlu0 0
        %543 = vperm.xlu0 %542, %v465
        %v544 = vpop.permute.xlu0 %543
        %547 = vset.pattern.permute.xlu0 0
        %548 = vperm.xlu0 %547, %v466
        %v549 = vpop.permute.xlu0 %548
        %552 = vset.pattern.permute.xlu0 0
        %553 = vperm.xlu0 %552, %v467
        %v554 = vpop.permute.xlu0 %553
        %557 = vset.pattern.permute.xlu0 0
        %558 = vperm.xlu0 %557, %v468
        %v559 = vpop.permute.xlu0 %558
        %562 = vset.pattern.permute.xlu0 0
        %563 = vperm.xlu0 %562, %v469
        %v564 = vpop.permute.xlu0 %563
        %v566 = vmul.f32 %v489, %v470
        %v567 = vmul.f32 %v494, %v471
        %v568 = vmul.f32 %v499, %v472
        %v569 = vmul.f32 %v504, %v473
        %v570 = vmul.f32 %v509, %v474
        %v571 = vmul.f32 %v514, %v475
        %v572 = vmul.f32 %v519, %v476
        %v573 = vmul.f32 %v524, %v477
        %v574 = vmul.f32 %v529, %v478
        %v575 = vmul.f32 %v534, %v479
        %v576 = vmul.f32 %v539, %v480
        %v577 = vmul.f32 %v544, %v481
        %v578 = vmul.f32 %v549, %v482
        %v579 = vmul.f32 %v554, %v483
        %v580 = vmul.f32 %v559, %v484
        %v581 = vmul.f32 %v564, %v485
        %v582 = vpack.c.bf16 %v567, %v566
        %v583 = vpack.c.bf16 %v569, %v568
        %v584 = vpack.c.bf16 %v571, %v570
        %v585 = vpack.c.bf16 %v573, %v572
        %v586 = vpack.c.bf16 %v575, %v574
        %v587 = vpack.c.bf16 %v577, %v576
        %v588 = vpack.c.bf16 %v579, %v578
        %v589 = vpack.c.bf16 %v581, %v580
        %v606 = vunpack.c.l.b16 %v438
        %v607 = vunpack.c.l.b16 %v439
        %v608 = vunpack.c.l.b16 %v440
        %v609 = vunpack.c.l.b16 %v441
        %v610 = vunpack.c.l.b16 %v442
        %v611 = vunpack.c.l.b16 %v443
        %v612 = vunpack.c.l.b16 %v444
        %v613 = vunpack.c.l.b16 %v445
        %v614 = vunpack.c.l.b16 %v446
        %v615 = vunpack.c.l.b16 %v447
        %v616 = vunpack.c.l.b16 %v448
        %v617 = vunpack.c.l.b16 %v449
        %v618 = vunpack.c.l.b16 %v450
        %v619 = vunpack.c.l.b16 %v451
        %v620 = vunpack.c.l.b16 %v452
        %v621 = vunpack.c.l.b16 %v453
        %v622 = vpack.c.b16 %v607, %v606
        %v623 = vpack.c.b16 %v609, %v608
        %v624 = vpack.c.b16 %v611, %v610
        %v625 = vpack.c.b16 %v613, %v612
        %v626 = vpack.c.b16 %v615, %v614
        %v627 = vpack.c.b16 %v617, %v616
        %v628 = vpack.c.b16 %v619, %v618
        %v629 = vpack.c.b16 %v621, %v620
        %638 = vmatprep.subr.bf16.mxu0 0
        %639 = vmatpush1.bf16.msra.mxu0 %v589
        %640 = vmatprep.subr.bf16.mxu0 0
        %641 = vmatpush1.bf16.msra.mxu0 %v588
        %642 = vmatprep.subr.bf16.mxu0 0
        %643 = vmatpush1.bf16.msra.mxu0 %v587
        %644 = vmatprep.subr.bf16.mxu0 0
        %645 = vmatpush1.bf16.msra.mxu0 %v586
        %646 = vmatprep.subr.bf16.mxu0 0
        %647 = vmatpush1.bf16.msra.mxu0 %v585
        %648 = vmatprep.subr.bf16.mxu0 0
        %649 = vmatpush1.bf16.msra.mxu0 %v584
        %650 = vmatprep.subr.bf16.mxu0 0
        %651 = vmatpush1.bf16.msra.mxu0 %v583
        %652 = vmatprep.subr.bf16.mxu0 0
        %653 = vmatpush1.bf16.msra.mxu0 %v582
        %654 = vmatprep.subr.bf16.mxu0 0
        %655 = vmatpush2.bf16.msra.mxu0 0
        %656 = vmatprep.subr.bf16.mxu0 0
        %657 = vmatpush2.bf16.msra.mxu0 0
        %658 = vmatprep.subr.bf16.mxu0 0
        %659 = vmatpush2.bf16.msra.mxu0 0
        %660 = vmatprep.subr.bf16.mxu0 0
        %661 = vmatpush2.bf16.msra.mxu0 0
        %662 = vmatprep.subr.bf16.mxu0 0
        %663 = vmatpush2.bf16.msra.mxu0 0
        %664 = vmatprep.subr.bf16.mxu0 0
        %665 = vmatpush2.bf16.msra.mxu0 0
        %666 = vmatprep.subr.bf16.mxu0 0
        %667 = vmatpush2.bf16.msra.mxu0 0
        %668 = vmatprep.subr.bf16.mxu0 0
        %669 = vmatpush2.bf16.msra.mxu0 0
        %670 = vmatprep.mubr.bf16.mxu0 0
        %671 = vmatmul.mubr.bf16.gmra.mxu0 %v622
        %v672 = vpop.f32.mrf.mxu0
        %v673 = vadd.f32 0.0, %v672
        %v674 = vpop.f32.mrf.mxu0
        %v675 = vpop.f32.mrf.mxu0
        %v676 = vadd.f32 0.0, %v675
        %v677 = vpop.f32.mrf.mxu0
        %678 = vmatprep.mubr.bf16.mxu0 0
        %679 = vmatmul.mubr.bf16.gmra.mxu0 %v623
        %v680 = vpop.f32.mrf.mxu0
        %v681 = vadd.f32 0.0, %v680
        %v682 = vpop.f32.mrf.mxu0
        %v683 = vpop.f32.mrf.mxu0
        %v684 = vadd.f32 0.0, %v683
        %v685 = vpop.f32.mrf.mxu0
        %686 = vmatprep.mubr.bf16.mxu0 0
        %687 = vmatmul.mubr.bf16.gmra.mxu0 %v624
        %v688 = vpop.f32.mrf.mxu0
        %v689 = vadd.f32 0.0, %v688
        %v690 = vpop.f32.mrf.mxu0
        %v691 = vpop.f32.mrf.mxu0
        %v692 = vadd.f32 0.0, %v691
        %v693 = vpop.f32.mrf.mxu0
        %694 = vmatprep.mubr.bf16.mxu0 0
        %695 = vmatmul.mubr.bf16.gmra.mxu0 %v625
        %v696 = vpop.f32.mrf.mxu0
        %v697 = vadd.f32 0.0, %v696
        %v698 = vpop.f32.mrf.mxu0
        %v699 = vpop.f32.mrf.mxu0
        %v700 = vadd.f32 0.0, %v699
        %v701 = vpop.f32.mrf.mxu0
        %702 = vmatprep.mubr.bf16.mxu0 0
        %703 = vmatmul.mubr.bf16.gmra.mxu0 %v626
        %v704 = vpop.f32.mrf.mxu0
        %v705 = vadd.f32 0.0, %v704
        %v706 = vpop.f32.mrf.mxu0
        %v707 = vpop.f32.mrf.mxu0
        %v708 = vadd.f32 0.0, %v707
        %v709 = vpop.f32.mrf.mxu0
        %710 = vmatprep.mubr.bf16.mxu0 0
        %711 = vmatmul.mubr.bf16.gmra.mxu0 %v627
        %v712 = vpop.f32.mrf.mxu0
        %v713 = vadd.f32 0.0, %v712
        %v714 = vpop.f32.mrf.mxu0
        %v715 = vpop.f32.mrf.mxu0
        %v716 = vadd.f32 0.0, %v715
        %v717 = vpop.f32.mrf.mxu0
        %718 = vmatprep.mubr.bf16.mxu0 0
        %719 = vmatmul.mubr.bf16.gmra.mxu0 %v628
        %v720 = vpop.f32.mrf.mxu0
        %v721 = vadd.f32 0.0, %v720
        %v722 = vpop.f32.mrf.mxu0
        %v723 = vpop.f32.mrf.mxu0
        %v724 = vadd.f32 0.0, %v723
        %v725 = vpop.f32.mrf.mxu0
        %726 = vmatprep.mubr.bf16.mxu0 0
        %727 = vmatmul.mubr.bf16.gmra.mxu0 %v629
        %v728 = vpop.f32.mrf.mxu0
        %v729 = vadd.f32 0.0, %v728
        %v730 = vpop.f32.mrf.mxu0
        %v731 = vpop.f32.mrf.mxu0
        %v732 = vadd.f32 0.0, %v731
        %v733 = vpop.f32.mrf.mxu0
        %734 = vdwg.mxu0
        %v735 = vmul.f32 %v489, %v673
        %v736 = vmul.f32 %v494, %v676
        %v737 = vmul.f32 %v499, %v681
        %v738 = vmul.f32 %v504, %v684
        %v739 = vmul.f32 %v509, %v689
        %v740 = vmul.f32 %v514, %v692
        %v741 = vmul.f32 %v519, %v697
        %v742 = vmul.f32 %v524, %v700
        %v743 = vmul.f32 %v529, %v705
        %v744 = vmul.f32 %v534, %v708
        %v745 = vmul.f32 %v539, %v713
        %v746 = vmul.f32 %v544, %v716
        %v747 = vmul.f32 %v549, %v721
        %v748 = vmul.f32 %v554, %v724
        %v749 = vmul.f32 %v559, %v729
        %v750 = vmul.f32 %v564, %v732
        %v751 = vpack.c.bf16 %v736, %v735
        %v752 = vpack.c.bf16 %v738, %v737
        %v753 = vpack.c.bf16 %v740, %v739
        %v754 = vpack.c.bf16 %v742, %v741
        %v755 = vpack.c.bf16 %v744, %v743
        %v756 = vpack.c.bf16 %v746, %v745
        %v757 = vpack.c.bf16 %v748, %v747
        %v758 = vpack.c.bf16 %v750, %v749
        %v759 = vld [vmem:[#allocation2] sm:$0xf]
        %v760 = vld [vmem:[#allocation2 + $0x4] sm:$0xf]
        %v761 = vld [vmem:[#allocation4] sm:$0x1]
        %v763 = vlaneseq
        %v764 = vshrl.u32 %v763, 7
        %v765 = vsub.s32 0, %v764
        %v766 = vrot.slane %v761, %v765
        %v770 = vunpack.c.l.b16 %v759
        %v771 = vunpack.c.l.b16 %v760
        %v772 = vpack.c.b16 %v771, %v770
        %vm774 = vcmask 130048
        %v776 = vsel %vm774, %v751, 0
        %v779 = vsel %vm774, %v752, 0
        %v782 = vsel %vm774, %v753, 0
        %v785 = vsel %vm774, %v754, 0
        %v788 = vsel %vm774, %v755, 0
        %v791 = vsel %vm774, %v756, 0
        %v794 = vsel %vm774, %v757, 0
        %v797 = vsel %vm774, %v758, 0
        %799 = vmatprep.subr.bf16.mxu0 0
        %800 = vmatpush1.bf16.msra.mxu0 0
        %801 = vmatprep.subr.bf16.mxu0 0
        %802 = vmatpush1.bf16.msra.mxu0 0
        %803 = vmatprep.subr.bf16.mxu0 0
        %804 = vmatpush1.bf16.msra.mxu0 0
        %805 = vmatprep.subr.bf16.mxu0 0
        %806 = vmatpush1.bf16.msra.mxu0 0
        %807 = vmatprep.subr.bf16.mxu0 0
        %808 = vmatpush1.bf16.msra.mxu0 0
        %809 = vmatprep.subr.bf16.mxu0 0
        %810 = vmatpush1.bf16.msra.mxu0 0
        %811 = vmatprep.subr.bf16.mxu0 0
        %812 = vmatpush1.bf16.msra.mxu0 0
        %813 = vmatprep.subr.bf16.mxu0 0
        %814 = vmatpush1.bf16.msra.mxu0 %v772
        %815 = vmatprep.subr.bf16.mxu0 0
        %816 = vmatpush2.bf16.msra.mxu0 0
        %817 = vmatprep.subr.bf16.mxu0 0
        %818 = vmatpush2.bf16.msra.mxu0 0
        %819 = vmatprep.subr.bf16.mxu0 0
        %820 = vmatpush2.bf16.msra.mxu0 0
        %821 = vmatprep.subr.bf16.mxu0 0
        %822 = vmatpush2.bf16.msra.mxu0 0
        %823 = vmatprep.subr.bf16.mxu0 0
        %824 = vmatpush2.bf16.msra.mxu0 0
        %825 = vmatprep.subr.bf16.mxu0 0
        %826 = vmatpush2.bf16.msra.mxu0 0
        %827 = vmatprep.subr.bf16.mxu0 0
        %828 = vmatpush2.bf16.msra.mxu0 0
        %829 = vmatprep.subr.bf16.mxu0 0
        %830 = vmatpush2.bf16.msra.mxu0 0
        %831 = vmatprep.mubr.bf16.mxu0 0
        %832 = vmatmul.mubr.bf16.gmra.mxu0 %v776
        %v833 = vpop.f32.mrf.mxu0
        %v834 = vadd.f32 %v766, %v833
        %v835 = vpop.f32.mrf.mxu0
        %v836 = vpop.f32.mrf.mxu0
        %v837 = vadd.f32 %v766, %v836
        %v838 = vpop.f32.mrf.mxu0
        %839 = vmatprep.mubr.bf16.mxu0 0
        %840 = vmatmul.mubr.bf16.gmra.mxu0 %v779
        %v841 = vpop.f32.mrf.mxu0
        %v842 = vadd.f32 %v766, %v841
        %v843 = vpop.f32.mrf.mxu0
        %v844 = vpop.f32.mrf.mxu0
        %v845 = vadd.f32 %v766, %v844
        %v846 = vpop.f32.mrf.mxu0
        %847 = vmatprep.mubr.bf16.mxu0 0
        %848 = vmatmul.mubr.bf16.gmra.mxu0 %v782
        %v849 = vpop.f32.mrf.mxu0
        %v850 = vadd.f32 %v766, %v849
        %v851 = vpop.f32.mrf.mxu0
        %v852 = vpop.f32.mrf.mxu0
        %v853 = vadd.f32 %v766, %v852
        %v854 = vpop.f32.mrf.mxu0
        %855 = vmatprep.mubr.bf16.mxu0 0
        %856 = vmatmul.mubr.bf16.gmra.mxu0 %v785
        %v857 = vpop.f32.mrf.mxu0
        %v858 = vadd.f32 %v766, %v857
        %v859 = vpop.f32.mrf.mxu0
        %v860 = vpop.f32.mrf.mxu0
        %v861 = vadd.f32 %v766, %v860
        %v862 = vpop.f32.mrf.mxu0
        %863 = vmatprep.mubr.bf16.mxu0 0
        %864 = vmatmul.mubr.bf16.gmra.mxu0 %v788
        %v865 = vpop.f32.mrf.mxu0
        %v866 = vadd.f32 %v766, %v865
        %v867 = vpop.f32.mrf.mxu0
        %v868 = vpop.f32.mrf.mxu0
        %v869 = vadd.f32 %v766, %v868
        %v870 = vpop.f32.mrf.mxu0
        %871 = vmatprep.mubr.bf16.mxu0 0
        %872 = vmatmul.mubr.bf16.gmra.mxu0 %v791
        %v873 = vpop.f32.mrf.mxu0
        %v874 = vadd.f32 %v766, %v873
        %v875 = vpop.f32.mrf.mxu0
        %v876 = vpop.f32.mrf.mxu0
        %v877 = vadd.f32 %v766, %v876
        %v878 = vpop.f32.mrf.mxu0
        %879 = vmatprep.mubr.bf16.mxu0 0
        %880 = vmatmul.mubr.bf16.gmra.mxu0 %v794
        %v881 = vpop.f32.mrf.mxu0
        %v882 = vadd.f32 %v766, %v881
        %v883 = vpop.f32.mrf.mxu0
        %v884 = vpop.f32.mrf.mxu0
        %v885 = vadd.f32 %v766, %v884
        %v886 = vpop.f32.mrf.mxu0
        %887 = vmatprep.mubr.bf16.mxu0 0
        %888 = vmatmul.mubr.bf16.gmra.mxu0 %v797
        %v889 = vpop.f32.mrf.mxu0
        %v890 = vadd.f32 %v766, %v889
        %v891 = vpop.f32.mrf.mxu0
        %v892 = vpop.f32.mrf.mxu0
        %v893 = vadd.f32 %v766, %v892
        %v894 = vpop.f32.mrf.mxu0
        %895 = vdwg.mxu0
        %v896 = vmax.f32 %v834, 0.0
        %v897 = vmax.f32 %v837, 0.0
        %v898 = vmax.f32 %v842, 0.0
        %v899 = vmax.f32 %v845, 0.0
        %v900 = vmax.f32 %v850, 0.0
        %v901 = vmax.f32 %v853, 0.0
        %v902 = vmax.f32 %v858, 0.0
        %v903 = vmax.f32 %v861, 0.0
        %v904 = vmax.f32 %v866, 0.0
        %v905 = vmax.f32 %v869, 0.0
        %v906 = vmax.f32 %v874, 0.0
        %v907 = vmax.f32 %v877, 0.0
        %v908 = vmax.f32 %v882, 0.0
        %v909 = vmax.f32 %v885, 0.0
        %v910 = vmax.f32 %v890, 0.0
        %v911 = vmax.f32 %v893, 0.0
        %v912 = vmul.f32 %v489, %v896
        %v913 = vmul.f32 %v494, %v897
        %v914 = vmul.f32 %v499, %v898
        %v915 = vmul.f32 %v504, %v899
        %v916 = vmul.f32 %v509, %v900
        %v917 = vmul.f32 %v514, %v901
        %v918 = vmul.f32 %v519, %v902
        %v919 = vmul.f32 %v524, %v903
        %v920 = vmul.f32 %v529, %v904
        %v921 = vmul.f32 %v534, %v905
        %v922 = vmul.f32 %v539, %v906
        %v923 = vmul.f32 %v544, %v907
        %v924 = vmul.f32 %v549, %v908
        %v925 = vmul.f32 %v554, %v909
        %v926 = vmul.f32 %v559, %v910
        %v927 = vmul.f32 %v564, %v911
        %v928 = vpack.c.bf16 %v913, %v912
        %v929 = vpack.c.bf16 %v915, %v914
        %v930 = vpack.c.bf16 %v917, %v916
        %v931 = vpack.c.bf16 %v919, %v918
        %v932 = vpack.c.bf16 %v921, %v920
        %v933 = vpack.c.bf16 %v923, %v922
        %v934 = vpack.c.bf16 %v925, %v924
        %v935 = vpack.c.bf16 %v927, %v926
        %936 = vmatprep.subr.bf16.mxu0 0
        %937 = vmatpush1.bf16.msra.mxu0 %v935
        %938 = vmatprep.subr.bf16.mxu0 0
        %939 = vmatpush1.bf16.msra.mxu0 %v934
        %940 = vmatprep.subr.bf16.mxu0 0
        %941 = vmatpush1.bf16.msra.mxu0 %v933
        %942 = vmatprep.subr.bf16.mxu0 0
        %943 = vmatpush1.bf16.msra.mxu0 %v932
        %944 = vmatprep.subr.bf16.mxu0 0
        %945 = vmatpush1.bf16.msra.mxu0 %v931
        %946 = vmatprep.subr.bf16.mxu0 0
        %947 = vmatpush1.bf16.msra.mxu0 %v930
        %948 = vmatprep.subr.bf16.mxu0 0
        %949 = vmatpush1.bf16.msra.mxu0 %v929
        %950 = vmatprep.subr.bf16.mxu0 0
        %951 = vmatpush1.bf16.msra.mxu0 %v928
        %952 = vmatprep.subr.bf16.mxu0 0
        %953 = vmatpush2.bf16.msra.mxu0 0
        %954 = vmatprep.subr.bf16.mxu0 0
        %955 = vmatpush2.bf16.msra.mxu0 0
        %956 = vmatprep.subr.bf16.mxu0 0
        %957 = vmatpush2.bf16.msra.mxu0 0
        %958 = vmatprep.subr.bf16.mxu0 0
        %959 = vmatpush2.bf16.msra.mxu0 0
        %960 = vmatprep.subr.bf16.mxu0 0
        %961 = vmatpush2.bf16.msra.mxu0 0
        %962 = vmatprep.subr.bf16.mxu0 0
        %963 = vmatpush2.bf16.msra.mxu0 0
        %964 = vmatprep.subr.bf16.mxu0 0
        %965 = vmatpush2.bf16.msra.mxu0 0
        %966 = vmatprep.subr.bf16.mxu0 0
        %967 = vmatpush2.bf16.msra.mxu0 0
        %968 = vmatprep.mubr.bf16.mxu0 0
        %969 = vmatmul.mubr.bf16.gmra.mxu0 %v622
        %v970 = vpop.f32.mrf.mxu0
        %v971 = vadd.f32 0.0, %v970
        %v972 = vpop.f32.mrf.mxu0
        %v973 = vpop.f32.mrf.mxu0
        %v974 = vadd.f32 0.0, %v973
        %v975 = vpop.f32.mrf.mxu0
        %976 = vmatprep.mubr.bf16.mxu0 0
        %977 = vmatmul.mubr.bf16.gmra.mxu0 %v623
        %v978 = vpop.f32.mrf.mxu0
        %v979 = vadd.f32 0.0, %v978
        %v980 = vpop.f32.mrf.mxu0
        %v981 = vpop.f32.mrf.mxu0
        %v982 = vadd.f32 0.0, %v981
        %v983 = vpop.f32.mrf.mxu0
        %984 = vmatprep.mubr.bf16.mxu0 0
        %985 = vmatmul.mubr.bf16.gmra.mxu0 %v624
        %v986 = vpop.f32.mrf.mxu0
        %v987 = vadd.f32 0.0, %v986
        %v988 = vpop.f32.mrf.mxu0
        %v989 = vpop.f32.mrf.mxu0
        %v990 = vadd.f32 0.0, %v989
        %v991 = vpop.f32.mrf.mxu0
        %992 = vmatprep.mubr.bf16.mxu0 0
        %993 = vmatmul.mubr.bf16.gmra.mxu0 %v625
        %v994 = vpop.f32.mrf.mxu0
        %v995 = vadd.f32 0.0, %v994
        %v996 = vpop.f32.mrf.mxu0
        %v997 = vpop.f32.mrf.mxu0
        %v998 = vadd.f32 0.0, %v997
        %v999 = vpop.f32.mrf.mxu0
        %1000 = vmatprep.mubr.bf16.mxu0 0
        %1001 = vmatmul.mubr.bf16.gmra.mxu0 %v626
        %v1002 = vpop.f32.mrf.mxu0
        %v1003 = vadd.f32 0.0, %v1002
        %v1004 = vpop.f32.mrf.mxu0
        %v1005 = vpop.f32.mrf.mxu0
        %v1006 = vadd.f32 0.0, %v1005
        %v1007 = vpop.f32.mrf.mxu0
        %1008 = vmatprep.mubr.bf16.mxu0 0
        %1009 = vmatmul.mubr.bf16.gmra.mxu0 %v627
        %v1010 = vpop.f32.mrf.mxu0
        %v1011 = vadd.f32 0.0, %v1010
        %v1012 = vpop.f32.mrf.mxu0
        %v1013 = vpop.f32.mrf.mxu0
        %v1014 = vadd.f32 0.0, %v1013
        %v1015 = vpop.f32.mrf.mxu0
        %1016 = vmatprep.mubr.bf16.mxu0 0
        %1017 = vmatmul.mubr.bf16.gmra.mxu0 %v628
        %v1018 = vpop.f32.mrf.mxu0
        %v1019 = vadd.f32 0.0, %v1018
        %v1020 = vpop.f32.mrf.mxu0
        %v1021 = vpop.f32.mrf.mxu0
        %v1022 = vadd.f32 0.0, %v1021
        %v1023 = vpop.f32.mrf.mxu0
        %1024 = vmatprep.mubr.bf16.mxu0 0
        %1025 = vmatmul.mubr.bf16.gmra.mxu0 %v629
        %v1026 = vpop.f32.mrf.mxu0
        %v1027 = vadd.f32 0.0, %v1026
        %v1028 = vpop.f32.mrf.mxu0
        %v1029 = vpop.f32.mrf.mxu0
        %v1030 = vadd.f32 0.0, %v1029
        %v1031 = vpop.f32.mrf.mxu0
        %1032 = vdwg.mxu0
        %v1033 = vmul.f32 %v489, %v971
        %v1034 = vmul.f32 %v494, %v974
        %v1035 = vmul.f32 %v499, %v979
        %v1036 = vmul.f32 %v504, %v982
        %v1037 = vmul.f32 %v509, %v987
        %v1038 = vmul.f32 %v514, %v990
        %v1039 = vmul.f32 %v519, %v995
        %v1040 = vmul.f32 %v524, %v998
        %v1041 = vmul.f32 %v529, %v1003
        %v1042 = vmul.f32 %v534, %v1006
        %v1043 = vmul.f32 %v539, %v1011
        %v1044 = vmul.f32 %v544, %v1014
        %v1045 = vmul.f32 %v549, %v1019
        %v1046 = vmul.f32 %v554, %v1022
        %v1047 = vmul.f32 %v559, %v1027
        %v1048 = vmul.f32 %v564, %v1030
        %v1049 = vpack.c.bf16 %v1034, %v1033
        %v1050 = vpack.c.bf16 %v1036, %v1035
        %v1051 = vpack.c.bf16 %v1038, %v1037
        %v1052 = vpack.c.bf16 %v1040, %v1039
        %v1053 = vpack.c.bf16 %v1042, %v1041
        %v1054 = vpack.c.bf16 %v1044, %v1043
        %v1055 = vpack.c.bf16 %v1046, %v1045
        %v1056 = vpack.c.bf16 %v1048, %v1047
        %v1057 = vld [vmem:[#allocation6] sm:$0xff]
        %v1058 = vld [vmem:[#allocation6 + $0x8] sm:$0xff]
        %v1059 = vld [vmem:[#allocation6 + $0x10] sm:$0xff]
        %v1060 = vld [vmem:[#allocation6 + $0x18] sm:$0xff]
        %v1061 = vld [vmem:[#allocation6 + $0x20] sm:$0xff]
        %v1062 = vld [vmem:[#allocation6 + $0x28] sm:$0xff]
        %v1063 = vld [vmem:[#allocation6 + $0x30] sm:$0xff]
        %v1064 = vld [vmem:[#allocation6 + $0x38] sm:$0xff]
        %v1065 = vld [vmem:[#allocation6 + $0x40] sm:$0xff]
        %v1066 = vld [vmem:[#allocation6 + $0x48] sm:$0xff]
        %v1067 = vld [vmem:[#allocation6 + $0x50] sm:$0xff]
        %v1068 = vld [vmem:[#allocation6 + $0x58] sm:$0xff]
        %v1069 = vld [vmem:[#allocation7] sm:$0x3f]
        %v1071 = vlaneseq
        %v1072 = vshrl.u32 %v1071, 7
        %v1073 = vsub.s32 0, %v1072
        %v1074 = vrot.slane %v1069, %v1073
        %v1075 = vlaneseq
        %v1076 = vshrl.u32 %v1075, 7
        %v1077 = vsub.s32 1, %v1076
        %v1078 = vrot.slane %v1069, %v1077
        %v1079 = vlaneseq
        %v1080 = vshrl.u32 %v1079, 7
        %v1081 = vsub.s32 2, %v1080
        %v1082 = vrot.slane %v1069, %v1081
        %v1083 = vlaneseq
        %v1084 = vshrl.u32 %v1083, 7
        %v1085 = vsub.s32 3, %v1084
        %v1086 = vrot.slane %v1069, %v1085
        %v1087 = vlaneseq
        %v1088 = vshrl.u32 %v1087, 7
        %v1089 = vsub.s32 4, %v1088
        %v1090 = vrot.slane %v1069, %v1089
        %v1091 = vlaneseq
        %v1092 = vshrl.u32 %v1091, 7
        %v1093 = vsub.s32 5, %v1092
        %v1094 = vrot.slane %v1069, %v1093
        %v1113 = vunpack.c.l.b16 %v1057
        %v1114 = vunpack.c.h.b16 %v1057
        %v1115 = vunpack.c.l.b16 %v1058
        %v1116 = vunpack.c.h.b16 %v1058
        %v1117 = vunpack.c.l.b16 %v1059
        %v1118 = vunpack.c.h.b16 %v1059
        %v1119 = vunpack.c.l.b16 %v1060
        %v1120 = vunpack.c.h.b16 %v1060
        %v1121 = vunpack.c.l.b16 %v1061
        %v1122 = vunpack.c.h.b16 %v1061
        %v1123 = vunpack.c.l.b16 %v1062
        %v1124 = vunpack.c.h.b16 %v1062
        %v1125 = vunpack.c.l.b16 %v1063
        %v1126 = vunpack.c.h.b16 %v1063
        %v1127 = vunpack.c.l.b16 %v1064
        %v1128 = vunpack.c.h.b16 %v1064
        %v1129 = vunpack.c.l.b16 %v1065
        %v1130 = vunpack.c.h.b16 %v1065
        %v1131 = vunpack.c.l.b16 %v1066
        %v1132 = vunpack.c.h.b16 %v1066
        %v1133 = vunpack.c.l.b16 %v1067
        %v1134 = vunpack.c.h.b16 %v1067
        %v1135 = vunpack.c.l.b16 %v1068
        %v1136 = vunpack.c.h.b16 %v1068
        %v1137 = vpack.c.b16 %v1119, %v1113
        %v1138 = vpack.c.b16 %v1120, %v1114
        %v1139 = vpack.c.b16 %v1121, %v1115
        %v1140 = vpack.c.b16 %v1122, %v1116
        %v1141 = vpack.c.b16 %v1123, %v1117
        %v1142 = vpack.c.b16 %v1124, %v1118
        %v1143 = vpack.c.b16 %v1131, %v1125
        %v1144 = vpack.c.b16 %v1132, %v1126
        %v1145 = vpack.c.b16 %v1133, %v1127
        %v1146 = vpack.c.b16 %v1134, %v1128
        %v1147 = vpack.c.b16 %v1135, %v1129
        %v1148 = vpack.c.b16 %v1136, %v1130
        %vm1161 = vcmask 261120
        %v1163 = vsel %vm1161, %v1049, 0
        %v1166 = vsel %vm1161, %v1050, 0
        %v1169 = vsel %vm1161, %v1051, 0
        %v1172 = vsel %vm1161, %v1052, 0
        %v1175 = vsel %vm1161, %v1053, 0
        %v1178 = vsel %vm1161, %v1054, 0
        %v1181 = vsel %vm1161, %v1055, 0
        %v1184 = vsel %vm1161, %v1056, 0
        %1186 = vmatprep.subr.bf16.mxu0 0
        %1187 = vmatpush1.bf16.msra.mxu0 0
        %1188 = vmatprep.subr.bf16.mxu0 0
        %1189 = vmatpush1.bf16.msra.mxu0 0
        %1190 = vmatprep.subr.bf16.mxu0 0
        %1191 = vmatpush1.bf16.msra.mxu0 0
        %1192 = vmatprep.subr.bf16.mxu0 0
        %1193 = vmatpush1.bf16.msra.mxu0 0
        %1194 = vmatprep.subr.bf16.mxu0 0
        %1195 = vmatpush1.bf16.msra.mxu0 0
        %1196 = vmatprep.subr.bf16.mxu0 0
        %1197 = vmatpush1.bf16.msra.mxu0 0
        %1198 = vmatprep.subr.bf16.mxu0 %v1144
        %1199 = vmatpush1.bf16.msra.mxu0 %v1143
        %1200 = vmatprep.subr.bf16.mxu0 %v1138
        %1201 = vmatpush1.bf16.msra.mxu0 %v1137
        %1202 = vmatprep.subr.bf16.mxu0 0
        %1203 = vmatpush2.bf16.msra.mxu0 0
        %1204 = vmatprep.subr.bf16.mxu0 0
        %1205 = vmatpush2.bf16.msra.mxu0 0
        %1206 = vmatprep.subr.bf16.mxu0 0
        %1207 = vmatpush2.bf16.msra.mxu0 0
        %1208 = vmatprep.subr.bf16.mxu0 0
        %1209 = vmatpush2.bf16.msra.mxu0 0
        %1210 = vmatprep.subr.bf16.mxu0 0
        %1211 = vmatpush2.bf16.msra.mxu0 0
        %1212 = vmatprep.subr.bf16.mxu0 0
        %1213 = vmatpush2.bf16.msra.mxu0 0
        %1214 = vmatprep.subr.bf16.mxu0 0
        %1215 = vmatpush2.bf16.msra.mxu0 0
        %1216 = vmatprep.subr.bf16.mxu0 0
        %1217 = vmatpush2.bf16.msra.mxu0 0
        %1218 = vmatprep.mubr.bf16.mxu0 0
        %1219 = vmatmul.mubr.bf16.gmra.mxu0 %v1163
        %v1220 = vpop.f32.mrf.mxu0
        %v1221 = vadd.f32 %v1074, %v1220
        %v1222 = vpop.f32.mrf.mxu0
        %v1223 = vadd.f32 %v1078, %v1222
        %v1224 = vpop.f32.mrf.mxu0
        %v1225 = vadd.f32 %v1074, %v1224
        %v1226 = vpop.f32.mrf.mxu0
        %v1227 = vadd.f32 %v1078, %v1226
        %1228 = vmatprep.mubr.bf16.mxu0 0
        %1229 = vmatmul.mubr.bf16.gmra.mxu0 %v1166
        %v1230 = vpop.f32.mrf.mxu0
        %v1231 = vadd.f32 %v1074, %v1230
        %v1232 = vpop.f32.mrf.mxu0
        %v1233 = vadd.f32 %v1078, %v1232
        %v1234 = vpop.f32.mrf.mxu0
        %v1235 = vadd.f32 %v1074, %v1234
        %v1236 = vpop.f32.mrf.mxu0
        %v1237 = vadd.f32 %v1078, %v1236
        %1238 = vmatprep.mubr.bf16.mxu0 0
        %1239 = vmatmul.mubr.bf16.gmra.mxu0 %v1169
        %v1240 = vpop.f32.mrf.mxu0
        %v1241 = vadd.f32 %v1074, %v1240
        %v1242 = vpop.f32.mrf.mxu0
        %v1243 = vadd.f32 %v1078, %v1242
        %v1244 = vpop.f32.mrf.mxu0
        %v1245 = vadd.f32 %v1074, %v1244
        %v1246 = vpop.f32.mrf.mxu0
        %v1247 = vadd.f32 %v1078, %v1246
        %1248 = vmatprep.mubr.bf16.mxu0 0
        %1249 = vmatmul.mubr.bf16.gmra.mxu0 %v1172
        %v1250 = vpop.f32.mrf.mxu0
        %v1251 = vadd.f32 %v1074, %v1250
        %v1252 = vpop.f32.mrf.mxu0
        %v1253 = vadd.f32 %v1078, %v1252
        %v1254 = vpop.f32.mrf.mxu0
        %v1255 = vadd.f32 %v1074, %v1254
        %v1256 = vpop.f32.mrf.mxu0
        %v1257 = vadd.f32 %v1078, %v1256
        %1258 = vmatprep.mubr.bf16.mxu0 0
        %1259 = vmatmul.mubr.bf16.gmra.mxu0 %v1175
        %v1260 = vpop.f32.mrf.mxu0
        %v1261 = vadd.f32 %v1074, %v1260
        %v1262 = vpop.f32.mrf.mxu0
        %v1263 = vadd.f32 %v1078, %v1262
        %v1264 = vpop.f32.mrf.mxu0
        %v1265 = vadd.f32 %v1074, %v1264
        %v1266 = vpop.f32.mrf.mxu0
        %v1267 = vadd.f32 %v1078, %v1266
        %1268 = vmatprep.mubr.bf16.mxu0 0
        %1269 = vmatmul.mubr.bf16.gmra.mxu0 %v1178
        %v1270 = vpop.f32.mrf.mxu0
        %v1271 = vadd.f32 %v1074, %v1270
        %v1272 = vpop.f32.mrf.mxu0
        %v1273 = vadd.f32 %v1078, %v1272
        %v1274 = vpop.f32.mrf.mxu0
        %v1275 = vadd.f32 %v1074, %v1274
        %v1276 = vpop.f32.mrf.mxu0
        %v1277 = vadd.f32 %v1078, %v1276
        %1278 = vmatprep.mubr.bf16.mxu0 0
        %1279 = vmatmul.mubr.bf16.gmra.mxu0 %v1181
        %v1280 = vpop.f32.mrf.mxu0
        %v1281 = vadd.f32 %v1074, %v1280
        %v1282 = vpop.f32.mrf.mxu0
        %v1283 = vadd.f32 %v1078, %v1282
        %v1284 = vpop.f32.mrf.mxu0
        %v1285 = vadd.f32 %v1074, %v1284
        %v1286 = vpop.f32.mrf.mxu0
        %v1287 = vadd.f32 %v1078, %v1286
        %1288 = vmatprep.mubr.bf16.mxu0 0
        %1289 = vmatmul.mubr.bf16.gmra.mxu0 %v1184
        %v1290 = vpop.f32.mrf.mxu0
        %v1291 = vadd.f32 %v1074, %v1290
        %v1292 = vpop.f32.mrf.mxu0
        %v1293 = vadd.f32 %v1078, %v1292
        %v1294 = vpop.f32.mrf.mxu0
        %v1295 = vadd.f32 %v1074, %v1294
        %v1296 = vpop.f32.mrf.mxu0
        %v1297 = vadd.f32 %v1078, %v1296
        %1298 = vdwg.mxu0
        %1299 = vmatprep.subr.bf16.mxu0 0
        %1300 = vmatpush1.bf16.msra.mxu0 0
        %1301 = vmatprep.subr.bf16.mxu0 0
        %1302 = vmatpush1.bf16.msra.mxu0 0
        %1303 = vmatprep.subr.bf16.mxu0 0
        %1304 = vmatpush1.bf16.msra.mxu0 0
        %1305 = vmatprep.subr.bf16.mxu0 0
        %1306 = vmatpush1.bf16.msra.mxu0 0
        %1307 = vmatprep.subr.bf16.mxu0 0
        %1308 = vmatpush1.bf16.msra.mxu0 0
        %1309 = vmatprep.subr.bf16.mxu0 0
        %1310 = vmatpush1.bf16.msra.mxu0 0
        %1311 = vmatprep.subr.bf16.mxu0 %v1146
        %1312 = vmatpush1.bf16.msra.mxu0 %v1145
        %1313 = vmatprep.subr.bf16.mxu0 %v1140
        %1314 = vmatpush1.bf16.msra.mxu0 %v1139
        %1315 = vmatprep.subr.bf16.mxu0 0
        %1316 = vmatpush2.bf16.msra.mxu0 0
        %1317 = vmatprep.subr.bf16.mxu0 0
        %1318 = vmatpush2.bf16.msra.mxu0 0
        %1319 = vmatprep.subr.bf16.mxu0 0
        %1320 = vmatpush2.bf16.msra.mxu0 0
        %1321 = vmatprep.subr.bf16.mxu0 0
        %1322 = vmatpush2.bf16.msra.mxu0 0
        %1323 = vmatprep.subr.bf16.mxu0 0
        %1324 = vmatpush2.bf16.msra.mxu0 0
        %1325 = vmatprep.subr.bf16.mxu0 0
        %1326 = vmatpush2.bf16.msra.mxu0 0
        %1327 = vmatprep.subr.bf16.mxu0 0
        %1328 = vmatpush2.bf16.msra.mxu0 0
        %1329 = vmatprep.subr.bf16.mxu0 0
        %1330 = vmatpush2.bf16.msra.mxu0 0
        %1331 = vmatprep.mubr.bf16.mxu0 0
        %1332 = vmatmul.mubr.bf16.gmra.mxu0 %v1163
        %v1333 = vpop.f32.mrf.mxu0
        %v1334 = vadd.f32 %v1082, %v1333
        %v1335 = vpop.f32.mrf.mxu0
        %v1336 = vadd.f32 %v1086, %v1335
        %v1337 = vpop.f32.mrf.mxu0
        %v1338 = vadd.f32 %v1082, %v1337
        %v1339 = vpop.f32.mrf.mxu0
        %v1340 = vadd.f32 %v1086, %v1339
        %1341 = vmatprep.mubr.bf16.mxu0 0
        %1342 = vmatmul.mubr.bf16.gmra.mxu0 %v1166
        %v1343 = vpop.f32.mrf.mxu0
        %v1344 = vadd.f32 %v1082, %v1343
        %v1345 = vpop.f32.mrf.mxu0
        %v1346 = vadd.f32 %v1086, %v1345
        %v1347 = vpop.f32.mrf.mxu0
        %v1348 = vadd.f32 %v1082, %v1347
        %v1349 = vpop.f32.mrf.mxu0
        %v1350 = vadd.f32 %v1086, %v1349
        %1351 = vmatprep.mubr.bf16.mxu0 0
        %1352 = vmatmul.mubr.bf16.gmra.mxu0 %v1169
        %v1353 = vpop.f32.mrf.mxu0
        %v1354 = vadd.f32 %v1082, %v1353
        %v1355 = vpop.f32.mrf.mxu0
        %v1356 = vadd.f32 %v1086, %v1355
        %v1357 = vpop.f32.mrf.mxu0
        %v1358 = vadd.f32 %v1082, %v1357
        %v1359 = vpop.f32.mrf.mxu0
        %v1360 = vadd.f32 %v1086, %v1359
        %1361 = vmatprep.mubr.bf16.mxu0 0
        %1362 = vmatmul.mubr.bf16.gmra.mxu0 %v1172
        %v1363 = vpop.f32.mrf.mxu0
        %v1364 = vadd.f32 %v1082, %v1363
        %v1365 = vpop.f32.mrf.mxu0
        %v1366 = vadd.f32 %v1086, %v1365
        %v1367 = vpop.f32.mrf.mxu0
        %v1368 = vadd.f32 %v1082, %v1367
        %v1369 = vpop.f32.mrf.mxu0
        %v1370 = vadd.f32 %v1086, %v1369
        %1371 = vmatprep.mubr.bf16.mxu0 0
        %1372 = vmatmul.mubr.bf16.gmra.mxu0 %v1175
        %v1373 = vpop.f32.mrf.mxu0
        %v1374 = vadd.f32 %v1082, %v1373
        %v1375 = vpop.f32.mrf.mxu0
        %v1376 = vadd.f32 %v1086, %v1375
        %v1377 = vpop.f32.mrf.mxu0
        %v1378 = vadd.f32 %v1082, %v1377
        %v1379 = vpop.f32.mrf.mxu0
        %v1380 = vadd.f32 %v1086, %v1379
        %1381 = vmatprep.mubr.bf16.mxu0 0
        %1382 = vmatmul.mubr.bf16.gmra.mxu0 %v1178
        %v1383 = vpop.f32.mrf.mxu0
        %v1384 = vadd.f32 %v1082, %v1383
        %v1385 = vpop.f32.mrf.mxu0
        %v1386 = vadd.f32 %v1086, %v1385
        %v1387 = vpop.f32.mrf.mxu0
        %v1388 = vadd.f32 %v1082, %v1387
        %v1389 = vpop.f32.mrf.mxu0
        %v1390 = vadd.f32 %v1086, %v1389
        %1391 = vmatprep.mubr.bf16.mxu0 0
        %1392 = vmatmul.mubr.bf16.gmra.mxu0 %v1181
        %v1393 = vpop.f32.mrf.mxu0
        %v1394 = vadd.f32 %v1082, %v1393
        %v1395 = vpop.f32.mrf.mxu0
        %v1396 = vadd.f32 %v1086, %v1395
        %v1397 = vpop.f32.mrf.mxu0
        %v1398 = vadd.f32 %v1082, %v1397
        %v1399 = vpop.f32.mrf.mxu0
        %v1400 = vadd.f32 %v1086, %v1399
        %1401 = vmatprep.mubr.bf16.mxu0 0
        %1402 = vmatmul.mubr.bf16.gmra.mxu0 %v1184
        %v1403 = vpop.f32.mrf.mxu0
        %v1404 = vadd.f32 %v1082, %v1403
        %v1405 = vpop.f32.mrf.mxu0
        %v1406 = vadd.f32 %v1086, %v1405
        %v1407 = vpop.f32.mrf.mxu0
        %v1408 = vadd.f32 %v1082, %v1407
        %v1409 = vpop.f32.mrf.mxu0
        %v1410 = vadd.f32 %v1086, %v1409
        %1411 = vdwg.mxu0
        %1412 = vmatprep.subr.bf16.mxu0 0
        %1413 = vmatpush1.bf16.msra.mxu0 0
        %1414 = vmatprep.subr.bf16.mxu0 0
        %1415 = vmatpush1.bf16.msra.mxu0 0
        %1416 = vmatprep.subr.bf16.mxu0 0
        %1417 = vmatpush1.bf16.msra.mxu0 0
        %1418 = vmatprep.subr.bf16.mxu0 0
        %1419 = vmatpush1.bf16.msra.mxu0 0
        %1420 = vmatprep.subr.bf16.mxu0 0
        %1421 = vmatpush1.bf16.msra.mxu0 0
        %1422 = vmatprep.subr.bf16.mxu0 0
        %1423 = vmatpush1.bf16.msra.mxu0 0
        %1424 = vmatprep.subr.bf16.mxu0 %v1148
        %1425 = vmatpush1.bf16.msra.mxu0 %v1147
        %1426 = vmatprep.subr.bf16.mxu0 %v1142
        %1427 = vmatpush1.bf16.msra.mxu0 %v1141
        %1428 = vmatprep.subr.bf16.mxu0 0
        %1429 = vmatpush2.bf16.msra.mxu0 0
        %1430 = vmatprep.subr.bf16.mxu0 0
        %1431 = vmatpush2.bf16.msra.mxu0 0
        %1432 = vmatprep.subr.bf16.mxu0 0
        %1433 = vmatpush2.bf16.msra.mxu0 0
        %1434 = vmatprep.subr.bf16.mxu0 0
        %1435 = vmatpush2.bf16.msra.mxu0 0
        %1436 = vmatprep.subr.bf16.mxu0 0
        %1437 = vmatpush2.bf16.msra.mxu0 0
        %1438 = vmatprep.subr.bf16.mxu0 0
        %1439 = vmatpush2.bf16.msra.mxu0 0
        %1440 = vmatprep.subr.bf16.mxu0 0
        %1441 = vmatpush2.bf16.msra.mxu0 0
        %1442 = vmatprep.subr.bf16.mxu0 0
        %1443 = vmatpush2.bf16.msra.mxu0 0
        %1444 = vmatprep.mubr.bf16.mxu0 0
        %1445 = vmatmul.mubr.bf16.gmra.mxu0 %v1163
        %v1446 = vpop.f32.mrf.mxu0
        %v1447 = vadd.f32 %v1090, %v1446
        %v1448 = vpop.f32.mrf.mxu0
        %v1449 = vadd.f32 %v1094, %v1448
        %v1450 = vpop.f32.mrf.mxu0
        %v1451 = vadd.f32 %v1090, %v1450
        %v1452 = vpop.f32.mrf.mxu0
        %v1453 = vadd.f32 %v1094, %v1452
        %1454 = vmatprep.mubr.bf16.mxu0 0
        %1455 = vmatmul.mubr.bf16.gmra.mxu0 %v1166
        %v1456 = vpop.f32.mrf.mxu0
        %v1457 = vadd.f32 %v1090, %v1456
        %v1458 = vpop.f32.mrf.mxu0
        %v1459 = vadd.f32 %v1094, %v1458
        %v1460 = vpop.f32.mrf.mxu0
        %v1461 = vadd.f32 %v1090, %v1460
        %v1462 = vpop.f32.mrf.mxu0
        %v1463 = vadd.f32 %v1094, %v1462
        %1464 = vmatprep.mubr.bf16.mxu0 0
        %1465 = vmatmul.mubr.bf16.gmra.mxu0 %v1169
        %v1466 = vpop.f32.mrf.mxu0
        %v1467 = vadd.f32 %v1090, %v1466
        %v1468 = vpop.f32.mrf.mxu0
        %v1469 = vadd.f32 %v1094, %v1468
        %v1470 = vpop.f32.mrf.mxu0
        %v1471 = vadd.f32 %v1090, %v1470
        %v1472 = vpop.f32.mrf.mxu0
        %v1473 = vadd.f32 %v1094, %v1472
        %1474 = vmatprep.mubr.bf16.mxu0 0
        %1475 = vmatmul.mubr.bf16.gmra.mxu0 %v1172
        %v1476 = vpop.f32.mrf.mxu0
        %v1477 = vadd.f32 %v1090, %v1476
        %v1478 = vpop.f32.mrf.mxu0
        %v1479 = vadd.f32 %v1094, %v1478
        %v1480 = vpop.f32.mrf.mxu0
        %v1481 = vadd.f32 %v1090, %v1480
        %v1482 = vpop.f32.mrf.mxu0
        %v1483 = vadd.f32 %v1094, %v1482
        %1484 = vmatprep.mubr.bf16.mxu0 0
        %1485 = vmatmul.mubr.bf16.gmra.mxu0 %v1175
        %v1486 = vpop.f32.mrf.mxu0
        %v1487 = vadd.f32 %v1090, %v1486
        %v1488 = vpop.f32.mrf.mxu0
        %v1489 = vadd.f32 %v1094, %v1488
        %v1490 = vpop.f32.mrf.mxu0
        %v1491 = vadd.f32 %v1090, %v1490
        %v1492 = vpop.f32.mrf.mxu0
        %v1493 = vadd.f32 %v1094, %v1492
        %1494 = vmatprep.mubr.bf16.mxu0 0
        %1495 = vmatmul.mubr.bf16.gmra.mxu0 %v1178
        %v1496 = vpop.f32.mrf.mxu0
        %v1497 = vadd.f32 %v1090, %v1496
        %v1498 = vpop.f32.mrf.mxu0
        %v1499 = vadd.f32 %v1094, %v1498
        %v1500 = vpop.f32.mrf.mxu0
        %v1501 = vadd.f32 %v1090, %v1500
        %v1502 = vpop.f32.mrf.mxu0
        %v1503 = vadd.f32 %v1094, %v1502
        %1504 = vmatprep.mubr.bf16.mxu0 0
        %1505 = vmatmul.mubr.bf16.gmra.mxu0 %v1181
        %v1506 = vpop.f32.mrf.mxu0
        %v1507 = vadd.f32 %v1090, %v1506
        %v1508 = vpop.f32.mrf.mxu0
        %v1509 = vadd.f32 %v1094, %v1508
        %v1510 = vpop.f32.mrf.mxu0
        %v1511 = vadd.f32 %v1090, %v1510
        %v1512 = vpop.f32.mrf.mxu0
        %v1513 = vadd.f32 %v1094, %v1512
        %1514 = vmatprep.mubr.bf16.mxu0 0
        %1515 = vmatmul.mubr.bf16.gmra.mxu0 %v1184
        %v1516 = vpop.f32.mrf.mxu0
        %v1517 = vadd.f32 %v1090, %v1516
        %v1518 = vpop.f32.mrf.mxu0
        %v1519 = vadd.f32 %v1094, %v1518
        %v1520 = vpop.f32.mrf.mxu0
        %v1521 = vadd.f32 %v1090, %v1520
        %v1522 = vpop.f32.mrf.mxu0
        %v1523 = vadd.f32 %v1094, %v1522
        %1524 = vdwg.mxu0
        %v1525 = vpack.c.bf16 %v1225, %v1221
        %v1526 = vpack.c.bf16 %v1227, %v1223
        %v1527 = vpack.c.bf16 %v1338, %v1334
        %v1528 = vpack.c.bf16 %v1340, %v1336
        %v1529 = vpack.c.bf16 %v1451, %v1447
        %v1530 = vpack.c.bf16 %v1453, %v1449
        %v1531 = vpack.c.bf16 %v1235, %v1231
        %v1532 = vpack.c.bf16 %v1237, %v1233
        %v1533 = vpack.c.bf16 %v1348, %v1344
        %v1534 = vpack.c.bf16 %v1350, %v1346
        %v1535 = vpack.c.bf16 %v1461, %v1457
        %v1536 = vpack.c.bf16 %v1463, %v1459
        %v1537 = vpack.c.bf16 %v1245, %v1241
        %v1538 = vpack.c.bf16 %v1247, %v1243
        %v1539 = vpack.c.bf16 %v1358, %v1354
        %v1540 = vpack.c.bf16 %v1360, %v1356
        %v1541 = vpack.c.bf16 %v1471, %v1467
        %v1542 = vpack.c.bf16 %v1473, %v1469
        %v1543 = vpack.c.bf16 %v1255, %v1251
        %v1544 = vpack.c.bf16 %v1257, %v1253
        %v1545 = vpack.c.bf16 %v1368, %v1364
        %v1546 = vpack.c.bf16 %v1370, %v1366
        %v1547 = vpack.c.bf16 %v1481, %v1477
        %v1548 = vpack.c.bf16 %v1483, %v1479
        %v1549 = vpack.c.bf16 %v1265, %v1261
        %v1550 = vpack.c.bf16 %v1267, %v1263
        %v1551 = vpack.c.bf16 %v1378, %v1374
        %v1552 = vpack.c.bf16 %v1380, %v1376
        %v1553 = vpack.c.bf16 %v1491, %v1487
        %v1554 = vpack.c.bf16 %v1493, %v1489
        %v1555 = vpack.c.bf16 %v1275, %v1271
        %v1556 = vpack.c.bf16 %v1277, %v1273
        %v1557 = vpack.c.bf16 %v1388, %v1384
        %v1558 = vpack.c.bf16 %v1390, %v1386
        %v1559 = vpack.c.bf16 %v1501, %v1497
        %v1560 = vpack.c.bf16 %v1503, %v1499
        %v1561 = vpack.c.bf16 %v1285, %v1281
        %v1562 = vpack.c.bf16 %v1287, %v1283
        %v1563 = vpack.c.bf16 %v1398, %v1394
        %v1564 = vpack.c.bf16 %v1400, %v1396
        %v1565 = vpack.c.bf16 %v1511, %v1507
        %v1566 = vpack.c.bf16 %v1513, %v1509
        %v1567 = vpack.c.bf16 %v1295, %v1291
        %v1568 = vpack.c.bf16 %v1297, %v1293
        %v1569 = vpack.c.bf16 %v1408, %v1404
        %v1570 = vpack.c.bf16 %v1410, %v1406
        %v1571 = vpack.c.bf16 %v1521, %v1517
        %v1572 = vpack.c.bf16 %v1523, %v1519
        %v1573 = vld [vmem:[%s386] sm:$0xff]
        %v1574 = vld [vmem:[%s386 + $0x8] sm:$0xf]
        %v1575 = vld [vmem:[%s386 + $0xc] sm:$0xff]
        %v1576 = vld [vmem:[%s386 + $0x14] sm:$0xf]
        %v1577 = vld [vmem:[%s386 + $0x18] sm:$0xff]
        %v1578 = vld [vmem:[%s386 + $0x20] sm:$0xf]
        %v1579 = vld [vmem:[%s386 + $0x24] sm:$0xff]
        %v1580 = vld [vmem:[%s386 + $0x2c] sm:$0xf]
        %v1581 = vld [vmem:[%s386 + $0x30] sm:$0xff]
        %v1582 = vld [vmem:[%s386 + $0x38] sm:$0xf]
        %v1583 = vld [vmem:[%s386 + $0x3c] sm:$0xff]
        %v1584 = vld [vmem:[%s386 + $0x44] sm:$0xf]
        %v1585 = vld [vmem:[%s386 + $0x48] sm:$0xff]
        %v1586 = vld [vmem:[%s386 + $0x50] sm:$0xf]
        %v1587 = vld [vmem:[%s386 + $0x54] sm:$0xff]
        %v1588 = vld [vmem:[%s386 + $0x5c] sm:$0xf]
        %v1589 = vld [vmem:[%s386 + $0x60] sm:$0xff]
        %v1590 = vld [vmem:[%s386 + $0x68] sm:$0xf]
        %v1591 = vld [vmem:[%s386 + $0x6c] sm:$0xff]
        %v1592 = vld [vmem:[%s386 + $0x74] sm:$0xf]
        %v1593 = vld [vmem:[%s386 + $0x78] sm:$0xff]
        %v1594 = vld [vmem:[%s386 + $0x80] sm:$0xf]
        %v1595 = vld [vmem:[%s386 + $0x84] sm:$0xff]
        %v1596 = vld [vmem:[%s386 + $0x8c] sm:$0xf]
        %v1597 = vld [vmem:[%s386 + $0x90] sm:$0xff]
        %v1598 = vld [vmem:[%s386 + $0x98] sm:$0xf]
        %v1599 = vld [vmem:[%s386 + $0x9c] sm:$0xff]
        %v1600 = vld [vmem:[%s386 + $0xa4] sm:$0xf]
        %v1601 = vld [vmem:[%s386 + $0xa8] sm:$0xff]
        %v1602 = vld [vmem:[%s386 + $0xb0] sm:$0xf]
        %v1603 = vld [vmem:[%s386 + $0xb4] sm:$0xff]
        %v1604 = vld [vmem:[%s386 + $0xbc] sm:$0xf]
        %v1605 = vld [vmem:[%s386 + $0xc0] sm:$0xff]
        %v1606 = vld [vmem:[%s386 + $0xc8] sm:$0xf]
        %v1607 = vld [vmem:[%s386 + $0xcc] sm:$0xff]
        %v1608 = vld [vmem:[%s386 + $0xd4] sm:$0xf]
        %v1609 = vld [vmem:[%s386 + $0xd8] sm:$0xff]
        %v1610 = vld [vmem:[%s386 + $0xe0] sm:$0xf]
        %v1611 = vld [vmem:[%s386 + $0xe4] sm:$0xff]
        %v1612 = vld [vmem:[%s386 + $0xec] sm:$0xf]
        %v1613 = vld [vmem:[%s386 + $0xf0] sm:$0xff]
        %v1614 = vld [vmem:[%s386 + $0xf8] sm:$0xf]
        %v1615 = vld [vmem:[%s386 + $0xfc] sm:$0xff]
        %v1616 = vld [vmem:[%s386 + $0x104] sm:$0xf]
        %v1617 = vld [vmem:[%s386 + $0x108] sm:$0xff]
        %v1618 = vld [vmem:[%s386 + $0x110] sm:$0xf]
        %v1619 = vld [vmem:[%s386 + $0x114] sm:$0xff]
        %v1620 = vld [vmem:[%s386 + $0x11c] sm:$0xf]
        %v1621 = vld [vmem:[%s386 + $0x120] sm:$0xff]
        %v1622 = vld [vmem:[%s386 + $0x128] sm:$0xf]
        %v1623 = vld [vmem:[%s386 + $0x12c] sm:$0xff]
        %v1624 = vld [vmem:[%s386 + $0x134] sm:$0xf]
        %v1625 = vld [vmem:[%s386 + $0x138] sm:$0xff]
        %v1626 = vld [vmem:[%s386 + $0x140] sm:$0xf]
        %v1627 = vld [vmem:[%s386 + $0x144] sm:$0xff]
        %v1628 = vld [vmem:[%s386 + $0x14c] sm:$0xf]
        %v1629 = vld [vmem:[%s386 + $0x150] sm:$0xff]
        %v1630 = vld [vmem:[%s386 + $0x158] sm:$0xf]
        %v1631 = vld [vmem:[%s386 + $0x15c] sm:$0xff]
        %v1632 = vld [vmem:[%s386 + $0x164] sm:$0xf]
        %v1633 = vld [vmem:[%s386 + $0x168] sm:$0xff]
        %v1634 = vld [vmem:[%s386 + $0x170] sm:$0xf]
        %v1635 = vld [vmem:[%s386 + $0x174] sm:$0xff]
        %v1636 = vld [vmem:[%s386 + $0x17c] sm:$0xf]
        %v1637 = vld [vmem:[%s386 + $0x180] sm:$0xff]
        %v1638 = vld [vmem:[%s386 + $0x188] sm:$0xf]
        %v1639 = vld [vmem:[%s386 + $0x18c] sm:$0xff]
        %v1640 = vld [vmem:[%s386 + $0x194] sm:$0xf]
        %v1641 = vld [vmem:[%s386 + $0x198] sm:$0xff]
        %v1642 = vld [vmem:[%s386 + $0x1a0] sm:$0xf]
        %v1643 = vld [vmem:[%s386 + $0x1a4] sm:$0xff]
        %v1644 = vld [vmem:[%s386 + $0x1ac] sm:$0xf]
        %v1645 = vld [vmem:[%s386 + $0x1b0] sm:$0xff]
        %v1646 = vld [vmem:[%s386 + $0x1b8] sm:$0xf]
        %v1647 = vld [vmem:[%s386 + $0x1bc] sm:$0xff]
        %v1648 = vld [vmem:[%s386 + $0x1c4] sm:$0xf]
        %v1649 = vld [vmem:[%s386 + $0x1c8] sm:$0xff]
        %v1650 = vld [vmem:[%s386 + $0x1d0] sm:$0xf]
        %v1651 = vld [vmem:[%s386 + $0x1d4] sm:$0xff]
        %v1652 = vld [vmem:[%s386 + $0x1dc] sm:$0xf]
        %v1653 = vld [vmem:[%s386 + $0x1e0] sm:$0xff]
        %v1654 = vld [vmem:[%s386 + $0x1e8] sm:$0xf]
        %v1655 = vld [vmem:[%s386 + $0x1ec] sm:$0xff]
        %v1656 = vld [vmem:[%s386 + $0x1f4] sm:$0xf]
        %v1657 = vld [vmem:[%s386 + $0x1f8] sm:$0xff]
        %v1658 = vld [vmem:[%s386 + $0x200] sm:$0xf]
        %v1659 = vld [vmem:[%s386 + $0x204] sm:$0xff]
        %v1660 = vld [vmem:[%s386 + $0x20c] sm:$0xf]
        %v1661 = vld [vmem:[%s386 + $0x210] sm:$0xff]
        %v1662 = vld [vmem:[%s386 + $0x218] sm:$0xf]
        %v1663 = vld [vmem:[%s386 + $0x21c] sm:$0xff]
        %v1664 = vld [vmem:[%s386 + $0x224] sm:$0xf]
        %v1665 = vld [vmem:[%s386 + $0x228] sm:$0xff]
        %v1666 = vld [vmem:[%s386 + $0x230] sm:$0xf]
        %v1667 = vld [vmem:[%s386 + $0x234] sm:$0xff]
        %v1668 = vld [vmem:[%s386 + $0x23c] sm:$0xf]
        %v1669 = vld [vmem:[%s386 + $0x240] sm:$0xff]
        %v1670 = vld [vmem:[%s386 + $0x248] sm:$0xf]
        %v1671 = vld [vmem:[%s386 + $0x24c] sm:$0xff]
        %v1672 = vld [vmem:[%s386 + $0x254] sm:$0xf]
        %v1673 = vld [vmem:[%s386 + $0x258] sm:$0xff]
        %v1674 = vld [vmem:[%s386 + $0x260] sm:$0xf]
        %v1675 = vld [vmem:[%s386 + $0x264] sm:$0xff]
        %v1676 = vld [vmem:[%s386 + $0x26c] sm:$0xf]
        %v1677 = vld [vmem:[%s386 + $0x270] sm:$0xff]
        %v1678 = vld [vmem:[%s386 + $0x278] sm:$0xf]
        %v1679 = vld [vmem:[%s386 + $0x27c] sm:$0xff]
        %v1680 = vld [vmem:[%s386 + $0x284] sm:$0xf]
        %v1681 = vld [vmem:[%s386 + $0x288] sm:$0xff]
        %v1682 = vld [vmem:[%s386 + $0x290] sm:$0xf]
        %v1683 = vld [vmem:[%s386 + $0x294] sm:$0xff]
        %v1684 = vld [vmem:[%s386 + $0x29c] sm:$0xf]
        %v1685 = vld [vmem:[%s386 + $0x2a0] sm:$0xff]
        %v1686 = vld [vmem:[%s386 + $0x2a8] sm:$0xf]
        %v1687 = vld [vmem:[%s386 + $0x2ac] sm:$0xff]
        %v1688 = vld [vmem:[%s386 + $0x2b4] sm:$0xf]
        %v1689 = vld [vmem:[%s386 + $0x2b8] sm:$0xff]
        %v1690 = vld [vmem:[%s386 + $0x2c0] sm:$0xf]
        %v1691 = vld [vmem:[%s386 + $0x2c4] sm:$0xff]
        %v1692 = vld [vmem:[%s386 + $0x2cc] sm:$0xf]
        %v1693 = vld [vmem:[%s386 + $0x2d0] sm:$0xff]
        %v1694 = vld [vmem:[%s386 + $0x2d8] sm:$0xf]
        %v1695 = vld [vmem:[%s386 + $0x2dc] sm:$0xff]
        %v1696 = vld [vmem:[%s386 + $0x2e4] sm:$0xf]
        %v1697 = vld [vmem:[%s386 + $0x2e8] sm:$0xff]
        %v1698 = vld [vmem:[%s386 + $0x2f0] sm:$0xf]
        %v1699 = vld [vmem:[%s386 + $0x2f4] sm:$0xff]
        %v1700 = vld [vmem:[%s386 + $0x2fc] sm:$0xf]
        %v1701 = vld [vmem:[%s386 + $0x300] sm:$0xff]
        %v1702 = vld [vmem:[%s386 + $0x308] sm:$0xf]
        %v1703 = vld [vmem:[%s386 + $0x30c] sm:$0xff]
        %v1704 = vld [vmem:[%s386 + $0x314] sm:$0xf]
        %v1705 = vld [vmem:[%s386 + $0x318] sm:$0xff]
        %v1706 = vld [vmem:[%s386 + $0x320] sm:$0xf]
        %v1707 = vld [vmem:[%s386 + $0x324] sm:$0xff]
        %v1708 = vld [vmem:[%s386 + $0x32c] sm:$0xf]
        %v1709 = vld [vmem:[%s386 + $0x330] sm:$0xff]
        %v1710 = vld [vmem:[%s386 + $0x338] sm:$0xf]
        %v1711 = vld [vmem:[%s386 + $0x33c] sm:$0xff]
        %v1712 = vld [vmem:[%s386 + $0x344] sm:$0xf]
        %v1713 = vld [vmem:[%s386 + $0x348] sm:$0xff]
        %v1714 = vld [vmem:[%s386 + $0x350] sm:$0xf]
        %v1715 = vld [vmem:[%s386 + $0x354] sm:$0xff]
        %v1716 = vld [vmem:[%s386 + $0x35c] sm:$0xf]
        %v1717 = vld [vmem:[%s386 + $0x360] sm:$0xff]
        %v1718 = vld [vmem:[%s386 + $0x368] sm:$0xf]
        %v1719 = vld [vmem:[%s386 + $0x36c] sm:$0xff]
        %v1720 = vld [vmem:[%s386 + $0x374] sm:$0xf]
        %v1721 = vld [vmem:[%s386 + $0x378] sm:$0xff]
        %v1722 = vld [vmem:[%s386 + $0x380] sm:$0xf]
        %v1723 = vld [vmem:[%s386 + $0x384] sm:$0xff]
        %v1724 = vld [vmem:[%s386 + $0x38c] sm:$0xf]
        %v1725 = vld [vmem:[%s386 + $0x390] sm:$0xff]
        %v1726 = vld [vmem:[%s386 + $0x398] sm:$0xf]
        %v1727 = vld [vmem:[%s386 + $0x39c] sm:$0xff]
        %v1728 = vld [vmem:[%s386 + $0x3a4] sm:$0xf]
        %v1729 = vld [vmem:[%s386 + $0x3a8] sm:$0xff]
        %v1730 = vld [vmem:[%s386 + $0x3b0] sm:$0xf]
        %v1731 = vld [vmem:[%s386 + $0x3b4] sm:$0xff]
        %v1732 = vld [vmem:[%s386 + $0x3bc] sm:$0xf]
        %v1733 = vld [vmem:[%s386 + $0x3c0] sm:$0xff]
        %v1734 = vld [vmem:[%s386 + $0x3c8] sm:$0xf]
        %v1735 = vld [vmem:[%s386 + $0x3cc] sm:$0xff]
        %v1736 = vld [vmem:[%s386 + $0x3d4] sm:$0xf]
        %v1737 = vld [vmem:[%s386 + $0x3d8] sm:$0xff]
        %v1738 = vld [vmem:[%s386 + $0x3e0] sm:$0xf]
        %v1739 = vld [vmem:[%s386 + $0x3e4] sm:$0xff]
        %v1740 = vld [vmem:[%s386 + $0x3ec] sm:$0xf]
        %v1741 = vld [vmem:[%s386 + $0x3f0] sm:$0xff]
        %v1742 = vld [vmem:[%s386 + $0x3f8] sm:$0xf]
        %v1743 = vld [vmem:[%s386 + $0x3fc] sm:$0xff]
        %v1744 = vld [vmem:[%s386 + $0x404] sm:$0xf]
        %v1745 = vld [vmem:[%s386 + $0x408] sm:$0xff]
        %v1746 = vld [vmem:[%s386 + $0x410] sm:$0xf]
        %v1747 = vld [vmem:[%s386 + $0x414] sm:$0xff]
        %v1748 = vld [vmem:[%s386 + $0x41c] sm:$0xf]
        %v1749 = vld [vmem:[%s386 + $0x420] sm:$0xff]
        %v1750 = vld [vmem:[%s386 + $0x428] sm:$0xf]
        %v1751 = vld [vmem:[%s386 + $0x42c] sm:$0xff]
        %v1752 = vld [vmem:[%s386 + $0x434] sm:$0xf]
        %v1753 = vld [vmem:[%s386 + $0x438] sm:$0xff]
        %v1754 = vld [vmem:[%s386 + $0x440] sm:$0xf]
        %v1755 = vld [vmem:[%s386 + $0x444] sm:$0xff]
        %v1756 = vld [vmem:[%s386 + $0x44c] sm:$0xf]
        %v1757 = vld [vmem:[%s386 + $0x450] sm:$0xff]
        %v1758 = vld [vmem:[%s386 + $0x458] sm:$0xf]
        %v1759 = vld [vmem:[%s386 + $0x45c] sm:$0xff]
        %v1760 = vld [vmem:[%s386 + $0x464] sm:$0xf]
        %v1761 = vld [vmem:[%s386 + $0x468] sm:$0xff]
        %v1762 = vld [vmem:[%s386 + $0x470] sm:$0xf]
        %v1763 = vld [vmem:[%s386 + $0x474] sm:$0xff]
        %v1764 = vld [vmem:[%s386 + $0x47c] sm:$0xf]
        %v1765 = vld [vmem:[%s395] sm:$0x7]
        %v1767 = vlaneseq
        %v1768 = vshrl.u32 %v1767, 7
        %v1769 = vsub.s32 0, %v1768
        %v1770 = vrot.slane %v1765, %v1769
        %v1771 = vlaneseq
        %v1772 = vshrl.u32 %v1771, 7
        %v1773 = vsub.s32 1, %v1772
        %v1774 = vrot.slane %v1765, %v1773
        %v1775 = vlaneseq
        %v1776 = vshrl.u32 %v1775, 7
        %v1777 = vsub.s32 2, %v1776
        %v1778 = vrot.slane %v1765, %v1777
        %v1974 = vunpack.c.l.b16 %v1573
        %v1975 = vunpack.c.h.b16 %v1573
        %v1976 = vunpack.c.l.b16 %v1574
        %v1977 = vunpack.c.l.b16 %v1575
        %v1978 = vunpack.c.h.b16 %v1575
        %v1979 = vunpack.c.l.b16 %v1576
        %v1980 = vunpack.c.l.b16 %v1577
        %v1981 = vunpack.c.h.b16 %v1577
        %v1982 = vunpack.c.l.b16 %v1578
        %v1983 = vunpack.c.l.b16 %v1579
        %v1984 = vunpack.c.h.b16 %v1579
        %v1985 = vunpack.c.l.b16 %v1580
        %v1986 = vunpack.c.l.b16 %v1581
        %v1987 = vunpack.c.h.b16 %v1581
        %v1988 = vunpack.c.l.b16 %v1582
        %v1989 = vunpack.c.l.b16 %v1583
        %v1990 = vunpack.c.h.b16 %v1583
        %v1991 = vunpack.c.l.b16 %v1584
        %v1992 = vunpack.c.l.b16 %v1585
        %v1993 = vunpack.c.h.b16 %v1585
        %v1994 = vunpack.c.l.b16 %v1586
        %v1995 = vunpack.c.l.b16 %v1587
        %v1996 = vunpack.c.h.b16 %v1587
        %v1997 = vunpack.c.l.b16 %v1588
        %v1998 = vunpack.c.l.b16 %v1589
        %v1999 = vunpack.c.h.b16 %v1589
        %v2000 = vunpack.c.l.b16 %v1590
        %v2001 = vunpack.c.l.b16 %v1591
        %v2002 = vunpack.c.h.b16 %v1591
        %v2003 = vunpack.c.l.b16 %v1592
        %v2004 = vunpack.c.l.b16 %v1593
        %v2005 = vunpack.c.h.b16 %v1593
        %v2006 = vunpack.c.l.b16 %v1594
        %v2007 = vunpack.c.l.b16 %v1595
        %v2008 = vunpack.c.h.b16 %v1595
        %v2009 = vunpack.c.l.b16 %v1596
        %v2010 = vunpack.c.l.b16 %v1597
        %v2011 = vunpack.c.h.b16 %v1597
        %v2012 = vunpack.c.l.b16 %v1598
        %v2013 = vunpack.c.l.b16 %v1599
        %v2014 = vunpack.c.h.b16 %v1599
        %v2015 = vunpack.c.l.b16 %v1600
        %v2016 = vunpack.c.l.b16 %v1601
        %v2017 = vunpack.c.h.b16 %v1601
        %v2018 = vunpack.c.l.b16 %v1602
        %v2019 = vunpack.c.l.b16 %v1603
        %v2020 = vunpack.c.h.b16 %v1603
        %v2021 = vunpack.c.l.b16 %v1604
        %v2022 = vunpack.c.l.b16 %v1605
        %v2023 = vunpack.c.h.b16 %v1605
        %v2024 = vunpack.c.l.b16 %v1606
        %v2025 = vunpack.c.l.b16 %v1607
        %v2026 = vunpack.c.h.b16 %v1607
        %v2027 = vunpack.c.l.b16 %v1608
        %v2028 = vunpack.c.l.b16 %v1609
        %v2029 = vunpack.c.h.b16 %v1609
        %v2030 = vunpack.c.l.b16 %v1610
        %v2031 = vunpack.c.l.b16 %v1611
        %v2032 = vunpack.c.h.b16 %v1611
        %v2033 = vunpack.c.l.b16 %v1612
        %v2034 = vunpack.c.l.b16 %v1613
        %v2035 = vunpack.c.h.b16 %v1613
        %v2036 = vunpack.c.l.b16 %v1614
        %v2037 = vunpack.c.l.b16 %v1615
        %v2038 = vunpack.c.h.b16 %v1615
        %v2039 = vunpack.c.l.b16 %v1616
        %v2040 = vunpack.c.l.b16 %v1617
        %v2041 = vunpack.c.h.b16 %v1617
        %v2042 = vunpack.c.l.b16 %v1618
        %v2043 = vunpack.c.l.b16 %v1619
        %v2044 = vunpack.c.h.b16 %v1619
        %v2045 = vunpack.c.l.b16 %v1620
        %v2046 = vunpack.c.l.b16 %v1621
        %v2047 = vunpack.c.h.b16 %v1621
        %v2048 = vunpack.c.l.b16 %v1622
        %v2049 = vunpack.c.l.b16 %v1623
        %v2050 = vunpack.c.h.b16 %v1623
        %v2051 = vunpack.c.l.b16 %v1624
        %v2052 = vunpack.c.l.b16 %v1625
        %v2053 = vunpack.c.h.b16 %v1625
        %v2054 = vunpack.c.l.b16 %v1626
        %v2055 = vunpack.c.l.b16 %v1627
        %v2056 = vunpack.c.h.b16 %v1627
        %v2057 = vunpack.c.l.b16 %v1628
        %v2058 = vunpack.c.l.b16 %v1629
        %v2059 = vunpack.c.h.b16 %v1629
        %v2060 = vunpack.c.l.b16 %v1630
        %v2061 = vunpack.c.l.b16 %v1631
        %v2062 = vunpack.c.h.b16 %v1631
        %v2063 = vunpack.c.l.b16 %v1632
        %v2064 = vunpack.c.l.b16 %v1633
        %v2065 = vunpack.c.h.b16 %v1633
        %v2066 = vunpack.c.l.b16 %v1634
        %v2067 = vunpack.c.l.b16 %v1635
        %v2068 = vunpack.c.h.b16 %v1635
        %v2069 = vunpack.c.l.b16 %v1636
        %v2070 = vunpack.c.l.b16 %v1637
        %v2071 = vunpack.c.h.b16 %v1637
        %v2072 = vunpack.c.l.b16 %v1638
        %v2073 = vunpack.c.l.b16 %v1639
        %v2074 = vunpack.c.h.b16 %v1639
        %v2075 = vunpack.c.l.b16 %v1640
        %v2076 = vunpack.c.l.b16 %v1641
        %v2077 = vunpack.c.h.b16 %v1641
        %v2078 = vunpack.c.l.b16 %v1642
        %v2079 = vunpack.c.l.b16 %v1643
        %v2080 = vunpack.c.h.b16 %v1643
        %v2081 = vunpack.c.l.b16 %v1644
        %v2082 = vunpack.c.l.b16 %v1645
        %v2083 = vunpack.c.h.b16 %v1645
        %v2084 = vunpack.c.l.b16 %v1646
        %v2085 = vunpack.c.l.b16 %v1647
        %v2086 = vunpack.c.h.b16 %v1647
        %v2087 = vunpack.c.l.b16 %v1648
        %v2088 = vunpack.c.l.b16 %v1649
        %v2089 = vunpack.c.h.b16 %v1649
        %v2090 = vunpack.c.l.b16 %v1650
        %v2091 = vunpack.c.l.b16 %v1651
        %v2092 = vunpack.c.h.b16 %v1651
        %v2093 = vunpack.c.l.b16 %v1652
        %v2094 = vunpack.c.l.b16 %v1653
        %v2095 = vunpack.c.h.b16 %v1653
        %v2096 = vunpack.c.l.b16 %v1654
        %v2097 = vunpack.c.l.b16 %v1655
        %v2098 = vunpack.c.h.b16 %v1655
        %v2099 = vunpack.c.l.b16 %v1656
        %v2100 = vunpack.c.l.b16 %v1657
        %v2101 = vunpack.c.h.b16 %v1657
        %v2102 = vunpack.c.l.b16 %v1658
        %v2103 = vunpack.c.l.b16 %v1659
        %v2104 = vunpack.c.h.b16 %v1659
        %v2105 = vunpack.c.l.b16 %v1660
        %v2106 = vunpack.c.l.b16 %v1661
        %v2107 = vunpack.c.h.b16 %v1661
        %v2108 = vunpack.c.l.b16 %v1662
        %v2109 = vunpack.c.l.b16 %v1663
        %v2110 = vunpack.c.h.b16 %v1663
        %v2111 = vunpack.c.l.b16 %v1664
        %v2112 = vunpack.c.l.b16 %v1665
        %v2113 = vunpack.c.h.b16 %v1665
        %v2114 = vunpack.c.l.b16 %v1666
        %v2115 = vunpack.c.l.b16 %v1667
        %v2116 = vunpack.c.h.b16 %v1667
        %v2117 = vunpack.c.l.b16 %v1668
        %v2118 = vunpack.c.l.b16 %v1669
        %v2119 = vunpack.c.h.b16 %v1669
        %v2120 = vunpack.c.l.b16 %v1670
        %v2121 = vunpack.c.l.b16 %v1671
        %v2122 = vunpack.c.h.b16 %v1671
        %v2123 = vunpack.c.l.b16 %v1672
        %v2124 = vunpack.c.l.b16 %v1673
        %v2125 = vunpack.c.h.b16 %v1673
        %v2126 = vunpack.c.l.b16 %v1674
        %v2127 = vunpack.c.l.b16 %v1675
        %v2128 = vunpack.c.h.b16 %v1675
        %v2129 = vunpack.c.l.b16 %v1676
        %v2130 = vunpack.c.l.b16 %v1677
        %v2131 = vunpack.c.h.b16 %v1677
        %v2132 = vunpack.c.l.b16 %v1678
        %v2133 = vunpack.c.l.b16 %v1679
        %v2134 = vunpack.c.h.b16 %v1679
        %v2135 = vunpack.c.l.b16 %v1680
        %v2136 = vunpack.c.l.b16 %v1681
        %v2137 = vunpack.c.h.b16 %v1681
        %v2138 = vunpack.c.l.b16 %v1682
        %v2139 = vunpack.c.l.b16 %v1683
        %v2140 = vunpack.c.h.b16 %v1683
        %v2141 = vunpack.c.l.b16 %v1684
        %v2142 = vunpack.c.l.b16 %v1685
        %v2143 = vunpack.c.h.b16 %v1685
        %v2144 = vunpack.c.l.b16 %v1686
        %v2145 = vunpack.c.l.b16 %v1687
        %v2146 = vunpack.c.h.b16 %v1687
        %v2147 = vunpack.c.l.b16 %v1688
        %v2148 = vunpack.c.l.b16 %v1689
        %v2149 = vunpack.c.h.b16 %v1689
        %v2150 = vunpack.c.l.b16 %v1690
        %v2151 = vunpack.c.l.b16 %v1691
        %v2152 = vunpack.c.h.b16 %v1691
        %v2153 = vunpack.c.l.b16 %v1692
        %v2154 = vunpack.c.l.b16 %v1693
        %v2155 = vunpack.c.h.b16 %v1693
        %v2156 = vunpack.c.l.b16 %v1694
        %v2157 = vunpack.c.l.b16 %v1695
        %v2158 = vunpack.c.h.b16 %v1695
        %v2159 = vunpack.c.l.b16 %v1696
        %v2160 = vunpack.c.l.b16 %v1697
        %v2161 = vunpack.c.h.b16 %v1697
        %v2162 = vunpack.c.l.b16 %v1698
        %v2163 = vunpack.c.l.b16 %v1699
        %v2164 = vunpack.c.h.b16 %v1699
        %v2165 = vunpack.c.l.b16 %v1700
        %v2166 = vunpack.c.l.b16 %v1701
        %v2167 = vunpack.c.h.b16 %v1701
        %v2168 = vunpack.c.l.b16 %v1702
        %v2169 = vunpack.c.l.b16 %v1703
        %v2170 = vunpack.c.h.b16 %v1703
        %v2171 = vunpack.c.l.b16 %v1704
        %v2172 = vunpack.c.l.b16 %v1705
        %v2173 = vunpack.c.h.b16 %v1705
        %v2174 = vunpack.c.l.b16 %v1706
        %v2175 = vunpack.c.l.b16 %v1707
        %v2176 = vunpack.c.h.b16 %v1707
        %v2177 = vunpack.c.l.b16 %v1708
        %v2178 = vunpack.c.l.b16 %v1709
        %v2179 = vunpack.c.h.b16 %v1709
        %v2180 = vunpack.c.l.b16 %v1710
        %v2181 = vunpack.c.l.b16 %v1711
        %v2182 = vunpack.c.h.b16 %v1711
        %v2183 = vunpack.c.l.b16 %v1712
        %v2184 = vunpack.c.l.b16 %v1713
        %v2185 = vunpack.c.h.b16 %v1713
        %v2186 = vunpack.c.l.b16 %v1714
        %v2187 = vunpack.c.l.b16 %v1715
        %v2188 = vunpack.c.h.b16 %v1715
        %v2189 = vunpack.c.l.b16 %v1716
        %v2190 = vunpack.c.l.b16 %v1717
        %v2191 = vunpack.c.h.b16 %v1717
        %v2192 = vunpack.c.l.b16 %v1718
        %v2193 = vunpack.c.l.b16 %v1719
        %v2194 = vunpack.c.h.b16 %v1719
        %v2195 = vunpack.c.l.b16 %v1720
        %v2196 = vunpack.c.l.b16 %v1721
        %v2197 = vunpack.c.h.b16 %v1721
        %v2198 = vunpack.c.l.b16 %v1722
        %v2199 = vunpack.c.l.b16 %v1723
        %v2200 = vunpack.c.h.b16 %v1723
        %v2201 = vunpack.c.l.b16 %v1724
        %v2202 = vunpack.c.l.b16 %v1725
        %v2203 = vunpack.c.h.b16 %v1725
        %v2204 = vunpack.c.l.b16 %v1726
        %v2205 = vunpack.c.l.b16 %v1727
        %v2206 = vunpack.c.h.b16 %v1727
        %v2207 = vunpack.c.l.b16 %v1728
        %v2208 = vunpack.c.l.b16 %v1729
        %v2209 = vunpack.c.h.b16 %v1729
        %v2210 = vunpack.c.l.b16 %v1730
        %v2211 = vunpack.c.l.b16 %v1731
        %v2212 = vunpack.c.h.b16 %v1731
        %v2213 = vunpack.c.l.b16 %v1732
        %v2214 = vunpack.c.l.b16 %v1733
        %v2215 = vunpack.c.h.b16 %v1733
        %v2216 = vunpack.c.l.b16 %v1734
        %v2217 = vunpack.c.l.b16 %v1735
        %v2218 = vunpack.c.h.b16 %v1735
        %v2219 = vunpack.c.l.b16 %v1736
        %v2220 = vunpack.c.l.b16 %v1737
        %v2221 = vunpack.c.h.b16 %v1737
        %v2222 = vunpack.c.l.b16 %v1738
        %v2223 = vunpack.c.l.b16 %v1739
        %v2224 = vunpack.c.h.b16 %v1739
        %v2225 = vunpack.c.l.b16 %v1740
        %v2226 = vunpack.c.l.b16 %v1741
        %v2227 = vunpack.c.h.b16 %v1741
        %v2228 = vunpack.c.l.b16 %v1742
        %v2229 = vunpack.c.l.b16 %v1743
        %v2230 = vunpack.c.h.b16 %v1743
        %v2231 = vunpack.c.l.b16 %v1744
        %v2232 = vunpack.c.l.b16 %v1745
        %v2233 = vunpack.c.h.b16 %v1745
        %v2234 = vunpack.c.l.b16 %v1746
        %v2235 = vunpack.c.l.b16 %v1747
        %v2236 = vunpack.c.h.b16 %v1747
        %v2237 = vunpack.c.l.b16 %v1748
        %v2238 = vunpack.c.l.b16 %v1749
        %v2239 = vunpack.c.h.b16 %v1749
        %v2240 = vunpack.c.l.b16 %v1750
        %v2241 = vunpack.c.l.b16 %v1751
        %v2242 = vunpack.c.h.b16 %v1751
        %v2243 = vunpack.c.l.b16 %v1752
        %v2244 = vunpack.c.l.b16 %v1753
        %v2245 = vunpack.c.h.b16 %v1753
        %v2246 = vunpack.c.l.b16 %v1754
        %v2247 = vunpack.c.l.b16 %v1755
        %v2248 = vunpack.c.h.b16 %v1755
        %v2249 = vunpack.c.l.b16 %v1756
        %v2250 = vunpack.c.l.b16 %v1757
        %v2251 = vunpack.c.h.b16 %v1757
        %v2252 = vunpack.c.l.b16 %v1758
        %v2253 = vunpack.c.l.b16 %v1759
        %v2254 = vunpack.c.h.b16 %v1759
        %v2255 = vunpack.c.l.b16 %v1760
        %v2256 = vunpack.c.l.b16 %v1761
        %v2257 = vunpack.c.h.b16 %v1761
        %v2258 = vunpack.c.l.b16 %v1762
        %v2259 = vunpack.c.l.b16 %v1763
        %v2260 = vunpack.c.h.b16 %v1763
        %v2261 = vunpack.c.l.b16 %v1764
        %v2262 = vpack.c.b16 %v1977, %v1974
        %v2263 = vpack.c.b16 %v1978, %v1975
        %v2264 = vpack.c.b16 %v1979, %v1976
        %v2265 = vpack.c.b16 %v1983, %v1980
        %v2266 = vpack.c.b16 %v1984, %v1981
        %v2267 = vpack.c.b16 %v1985, %v1982
        %v2268 = vpack.c.b16 %v1989, %v1986
        %v2269 = vpack.c.b16 %v1990, %v1987
        %v2270 = vpack.c.b16 %v1991, %v1988
        %v2271 = vpack.c.b16 %v1995, %v1992
        %v2272 = vpack.c.b16 %v1996, %v1993
        %v2273 = vpack.c.b16 %v1997, %v1994
        %v2274 = vpack.c.b16 %v2001, %v1998
        %v2275 = vpack.c.b16 %v2002, %v1999
        %v2276 = vpack.c.b16 %v2003, %v2000
        %v2277 = vpack.c.b16 %v2007, %v2004
        %v2278 = vpack.c.b16 %v2008, %v2005
        %v2279 = vpack.c.b16 %v2009, %v2006
        %v2280 = vpack.c.b16 %v2013, %v2010
        %v2281 = vpack.c.b16 %v2014, %v2011
        %v2282 = vpack.c.b16 %v2015, %v2012
        %v2283 = vpack.c.b16 %v2019, %v2016
        %v2284 = vpack.c.b16 %v2020, %v2017
        %v2285 = vpack.c.b16 %v2021, %v2018
        %v2286 = vpack.c.b16 %v2025, %v2022
        %v2287 = vpack.c.b16 %v2026, %v2023
        %v2288 = vpack.c.b16 %v2027, %v2024
        %v2289 = vpack.c.b16 %v2031, %v2028
        %v2290 = vpack.c.b16 %v2032, %v2029
        %v2291 = vpack.c.b16 %v2033, %v2030
        %v2292 = vpack.c.b16 %v2037, %v2034
        %v2293 = vpack.c.b16 %v2038, %v2035
        %v2294 = vpack.c.b16 %v2039, %v2036
        %v2295 = vpack.c.b16 %v2043, %v2040
        %v2296 = vpack.c.b16 %v2044, %v2041
        %v2297 = vpack.c.b16 %v2045, %v2042
        %v2298 = vpack.c.b16 %v2049, %v2046
        %v2299 = vpack.c.b16 %v2050, %v2047
        %v2300 = vpack.c.b16 %v2051, %v2048
        %v2301 = vpack.c.b16 %v2055, %v2052
        %v2302 = vpack.c.b16 %v2056, %v2053
        %v2303 = vpack.c.b16 %v2057, %v2054
        %v2304 = vpack.c.b16 %v2061, %v2058
        %v2305 = vpack.c.b16 %v2062, %v2059
        %v2306 = vpack.c.b16 %v2063, %v2060
        %v2307 = vpack.c.b16 %v2067, %v2064
        %v2308 = vpack.c.b16 %v2068, %v2065
        %v2309 = vpack.c.b16 %v2069, %v2066
        %v2310 = vpack.c.b16 %v2073, %v2070
        %v2311 = vpack.c.b16 %v2074, %v2071
        %v2312 = vpack.c.b16 %v2075, %v2072
        %v2313 = vpack.c.b16 %v2079, %v2076
        %v2314 = vpack.c.b16 %v2080, %v2077
        %v2315 = vpack.c.b16 %v2081, %v2078
        %v2316 = vpack.c.b16 %v2085, %v2082
        %v2317 = vpack.c.b16 %v2086, %v2083
        %v2318 = vpack.c.b16 %v2087, %v2084
        %v2319 = vpack.c.b16 %v2091, %v2088
        %v2320 = vpack.c.b16 %v2092, %v2089
        %v2321 = vpack.c.b16 %v2093, %v2090
        %v2322 = vpack.c.b16 %v2097, %v2094
        %v2323 = vpack.c.b16 %v2098, %v2095
        %v2324 = vpack.c.b16 %v2099, %v2096
        %v2325 = vpack.c.b16 %v2103, %v2100
        %v2326 = vpack.c.b16 %v2104, %v2101
        %v2327 = vpack.c.b16 %v2105, %v2102
        %v2328 = vpack.c.b16 %v2109, %v2106
        %v2329 = vpack.c.b16 %v2110, %v2107
        %v2330 = vpack.c.b16 %v2111, %v2108
        %v2331 = vpack.c.b16 %v2115, %v2112
        %v2332 = vpack.c.b16 %v2116, %v2113
        %v2333 = vpack.c.b16 %v2117, %v2114
        %v2334 = vpack.c.b16 %v2121, %v2118
        %v2335 = vpack.c.b16 %v2122, %v2119
        %v2336 = vpack.c.b16 %v2123, %v2120
        %v2337 = vpack.c.b16 %v2127, %v2124
        %v2338 = vpack.c.b16 %v2128, %v2125
        %v2339 = vpack.c.b16 %v2129, %v2126
        %v2340 = vpack.c.b16 %v2133, %v2130
        %v2341 = vpack.c.b16 %v2134, %v2131
        %v2342 = vpack.c.b16 %v2135, %v2132
        %v2343 = vpack.c.b16 %v2139, %v2136
        %v2344 = vpack.c.b16 %v2140, %v2137
        %v2345 = vpack.c.b16 %v2141, %v2138
        %v2346 = vpack.c.b16 %v2145, %v2142
        %v2347 = vpack.c.b16 %v2146, %v2143
        %v2348 = vpack.c.b16 %v2147, %v2144
        %v2349 = vpack.c.b16 %v2151, %v2148
        %v2350 = vpack.c.b16 %v2152, %v2149
        %v2351 = vpack.c.b16 %v2153, %v2150
        %v2352 = vpack.c.b16 %v2157, %v2154
        %v2353 = vpack.c.b16 %v2158, %v2155
        %v2354 = vpack.c.b16 %v2159, %v2156
        %v2355 = vpack.c.b16 %v2163, %v2160
        %v2356 = vpack.c.b16 %v2164, %v2161
        %v2357 = vpack.c.b16 %v2165, %v2162
        %v2358 = vpack.c.b16 %v2169, %v2166
        %v2359 = vpack.c.b16 %v2170, %v2167
        %v2360 = vpack.c.b16 %v2171, %v2168
        %v2361 = vpack.c.b16 %v2175, %v2172
        %v2362 = vpack.c.b16 %v2176, %v2173
        %v2363 = vpack.c.b16 %v2177, %v2174
        %v2364 = vpack.c.b16 %v2181, %v2178
        %v2365 = vpack.c.b16 %v2182, %v2179
        %v2366 = vpack.c.b16 %v2183, %v2180
        %v2367 = vpack.c.b16 %v2187, %v2184
        %v2368 = vpack.c.b16 %v2188, %v2185
        %v2369 = vpack.c.b16 %v2189, %v2186
        %v2370 = vpack.c.b16 %v2193, %v2190
        %v2371 = vpack.c.b16 %v2194, %v2191
        %v2372 = vpack.c.b16 %v2195, %v2192
        %v2373 = vpack.c.b16 %v2199, %v2196
        %v2374 = vpack.c.b16 %v2200, %v2197
        %v2375 = vpack.c.b16 %v2201, %v2198
        %v2376 = vpack.c.b16 %v2205, %v2202
        %v2377 = vpack.c.b16 %v2206, %v2203
        %v2378 = vpack.c.b16 %v2207, %v2204
        %v2379 = vpack.c.b16 %v2211, %v2208
        %v2380 = vpack.c.b16 %v2212, %v2209
        %v2381 = vpack.c.b16 %v2213, %v2210
        %v2382 = vpack.c.b16 %v2217, %v2214
        %v2383 = vpack.c.b16 %v2218, %v2215
        %v2384 = vpack.c.b16 %v2219, %v2216
        %v2385 = vpack.c.b16 %v2223, %v2220
        %v2386 = vpack.c.b16 %v2224, %v2221
        %v2387 = vpack.c.b16 %v2225, %v2222
        %v2388 = vpack.c.b16 %v2229, %v2226
        %v2389 = vpack.c.b16 %v2230, %v2227
        %v2390 = vpack.c.b16 %v2231, %v2228
        %v2391 = vpack.c.b16 %v2235, %v2232
        %v2392 = vpack.c.b16 %v2236, %v2233
        %v2393 = vpack.c.b16 %v2237, %v2234
        %v2394 = vpack.c.b16 %v2241, %v2238
        %v2395 = vpack.c.b16 %v2242, %v2239
        %v2396 = vpack.c.b16 %v2243, %v2240
        %v2397 = vpack.c.b16 %v2247, %v2244
        %v2398 = vpack.c.b16 %v2248, %v2245
        %v2399 = vpack.c.b16 %v2249, %v2246
        %v2400 = vpack.c.b16 %v2253, %v2250
        %v2401 = vpack.c.b16 %v2254, %v2251
        %v2402 = vpack.c.b16 %v2255, %v2252
        %v2403 = vpack.c.b16 %v2259, %v2256
        %v2404 = vpack.c.b16 %v2260, %v2257
        %v2405 = vpack.c.b16 %v2261, %v2258
        %2550 = vmatprep.subr.bf16.mxu0 %v2284
        %2551 = vmatpush1.bf16.msra.mxu0 %v2283
        %2552 = vmatprep.subr.bf16.mxu0 %v2281
        %2553 = vmatpush1.bf16.msra.mxu0 %v2280
        %2554 = vmatprep.subr.bf16.mxu0 %v2278
        %2555 = vmatpush1.bf16.msra.mxu0 %v2277
        %2556 = vmatprep.subr.bf16.mxu0 %v2275
        %2557 = vmatpush1.bf16.msra.mxu0 %v2274
        %2558 = vmatprep.subr.bf16.mxu0 %v2272
        %2559 = vmatpush1.bf16.msra.mxu0 %v2271
        %2560 = vmatprep.subr.bf16.mxu0 %v2269
        %2561 = vmatpush1.bf16.msra.mxu0 %v2268
        %2562 = vmatprep.subr.bf16.mxu0 %v2266
        %2563 = vmatpush1.bf16.msra.mxu0 %v2265
        %2564 = vmatprep.subr.bf16.mxu0 %v2263
        %2565 = vmatpush1.bf16.msra.mxu0 %v2262
        %2566 = vmatprep.subr.bf16.mxu0 %v2308
        %2567 = vmatpush2.bf16.msra.mxu0 %v2307
        %2568 = vmatprep.subr.bf16.mxu0 %v2305
        %2569 = vmatpush2.bf16.msra.mxu0 %v2304
        %2570 = vmatprep.subr.bf16.mxu0 %v2302
        %2571 = vmatpush2.bf16.msra.mxu0 %v2301
        %2572 = vmatprep.subr.bf16.mxu0 %v2299
        %2573 = vmatpush2.bf16.msra.mxu0 %v2298
        %2574 = vmatprep.subr.bf16.mxu0 %v2296
        %2575 = vmatpush2.bf16.msra.mxu0 %v2295
        %2576 = vmatprep.subr.bf16.mxu0 %v2293
        %2577 = vmatpush2.bf16.msra.mxu0 %v2292
        %2578 = vmatprep.subr.bf16.mxu0 %v2290
        %2579 = vmatpush2.bf16.msra.mxu0 %v2289
        %2580 = vmatprep.subr.bf16.mxu0 %v2287
        %2581 = vmatpush2.bf16.msra.mxu0 %v2286
        %2582 = vmatprep.mubr.bf16.mxu0 %v1526
        %2583 = vmatmul.mubr.bf16.gmra.mxu0 %v1525
        %v2584 = vpop.f32.mrf.mxu0
        %v2585 = vadd.f32 %v1770, %v2584
        %v2586 = vpop.f32.mrf.mxu0
        %v2587 = vadd.f32 %v1774, %v2586
        %v2588 = vpop.f32.mrf.mxu0
        %v2589 = vadd.f32 %v1770, %v2588
        %v2590 = vpop.f32.mrf.mxu0
        %v2591 = vadd.f32 %v1774, %v2590
        %2592 = vmatprep.mubr.bf16.mxu0 %v1532
        %2593 = vmatmul.mubr.bf16.gmra.mxu0 %v1531
        %v2594 = vpop.f32.mrf.mxu0
        %v2595 = vadd.f32 %v1770, %v2594
        %v2596 = vpop.f32.mrf.mxu0
        %v2597 = vadd.f32 %v1774, %v2596
        %v2598 = vpop.f32.mrf.mxu0
        %v2599 = vadd.f32 %v1770, %v2598
        %v2600 = vpop.f32.mrf.mxu0
        %v2601 = vadd.f32 %v1774, %v2600
        %2602 = vmatprep.mubr.bf16.mxu0 %v1538
        %2603 = vmatmul.mubr.bf16.gmra.mxu0 %v1537
        %v2604 = vpop.f32.mrf.mxu0
        %v2605 = vadd.f32 %v1770, %v2604
        %v2606 = vpop.f32.mrf.mxu0
        %v2607 = vadd.f32 %v1774, %v2606
        %v2608 = vpop.f32.mrf.mxu0
        %v2609 = vadd.f32 %v1770, %v2608
        %v2610 = vpop.f32.mrf.mxu0
        %v2611 = vadd.f32 %v1774, %v2610
        %2612 = vmatprep.mubr.bf16.mxu0 %v1544
        %2613 = vmatmul.mubr.bf16.gmra.mxu0 %v1543
        %v2614 = vpop.f32.mrf.mxu0
        %v2615 = vadd.f32 %v1770, %v2614
        %v2616 = vpop.f32.mrf.mxu0
        %v2617 = vadd.f32 %v1774, %v2616
        %v2618 = vpop.f32.mrf.mxu0
        %v2619 = vadd.f32 %v1770, %v2618
        %v2620 = vpop.f32.mrf.mxu0
        %v2621 = vadd.f32 %v1774, %v2620
        %2622 = vmatprep.mubr.bf16.mxu0 %v1550
        %2623 = vmatmul.mubr.bf16.gmra.mxu0 %v1549
        %v2624 = vpop.f32.mrf.mxu0
        %v2625 = vadd.f32 %v1770, %v2624
        %v2626 = vpop.f32.mrf.mxu0
        %v2627 = vadd.f32 %v1774, %v2626
        %v2628 = vpop.f32.mrf.mxu0
        %v2629 = vadd.f32 %v1770, %v2628
        %v2630 = vpop.f32.mrf.mxu0
        %v2631 = vadd.f32 %v1774, %v2630
        %2632 = vmatprep.mubr.bf16.mxu0 %v1556
        %2633 = vmatmul.mubr.bf16.gmra.mxu0 %v1555
        %v2634 = vpop.f32.mrf.mxu0
        %v2635 = vadd.f32 %v1770, %v2634
        %v2636 = vpop.f32.mrf.mxu0
        %v2637 = vadd.f32 %v1774, %v2636
        %v2638 = vpop.f32.mrf.mxu0
        %v2639 = vadd.f32 %v1770, %v2638
        %v2640 = vpop.f32.mrf.mxu0
        %v2641 = vadd.f32 %v1774, %v2640
        %2642 = vmatprep.mubr.bf16.mxu0 %v1562
        %2643 = vmatmul.mubr.bf16.gmra.mxu0 %v1561
        %v2644 = vpop.f32.mrf.mxu0
        %v2645 = vadd.f32 %v1770, %v2644
        %v2646 = vpop.f32.mrf.mxu0
        %v2647 = vadd.f32 %v1774, %v2646
        %v2648 = vpop.f32.mrf.mxu0
        %v2649 = vadd.f32 %v1770, %v2648
        %v2650 = vpop.f32.mrf.mxu0
        %v2651 = vadd.f32 %v1774, %v2650
        %2652 = vmatprep.mubr.bf16.mxu0 %v1568
        %2653 = vmatmul.mubr.bf16.gmra.mxu0 %v1567
        %v2654 = vpop.f32.mrf.mxu0
        %v2655 = vadd.f32 %v1770, %v2654
        %v2656 = vpop.f32.mrf.mxu0
        %v2657 = vadd.f32 %v1774, %v2656
        %v2658 = vpop.f32.mrf.mxu0
        %v2659 = vadd.f32 %v1770, %v2658
        %v2660 = vpop.f32.mrf.mxu0
        %v2661 = vadd.f32 %v1774, %v2660
        %2662 = vdwg.mxu0
        %2663 = vmatprep.subr.bf16.mxu0 %v2332
        %2664 = vmatpush1.bf16.msra.mxu0 %v2331
        %2665 = vmatprep.subr.bf16.mxu0 %v2329
        %2666 = vmatpush1.bf16.msra.mxu0 %v2328
        %2667 = vmatprep.subr.bf16.mxu0 %v2326
        %2668 = vmatpush1.bf16.msra.mxu0 %v2325
        %2669 = vmatprep.subr.bf16.mxu0 %v2323
        %2670 = vmatpush1.bf16.msra.mxu0 %v2322
        %2671 = vmatprep.subr.bf16.mxu0 %v2320
        %2672 = vmatpush1.bf16.msra.mxu0 %v2319
        %2673 = vmatprep.subr.bf16.mxu0 %v2317
        %2674 = vmatpush1.bf16.msra.mxu0 %v2316
        %2675 = vmatprep.subr.bf16.mxu0 %v2314
        %2676 = vmatpush1.bf16.msra.mxu0 %v2313
        %2677 = vmatprep.subr.bf16.mxu0 %v2311
        %2678 = vmatpush1.bf16.msra.mxu0 %v2310
        %2679 = vmatprep.subr.bf16.mxu0 %v2356
        %2680 = vmatpush2.bf16.msra.mxu0 %v2355
        %2681 = vmatprep.subr.bf16.mxu0 %v2353
        %2682 = vmatpush2.bf16.msra.mxu0 %v2352
        %2683 = vmatprep.subr.bf16.mxu0 %v2350
        %2684 = vmatpush2.bf16.msra.mxu0 %v2349
        %2685 = vmatprep.subr.bf16.mxu0 %v2347
        %2686 = vmatpush2.bf16.msra.mxu0 %v2346
        %2687 = vmatprep.subr.bf16.mxu0 %v2344
        %2688 = vmatpush2.bf16.msra.mxu0 %v2343
        %2689 = vmatprep.subr.bf16.mxu0 %v2341
        %2690 = vmatpush2.bf16.msra.mxu0 %v2340
        %2691 = vmatprep.subr.bf16.mxu0 %v2338
        %2692 = vmatpush2.bf16.msra.mxu0 %v2337
        %2693 = vmatprep.subr.bf16.mxu0 %v2335
        %2694 = vmatpush2.bf16.msra.mxu0 %v2334
        %2695 = vmatprep.mubr.bf16.mxu0 %v1528
        %2696 = vmatmul.mubr.bf16.gmra.mxu0 %v1527
        %v2697 = vpop.f32.mrf.mxu0
        %v2698 = vadd.f32 %v2585, %v2697
        %v2699 = vpop.f32.mrf.mxu0
        %v2700 = vadd.f32 %v2587, %v2699
        %v2701 = vpop.f32.mrf.mxu0
        %v2702 = vadd.f32 %v2589, %v2701
        %v2703 = vpop.f32.mrf.mxu0
        %v2704 = vadd.f32 %v2591, %v2703
        %2705 = vmatprep.mubr.bf16.mxu0 %v1534
        %2706 = vmatmul.mubr.bf16.gmra.mxu0 %v1533
        %v2707 = vpop.f32.mrf.mxu0
        %v2708 = vadd.f32 %v2595, %v2707
        %v2709 = vpop.f32.mrf.mxu0
        %v2710 = vadd.f32 %v2597, %v2709
        %v2711 = vpop.f32.mrf.mxu0
        %v2712 = vadd.f32 %v2599, %v2711
        %v2713 = vpop.f32.mrf.mxu0
        %v2714 = vadd.f32 %v2601, %v2713
        %2715 = vmatprep.mubr.bf16.mxu0 %v1540
        %2716 = vmatmul.mubr.bf16.gmra.mxu0 %v1539
        %v2717 = vpop.f32.mrf.mxu0
        %v2718 = vadd.f32 %v2605, %v2717
        %v2719 = vpop.f32.mrf.mxu0
        %v2720 = vadd.f32 %v2607, %v2719
        %v2721 = vpop.f32.mrf.mxu0
        %v2722 = vadd.f32 %v2609, %v2721
        %v2723 = vpop.f32.mrf.mxu0
        %v2724 = vadd.f32 %v2611, %v2723
        %2725 = vmatprep.mubr.bf16.mxu0 %v1546
        %2726 = vmatmul.mubr.bf16.gmra.mxu0 %v1545
        %v2727 = vpop.f32.mrf.mxu0
        %v2728 = vadd.f32 %v2615, %v2727
        %v2729 = vpop.f32.mrf.mxu0
        %v2730 = vadd.f32 %v2617, %v2729
        %v2731 = vpop.f32.mrf.mxu0
        %v2732 = vadd.f32 %v2619, %v2731
        %v2733 = vpop.f32.mrf.mxu0
        %v2734 = vadd.f32 %v2621, %v2733
        %2735 = vmatprep.mubr.bf16.mxu0 %v1552
        %2736 = vmatmul.mubr.bf16.gmra.mxu0 %v1551
        %v2737 = vpop.f32.mrf.mxu0
        %v2738 = vadd.f32 %v2625, %v2737
        %v2739 = vpop.f32.mrf.mxu0
        %v2740 = vadd.f32 %v2627, %v2739
        %v2741 = vpop.f32.mrf.mxu0
        %v2742 = vadd.f32 %v2629, %v2741
        %v2743 = vpop.f32.mrf.mxu0
        %v2744 = vadd.f32 %v2631, %v2743
        %2745 = vmatprep.mubr.bf16.mxu0 %v1558
        %2746 = vmatmul.mubr.bf16.gmra.mxu0 %v1557
        %v2747 = vpop.f32.mrf.mxu0
        %v2748 = vadd.f32 %v2635, %v2747
        %v2749 = vpop.f32.mrf.mxu0
        %v2750 = vadd.f32 %v2637, %v2749
        %v2751 = vpop.f32.mrf.mxu0
        %v2752 = vadd.f32 %v2639, %v2751
        %v2753 = vpop.f32.mrf.mxu0
        %v2754 = vadd.f32 %v2641, %v2753
        %2755 = vmatprep.mubr.bf16.mxu0 %v1564
        %2756 = vmatmul.mubr.bf16.gmra.mxu0 %v1563
        %v2757 = vpop.f32.mrf.mxu0
        %v2758 = vadd.f32 %v2645, %v2757
        %v2759 = vpop.f32.mrf.mxu0
        %v2760 = vadd.f32 %v2647, %v2759
        %v2761 = vpop.f32.mrf.mxu0
        %v2762 = vadd.f32 %v2649, %v2761
        %v2763 = vpop.f32.mrf.mxu0
        %v2764 = vadd.f32 %v2651, %v2763
        %2765 = vmatprep.mubr.bf16.mxu0 %v1570
        %2766 = vmatmul.mubr.bf16.gmra.mxu0 %v1569
        %v2767 = vpop.f32.mrf.mxu0
        %v2768 = vadd.f32 %v2655, %v2767
        %v2769 = vpop.f32.mrf.mxu0
        %v2770 = vadd.f32 %v2657, %v2769
        %v2771 = vpop.f32.mrf.mxu0
        %v2772 = vadd.f32 %v2659, %v2771
        %v2773 = vpop.f32.mrf.mxu0
        %v2774 = vadd.f32 %v2661, %v2773
        %2775 = vdwg.mxu0
        %2776 = vmatprep.subr.bf16.mxu0 %v2380
        %2777 = vmatpush1.bf16.msra.mxu0 %v2379
        %2778 = vmatprep.subr.bf16.mxu0 %v2377
        %2779 = vmatpush1.bf16.msra.mxu0 %v2376
        %2780 = vmatprep.subr.bf16.mxu0 %v2374
        %2781 = vmatpush1.bf16.msra.mxu0 %v2373
        %2782 = vmatprep.subr.bf16.mxu0 %v2371
        %2783 = vmatpush1.bf16.msra.mxu0 %v2370
        %2784 = vmatprep.subr.bf16.mxu0 %v2368
        %2785 = vmatpush1.bf16.msra.mxu0 %v2367
        %2786 = vmatprep.subr.bf16.mxu0 %v2365
        %2787 = vmatpush1.bf16.msra.mxu0 %v2364
        %2788 = vmatprep.subr.bf16.mxu0 %v2362
        %2789 = vmatpush1.bf16.msra.mxu0 %v2361
        %2790 = vmatprep.subr.bf16.mxu0 %v2359
        %2791 = vmatpush1.bf16.msra.mxu0 %v2358
        %2792 = vmatprep.subr.bf16.mxu0 %v2404
        %2793 = vmatpush2.bf16.msra.mxu0 %v2403
        %2794 = vmatprep.subr.bf16.mxu0 %v2401
        %2795 = vmatpush2.bf16.msra.mxu0 %v2400
        %2796 = vmatprep.subr.bf16.mxu0 %v2398
        %2797 = vmatpush2.bf16.msra.mxu0 %v2397
        %2798 = vmatprep.subr.bf16.mxu0 %v2395
        %2799 = vmatpush2.bf16.msra.mxu0 %v2394
        %2800 = vmatprep.subr.bf16.mxu0 %v2392
        %2801 = vmatpush2.bf16.msra.mxu0 %v2391
        %2802 = vmatprep.subr.bf16.mxu0 %v2389
        %2803 = vmatpush2.bf16.msra.mxu0 %v2388
        %2804 = vmatprep.subr.bf16.mxu0 %v2386
        %2805 = vmatpush2.bf16.msra.mxu0 %v2385
        %2806 = vmatprep.subr.bf16.mxu0 %v2383
        %2807 = vmatpush2.bf16.msra.mxu0 %v2382
        %2808 = vmatprep.mubr.bf16.mxu0 %v1530
        %2809 = vmatmul.mubr.bf16.gmra.mxu0 %v1529
        %v2810 = vpop.f32.mrf.mxu0
        %v2811 = vadd.f32 %v2698, %v2810
        %v2812 = vpop.f32.mrf.mxu0
        %v2813 = vadd.f32 %v2700, %v2812
        %v2814 = vpop.f32.mrf.mxu0
        %v2815 = vadd.f32 %v2702, %v2814
        %v2816 = vpop.f32.mrf.mxu0
        %v2817 = vadd.f32 %v2704, %v2816
        %2818 = vmatprep.mubr.bf16.mxu0 %v1536
        %2819 = vmatmul.mubr.bf16.gmra.mxu0 %v1535
        %v2820 = vpop.f32.mrf.mxu0
        %v2821 = vadd.f32 %v2708, %v2820
        %v2822 = vpop.f32.mrf.mxu0
        %v2823 = vadd.f32 %v2710, %v2822
        %v2824 = vpop.f32.mrf.mxu0
        %v2825 = vadd.f32 %v2712, %v2824
        %v2826 = vpop.f32.mrf.mxu0
        %v2827 = vadd.f32 %v2714, %v2826
        %2828 = vmatprep.mubr.bf16.mxu0 %v1542
        %2829 = vmatmul.mubr.bf16.gmra.mxu0 %v1541
        %v2830 = vpop.f32.mrf.mxu0
        %v2831 = vadd.f32 %v2718, %v2830
        %v2832 = vpop.f32.mrf.mxu0
        %v2833 = vadd.f32 %v2720, %v2832
        %v2834 = vpop.f32.mrf.mxu0
        %v2835 = vadd.f32 %v2722, %v2834
        %v2836 = vpop.f32.mrf.mxu0
        %v2837 = vadd.f32 %v2724, %v2836
        %2838 = vmatprep.mubr.bf16.mxu0 %v1548
        %2839 = vmatmul.mubr.bf16.gmra.mxu0 %v1547
        %v2840 = vpop.f32.mrf.mxu0
        %v2841 = vadd.f32 %v2728, %v2840
        %v2842 = vpop.f32.mrf.mxu0
        %v2843 = vadd.f32 %v2730, %v2842
        %v2844 = vpop.f32.mrf.mxu0
        %v2845 = vadd.f32 %v2732, %v2844
        %v2846 = vpop.f32.mrf.mxu0
        %v2847 = vadd.f32 %v2734, %v2846
        %2848 = vmatprep.mubr.bf16.mxu0 %v1554
        %2849 = vmatmul.mubr.bf16.gmra.mxu0 %v1553
        %v2850 = vpop.f32.mrf.mxu0
        %v2851 = vadd.f32 %v2738, %v2850
        %v2852 = vpop.f32.mrf.mxu0
        %v2853 = vadd.f32 %v2740, %v2852
        %v2854 = vpop.f32.mrf.mxu0
        %v2855 = vadd.f32 %v2742, %v2854
        %v2856 = vpop.f32.mrf.mxu0
        %v2857 = vadd.f32 %v2744, %v2856
        %2858 = vmatprep.mubr.bf16.mxu0 %v1560
        %2859 = vmatmul.mubr.bf16.gmra.mxu0 %v1559
        %v2860 = vpop.f32.mrf.mxu0
        %v2861 = vadd.f32 %v2748, %v2860
        %v2862 = vpop.f32.mrf.mxu0
        %v2863 = vadd.f32 %v2750, %v2862
        %v2864 = vpop.f32.mrf.mxu0
        %v2865 = vadd.f32 %v2752, %v2864
        %v2866 = vpop.f32.mrf.mxu0
        %v2867 = vadd.f32 %v2754, %v2866
        %2868 = vmatprep.mubr.bf16.mxu0 %v1566
        %2869 = vmatmul.mubr.bf16.gmra.mxu0 %v1565
        %v2870 = vpop.f32.mrf.mxu0
        %v2871 = vadd.f32 %v2758, %v2870
        %v2872 = vpop.f32.mrf.mxu0
        %v2873 = vadd.f32 %v2760, %v2872
        %v2874 = vpop.f32.mrf.mxu0
        %v2875 = vadd.f32 %v2762, %v2874
        %v2876 = vpop.f32.mrf.mxu0
        %v2877 = vadd.f32 %v2764, %v2876
        %2878 = vmatprep.mubr.bf16.mxu0 %v1572
        %2879 = vmatmul.mubr.bf16.gmra.mxu0 %v1571
        %v2880 = vpop.f32.mrf.mxu0
        %v2881 = vadd.f32 %v2768, %v2880
        %v2882 = vpop.f32.mrf.mxu0
        %v2883 = vadd.f32 %v2770, %v2882
        %v2884 = vpop.f32.mrf.mxu0
        %v2885 = vadd.f32 %v2772, %v2884
        %v2886 = vpop.f32.mrf.mxu0
        %v2887 = vadd.f32 %v2774, %v2886
        %2888 = vdwg.mxu0
        %2889 = vmatprep.subr.bf16.mxu0 0
        %2890 = vmatpush1.bf16.msra.mxu0 %v2285
        %2891 = vmatprep.subr.bf16.mxu0 0
        %2892 = vmatpush1.bf16.msra.mxu0 %v2282
        %2893 = vmatprep.subr.bf16.mxu0 0
        %2894 = vmatpush1.bf16.msra.mxu0 %v2279
        %2895 = vmatprep.subr.bf16.mxu0 0
        %2896 = vmatpush1.bf16.msra.mxu0 %v2276
        %2897 = vmatprep.subr.bf16.mxu0 0
        %2898 = vmatpush1.bf16.msra.mxu0 %v2273
        %2899 = vmatprep.subr.bf16.mxu0 0
        %2900 = vmatpush1.bf16.msra.mxu0 %v2270
        %2901 = vmatprep.subr.bf16.mxu0 0
        %2902 = vmatpush1.bf16.msra.mxu0 %v2267
        %2903 = vmatprep.subr.bf16.mxu0 0
        %2904 = vmatpush1.bf16.msra.mxu0 %v2264
        %2905 = vmatprep.subr.bf16.mxu0 0
        %2906 = vmatpush2.bf16.msra.mxu0 %v2309
        %2907 = vmatprep.subr.bf16.mxu0 0
        %2908 = vmatpush2.bf16.msra.mxu0 %v2306
        %2909 = vmatprep.subr.bf16.mxu0 0
        %2910 = vmatpush2.bf16.msra.mxu0 %v2303
        %2911 = vmatprep.subr.bf16.mxu0 0
        %2912 = vmatpush2.bf16.msra.mxu0 %v2300
        %2913 = vmatprep.subr.bf16.mxu0 0
        %2914 = vmatpush2.bf16.msra.mxu0 %v2297
        %2915 = vmatprep.subr.bf16.mxu0 0
        %2916 = vmatpush2.bf16.msra.mxu0 %v2294
        %2917 = vmatprep.subr.bf16.mxu0 0
        %2918 = vmatpush2.bf16.msra.mxu0 %v2291
        %2919 = vmatprep.subr.bf16.mxu0 0
        %2920 = vmatpush2.bf16.msra.mxu0 %v2288
        %2921 = vmatprep.mubr.bf16.mxu0 %v1526
        %2922 = vmatmul.mubr.bf16.gmra.mxu0 %v1525
        %v2923 = vpop.f32.mrf.mxu0
        %v2924 = vadd.f32 %v1778, %v2923
        %v2925 = vpop.f32.mrf.mxu0
        %v2926 = vpop.f32.mrf.mxu0
        %v2927 = vadd.f32 %v1778, %v2926
        %v2928 = vpop.f32.mrf.mxu0
        %2929 = vmatprep.mubr.bf16.mxu0 %v1532
        %2930 = vmatmul.mubr.bf16.gmra.mxu0 %v1531
        %v2931 = vpop.f32.mrf.mxu0
        %v2932 = vadd.f32 %v1778, %v2931
        %v2933 = vpop.f32.mrf.mxu0
        %v2934 = vpop.f32.mrf.mxu0
        %v2935 = vadd.f32 %v1778, %v2934
        %v2936 = vpop.f32.mrf.mxu0
        %2937 = vmatprep.mubr.bf16.mxu0 %v1538
        %2938 = vmatmul.mubr.bf16.gmra.mxu0 %v1537
        %v2939 = vpop.f32.mrf.mxu0
        %v2940 = vadd.f32 %v1778, %v2939
        %v2941 = vpop.f32.mrf.mxu0
        %v2942 = vpop.f32.mrf.mxu0
        %v2943 = vadd.f32 %v1778, %v2942
        %v2944 = vpop.f32.mrf.mxu0
        %2945 = vmatprep.mubr.bf16.mxu0 %v1544
        %2946 = vmatmul.mubr.bf16.gmra.mxu0 %v1543
        %v2947 = vpop.f32.mrf.mxu0
        %v2948 = vadd.f32 %v1778, %v2947
        %v2949 = vpop.f32.mrf.mxu0
        %v2950 = vpop.f32.mrf.mxu0
        %v2951 = vadd.f32 %v1778, %v2950
        %v2952 = vpop.f32.mrf.mxu0
        %2953 = vmatprep.mubr.bf16.mxu0 %v1550
        %2954 = vmatmul.mubr.bf16.gmra.mxu0 %v1549
        %v2955 = vpop.f32.mrf.mxu0
        %v2956 = vadd.f32 %v1778, %v2955
        %v2957 = vpop.f32.mrf.mxu0
        %v2958 = vpop.f32.mrf.mxu0
        %v2959 = vadd.f32 %v1778, %v2958
        %v2960 = vpop.f32.mrf.mxu0
        %2961 = vmatprep.mubr.bf16.mxu0 %v1556
        %2962 = vmatmul.mubr.bf16.gmra.mxu0 %v1555
        %v2963 = vpop.f32.mrf.mxu0
        %v2964 = vadd.f32 %v1778, %v2963
        %v2965 = vpop.f32.mrf.mxu0
        %v2966 = vpop.f32.mrf.mxu0
        %v2967 = vadd.f32 %v1778, %v2966
        %v2968 = vpop.f32.mrf.mxu0
        %2969 = vmatprep.mubr.bf16.mxu0 %v1562
        %2970 = vmatmul.mubr.bf16.gmra.mxu0 %v1561
        %v2971 = vpop.f32.mrf.mxu0
        %v2972 = vadd.f32 %v1778, %v2971
        %v2973 = vpop.f32.mrf.mxu0
        %v2974 = vpop.f32.mrf.mxu0
        %v2975 = vadd.f32 %v1778, %v2974
        %v2976 = vpop.f32.mrf.mxu0
        %2977 = vmatprep.mubr.bf16.mxu0 %v1568
        %2978 = vmatmul.mubr.bf16.gmra.mxu0 %v1567
        %v2979 = vpop.f32.mrf.mxu0
        %v2980 = vadd.f32 %v1778, %v2979
        %v2981 = vpop.f32.mrf.mxu0
        %v2982 = vpop.f32.mrf.mxu0
        %v2983 = vadd.f32 %v1778, %v2982
        %v2984 = vpop.f32.mrf.mxu0
        %2985 = vdwg.mxu0
        %2986 = vmatprep.subr.bf16.mxu0 0
        %2987 = vmatpush1.bf16.msra.mxu0 %v2333
        %2988 = vmatprep.subr.bf16.mxu0 0
        %2989 = vmatpush1.bf16.msra.mxu0 %v2330
        %2990 = vmatprep.subr.bf16.mxu0 0
        %2991 = vmatpush1.bf16.msra.mxu0 %v2327
        %2992 = vmatprep.subr.bf16.mxu0 0
        %2993 = vmatpush1.bf16.msra.mxu0 %v2324
        %2994 = vmatprep.subr.bf16.mxu0 0
        %2995 = vmatpush1.bf16.msra.mxu0 %v2321
        %2996 = vmatprep.subr.bf16.mxu0 0
        %2997 = vmatpush1.bf16.msra.mxu0 %v2318
        %2998 = vmatprep.subr.bf16.mxu0 0
        %2999 = vmatpush1.bf16.msra.mxu0 %v2315
        %3000 = vmatprep.subr.bf16.mxu0 0
        %3001 = vmatpush1.bf16.msra.mxu0 %v2312
        %3002 = vmatprep.subr.bf16.mxu0 0
        %3003 = vmatpush2.bf16.msra.mxu0 %v2357
        %3004 = vmatprep.subr.bf16.mxu0 0
        %3005 = vmatpush2.bf16.msra.mxu0 %v2354
        %3006 = vmatprep.subr.bf16.mxu0 0
        %3007 = vmatpush2.bf16.msra.mxu0 %v2351
        %3008 = vmatprep.subr.bf16.mxu0 0
        %3009 = vmatpush2.bf16.msra.mxu0 %v2348
        %3010 = vmatprep.subr.bf16.mxu0 0
        %3011 = vmatpush2.bf16.msra.mxu0 %v2345
        %3012 = vmatprep.subr.bf16.mxu0 0
        %3013 = vmatpush2.bf16.msra.mxu0 %v2342
        %3014 = vmatprep.subr.bf16.mxu0 0
        %3015 = vmatpush2.bf16.msra.mxu0 %v2339
        %3016 = vmatprep.subr.bf16.mxu0 0
        %3017 = vmatpush2.bf16.msra.mxu0 %v2336
        %3018 = vmatprep.mubr.bf16.mxu0 %v1528
        %3019 = vmatmul.mubr.bf16.gmra.mxu0 %v1527
        %v3020 = vpop.f32.mrf.mxu0
        %v3021 = vadd.f32 %v2924, %v3020
        %v3022 = vpop.f32.mrf.mxu0
        %v3023 = vpop.f32.mrf.mxu0
        %v3024 = vadd.f32 %v2927, %v3023
        %v3025 = vpop.f32.mrf.mxu0
        %3026 = vmatprep.mubr.bf16.mxu0 %v1534
        %3027 = vmatmul.mubr.bf16.gmra.mxu0 %v1533
        %v3028 = vpop.f32.mrf.mxu0
        %v3029 = vadd.f32 %v2932, %v3028
        %v3030 = vpop.f32.mrf.mxu0
        %v3031 = vpop.f32.mrf.mxu0
        %v3032 = vadd.f32 %v2935, %v3031
        %v3033 = vpop.f32.mrf.mxu0
        %3034 = vmatprep.mubr.bf16.mxu0 %v1540
        %3035 = vmatmul.mubr.bf16.gmra.mxu0 %v1539
        %v3036 = vpop.f32.mrf.mxu0
        %v3037 = vadd.f32 %v2940, %v3036
        %v3038 = vpop.f32.mrf.mxu0
        %v3039 = vpop.f32.mrf.mxu0
        %v3040 = vadd.f32 %v2943, %v3039
        %v3041 = vpop.f32.mrf.mxu0
        %3042 = vmatprep.mubr.bf16.mxu0 %v1546
        %3043 = vmatmul.mubr.bf16.gmra.mxu0 %v1545
        %v3044 = vpop.f32.mrf.mxu0
        %v3045 = vadd.f32 %v2948, %v3044
        %v3046 = vpop.f32.mrf.mxu0
        %v3047 = vpop.f32.mrf.mxu0
        %v3048 = vadd.f32 %v2951, %v3047
        %v3049 = vpop.f32.mrf.mxu0
        %3050 = vmatprep.mubr.bf16.mxu0 %v1552
        %3051 = vmatmul.mubr.bf16.gmra.mxu0 %v1551
        %v3052 = vpop.f32.mrf.mxu0
        %v3053 = vadd.f32 %v2956, %v3052
        %v3054 = vpop.f32.mrf.mxu0
        %v3055 = vpop.f32.mrf.mxu0
        %v3056 = vadd.f32 %v2959, %v3055
        %v3057 = vpop.f32.mrf.mxu0
        %3058 = vmatprep.mubr.bf16.mxu0 %v1558
        %3059 = vmatmul.mubr.bf16.gmra.mxu0 %v1557
        %v3060 = vpop.f32.mrf.mxu0
        %v3061 = vadd.f32 %v2964, %v3060
        %v3062 = vpop.f32.mrf.mxu0
        %v3063 = vpop.f32.mrf.mxu0
        %v3064 = vadd.f32 %v2967, %v3063
        %v3065 = vpop.f32.mrf.mxu0
        %3066 = vmatprep.mubr.bf16.mxu0 %v1564
        %3067 = vmatmul.mubr.bf16.gmra.mxu0 %v1563
        %v3068 = vpop.f32.mrf.mxu0
        %v3069 = vadd.f32 %v2972, %v3068
        %v3070 = vpop.f32.mrf.mxu0
        %v3071 = vpop.f32.mrf.mxu0
        %v3072 = vadd.f32 %v2975, %v3071
        %v3073 = vpop.f32.mrf.mxu0
        %3074 = vmatprep.mubr.bf16.mxu0 %v1570
        %3075 = vmatmul.mubr.bf16.gmra.mxu0 %v1569
        %v3076 = vpop.f32.mrf.mxu0
        %v3077 = vadd.f32 %v2980, %v3076
        %v3078 = vpop.f32.mrf.mxu0
        %v3079 = vpop.f32.mrf.mxu0
        %v3080 = vadd.f32 %v2983, %v3079
        %v3081 = vpop.f32.mrf.mxu0
        %3082 = vdwg.mxu0
        %3083 = vmatprep.subr.bf16.mxu0 0
        %3084 = vmatpush1.bf16.msra.mxu0 %v2381
        %3085 = vmatprep.subr.bf16.mxu0 0
        %3086 = vmatpush1.bf16.msra.mxu0 %v2378
        %3087 = vmatprep.subr.bf16.mxu0 0
        %3088 = vmatpush1.bf16.msra.mxu0 %v2375
        %3089 = vmatprep.subr.bf16.mxu0 0
        %3090 = vmatpush1.bf16.msra.mxu0 %v2372
        %3091 = vmatprep.subr.bf16.mxu0 0
        %3092 = vmatpush1.bf16.msra.mxu0 %v2369
        %3093 = vmatprep.subr.bf16.mxu0 0
        %3094 = vmatpush1.bf16.msra.mxu0 %v2366
        %3095 = vmatprep.subr.bf16.mxu0 0
        %3096 = vmatpush1.bf16.msra.mxu0 %v2363
        %3097 = vmatprep.subr.bf16.mxu0 0
        %3098 = vmatpush1.bf16.msra.mxu0 %v2360
        %3099 = vmatprep.subr.bf16.mxu0 0
        %3100 = vmatpush2.bf16.msra.mxu0 %v2405
        %3101 = vmatprep.subr.bf16.mxu0 0
        %3102 = vmatpush2.bf16.msra.mxu0 %v2402
        %3103 = vmatprep.subr.bf16.mxu0 0
        %3104 = vmatpush2.bf16.msra.mxu0 %v2399
        %3105 = vmatprep.subr.bf16.mxu0 0
        %3106 = vmatpush2.bf16.msra.mxu0 %v2396
        %3107 = vmatprep.subr.bf16.mxu0 0
        %3108 = vmatpush2.bf16.msra.mxu0 %v2393
        %3109 = vmatprep.subr.bf16.mxu0 0
        %3110 = vmatpush2.bf16.msra.mxu0 %v2390
        %3111 = vmatprep.subr.bf16.mxu0 0
        %3112 = vmatpush2.bf16.msra.mxu0 %v2387
        %3113 = vmatprep.subr.bf16.mxu0 0
        %3114 = vmatpush2.bf16.msra.mxu0 %v2384
        %3115 = vmatprep.mubr.bf16.mxu0 %v1530
        %3116 = vmatmul.mubr.bf16.gmra.mxu0 %v1529
        %v3117 = vpop.f32.mrf.mxu0
        %v3118 = vadd.f32 %v3021, %v3117
        %v3119 = vpop.f32.mrf.mxu0
        %v3120 = vpop.f32.mrf.mxu0
        %v3121 = vadd.f32 %v3024, %v3120
        %v3122 = vpop.f32.mrf.mxu0
        %3123 = vmatprep.mubr.bf16.mxu0 %v1536
        %3124 = vmatmul.mubr.bf16.gmra.mxu0 %v1535
        %v3125 = vpop.f32.mrf.mxu0
        %v3126 = vadd.f32 %v3029, %v3125
        %v3127 = vpop.f32.mrf.mxu0
        %v3128 = vpop.f32.mrf.mxu0
        %v3129 = vadd.f32 %v3032, %v3128
        %v3130 = vpop.f32.mrf.mxu0
        %3131 = vmatprep.mubr.bf16.mxu0 %v1542
        %3132 = vmatmul.mubr.bf16.gmra.mxu0 %v1541
        %v3133 = vpop.f32.mrf.mxu0
        %v3134 = vadd.f32 %v3037, %v3133
        %v3135 = vpop.f32.mrf.mxu0
        %v3136 = vpop.f32.mrf.mxu0
        %v3137 = vadd.f32 %v3040, %v3136
        %v3138 = vpop.f32.mrf.mxu0
        %3139 = vmatprep.mubr.bf16.mxu0 %v1548
        %3140 = vmatmul.mubr.bf16.gmra.mxu0 %v1547
        %v3141 = vpop.f32.mrf.mxu0
        %v3142 = vadd.f32 %v3045, %v3141
        %v3143 = vpop.f32.mrf.mxu0
        %v3144 = vpop.f32.mrf.mxu0
        %v3145 = vadd.f32 %v3048, %v3144
        %v3146 = vpop.f32.mrf.mxu0
        %3147 = vmatprep.mubr.bf16.mxu0 %v1554
        %3148 = vmatmul.mubr.bf16.gmra.mxu0 %v1553
        %v3149 = vpop.f32.mrf.mxu0
        %v3150 = vadd.f32 %v3053, %v3149
        %v3151 = vpop.f32.mrf.mxu0
        %v3152 = vpop.f32.mrf.mxu0
        %v3153 = vadd.f32 %v3056, %v3152
        %v3154 = vpop.f32.mrf.mxu0
        %3155 = vmatprep.mubr.bf16.mxu0 %v1560
        %3156 = vmatmul.mubr.bf16.gmra.mxu0 %v1559
        %v3157 = vpop.f32.mrf.mxu0
        %v3158 = vadd.f32 %v3061, %v3157
        %v3159 = vpop.f32.mrf.mxu0
        %v3160 = vpop.f32.mrf.mxu0
        %v3161 = vadd.f32 %v3064, %v3160
        %v3162 = vpop.f32.mrf.mxu0
        %3163 = vmatprep.mubr.bf16.mxu0 %v1566
        %3164 = vmatmul.mubr.bf16.gmra.mxu0 %v1565
        %v3165 = vpop.f32.mrf.mxu0
        %v3166 = vadd.f32 %v3069, %v3165
        %v3167 = vpop.f32.mrf.mxu0
        %v3168 = vpop.f32.mrf.mxu0
        %v3169 = vadd.f32 %v3072, %v3168
        %v3170 = vpop.f32.mrf.mxu0
        %3171 = vmatprep.mubr.bf16.mxu0 %v1572
        %3172 = vmatmul.mubr.bf16.gmra.mxu0 %v1571
        %v3173 = vpop.f32.mrf.mxu0
        %v3174 = vadd.f32 %v3077, %v3173
        %v3175 = vpop.f32.mrf.mxu0
        %v3176 = vpop.f32.mrf.mxu0
        %v3177 = vadd.f32 %v3080, %v3176
        %v3178 = vpop.f32.mrf.mxu0
        %3179 = vdwg.mxu0
        %v3180 = vmax.f32 %v2811, 0.0
        %v3181 = vmax.f32 %v2813, 0.0
        %v3182 = vmax.f32 %v3118, 0.0
        %v3183 = vmax.f32 %v2815, 0.0
        %v3184 = vmax.f32 %v2817, 0.0
        %v3185 = vmax.f32 %v3121, 0.0
        %v3186 = vmax.f32 %v2821, 0.0
        %v3187 = vmax.f32 %v2823, 0.0
        %v3188 = vmax.f32 %v3126, 0.0
        %v3189 = vmax.f32 %v2825, 0.0
        %v3190 = vmax.f32 %v2827, 0.0
        %v3191 = vmax.f32 %v3129, 0.0
        %v3192 = vmax.f32 %v2831, 0.0
        %v3193 = vmax.f32 %v2833, 0.0
        %v3194 = vmax.f32 %v3134, 0.0
        %v3195 = vmax.f32 %v2835, 0.0
        %v3196 = vmax.f32 %v2837, 0.0
        %v3197 = vmax.f32 %v3137, 0.0
        %v3198 = vmax.f32 %v2841, 0.0
        %v3199 = vmax.f32 %v2843, 0.0
        %v3200 = vmax.f32 %v3142, 0.0
        %v3201 = vmax.f32 %v2845, 0.0
        %v3202 = vmax.f32 %v2847, 0.0
        %v3203 = vmax.f32 %v3145, 0.0
        %v3204 = vmax.f32 %v2851, 0.0
        %v3205 = vmax.f32 %v2853, 0.0
        %v3206 = vmax.f32 %v3150, 0.0
        %v3207 = vmax.f32 %v2855, 0.0
        %v3208 = vmax.f32 %v2857, 0.0
        %v3209 = vmax.f32 %v3153, 0.0
        %v3210 = vmax.f32 %v2861, 0.0
        %v3211 = vmax.f32 %v2863, 0.0
        %v3212 = vmax.f32 %v3158, 0.0
        %v3213 = vmax.f32 %v2865, 0.0
        %v3214 = vmax.f32 %v2867, 0.0
        %v3215 = vmax.f32 %v3161, 0.0
        %v3216 = vmax.f32 %v2871, 0.0
        %v3217 = vmax.f32 %v2873, 0.0
        %v3218 = vmax.f32 %v3166, 0.0
        %v3219 = vmax.f32 %v2875, 0.0
        %v3220 = vmax.f32 %v2877, 0.0
        %v3221 = vmax.f32 %v3169, 0.0
        %v3222 = vmax.f32 %v2881, 0.0
        %v3223 = vmax.f32 %v2883, 0.0
        %v3224 = vmax.f32 %v3174, 0.0
        %v3225 = vmax.f32 %v2885, 0.0
        %v3226 = vmax.f32 %v2887, 0.0
        %v3227 = vmax.f32 %v3177, 0.0
        %3228 = vst [vmem:[%s433] sm:$0xff] %v3180
        %3229 = vst [vmem:[%s433 + $0x8] sm:$0xff] %v3181
        %3230 = vst [vmem:[%s433 + $0x10] sm:$0xff] %v3182
        %3231 = vst [vmem:[%s433 + $0x18] sm:$0xff] %v3183
        %3232 = vst [vmem:[%s433 + $0x20] sm:$0xff] %v3184
        %3233 = vst [vmem:[%s433 + $0x28] sm:$0xff] %v3185
        %3234 = vst [vmem:[%s433 + $0x30] sm:$0xff] %v3186
        %3235 = vst [vmem:[%s433 + $0x38] sm:$0xff] %v3187
        %3236 = vst [vmem:[%s433 + $0x40] sm:$0xff] %v3188
        %3237 = vst [vmem:[%s433 + $0x48] sm:$0xff] %v3189
        %3238 = vst [vmem:[%s433 + $0x50] sm:$0xff] %v3190
        %3239 = vst [vmem:[%s433 + $0x58] sm:$0xff] %v3191
        %3240 = vst [vmem:[%s433 + $0x60] sm:$0xff] %v3192
        %3241 = vst [vmem:[%s433 + $0x68] sm:$0xff] %v3193
        %3242 = vst [vmem:[%s433 + $0x70] sm:$0xff] %v3194
        %3243 = vst [vmem:[%s433 + $0x78] sm:$0xff] %v3195
        %3244 = vst [vmem:[%s433 + $0x80] sm:$0xff] %v3196
        %3245 = vst [vmem:[%s433 + $0x88] sm:$0xff] %v3197
        %3246 = vst [vmem:[%s433 + $0x90] sm:$0xff] %v3198
        %3247 = vst [vmem:[%s433 + $0x98] sm:$0xff] %v3199
        %3248 = vst [vmem:[%s433 + $0xa0] sm:$0xff] %v3200
        %3249 = vst [vmem:[%s433 + $0xa8] sm:$0xff] %v3201
        %3250 = vst [vmem:[%s433 + $0xb0] sm:$0xff] %v3202
        %3251 = vst [vmem:[%s433 + $0xb8] sm:$0xff] %v3203
        %3252 = vst [vmem:[%s433 + $0xc0] sm:$0xff] %v3204
        %3253 = vst [vmem:[%s433 + $0xc8] sm:$0xff] %v3205
        %3254 = vst [vmem:[%s433 + $0xd0] sm:$0xff] %v3206
        %3255 = vst [vmem:[%s433 + $0xd8] sm:$0xff] %v3207
        %3256 = vst [vmem:[%s433 + $0xe0] sm:$0xff] %v3208
        %3257 = vst [vmem:[%s433 + $0xe8] sm:$0xff] %v3209
        %3258 = vst [vmem:[%s433 + $0xf0] sm:$0xff] %v3210
        %3259 = vst [vmem:[%s433 + $0xf8] sm:$0xff] %v3211
        %3260 = vst [vmem:[%s433 + $0x100] sm:$0xff] %v3212
        %3261 = vst [vmem:[%s433 + $0x108] sm:$0xff] %v3213
        %3262 = vst [vmem:[%s433 + $0x110] sm:$0xff] %v3214
        %3263 = vst [vmem:[%s433 + $0x118] sm:$0xff] %v3215
        %3264 = vst [vmem:[%s433 + $0x120] sm:$0xff] %v3216
        %3265 = vst [vmem:[%s433 + $0x128] sm:$0xff] %v3217
        %3266 = vst [vmem:[%s433 + $0x130] sm:$0xff] %v3218
        %3267 = vst [vmem:[%s433 + $0x138] sm:$0xff] %v3219
        %3268 = vst [vmem:[%s433 + $0x140] sm:$0xff] %v3220
        %3269 = vst [vmem:[%s433 + $0x148] sm:$0xff] %v3221
        %3270 = vst [vmem:[%s433 + $0x150] sm:$0xff] %v3222
        %3271 = vst [vmem:[%s433 + $0x158] sm:$0xff] %v3223
        %3272 = vst [vmem:[%s433 + $0x160] sm:$0xff] %v3224
        %3273 = vst [vmem:[%s433 + $0x168] sm:$0xff] %v3225
        %3274 = vst [vmem:[%s433 + $0x170] sm:$0xff] %v3226
        %3275 = vst [vmem:[%s433 + $0x178] sm:$0xff] %v3227
        %s3276 = sand.u32 %s230, 1
        %s3277 = sand.u32 %s230, 1
        %s3278 = smul.addr %s3277, 384
        %s3279 = scalar_lea.vmem [#allocation11], %s3278
        // Predicated region
        $region81: #{gcn_forward.1} parent=55 // pred_check
          %p3280 = pneg %p240
        $region82: #{gcn_forward.1} parent=55 // pred_check_branch
          %3282 = sbr.rel (%p3280) target = $region84
        $region83: #{gcn_forward.1} parent=55 // pred_region
          %s3283 = smul.u32 3, %s23
          %s3284 = smul.addr %s3283, 8
          %s3285 = scalar_lea.vmem %s9, %s3284
          // Predicated region
          $region85: #{gcn_forward.1} parent=83 // pred_check
            _
          $region86: #{gcn_forward.1} parent=83 // pred_check_branch
            %3287 = sbr.rel (0) target = $region88
          $region87: #{gcn_forward.1} parent=83 // pred_region
            // Predicated region
            $region89: #{gcn_forward.1} parent=87 // pred_check
              _
            $region90: #{gcn_forward.1} parent=87 // pred_check_branch
              %3289 = sbr.rel (0) target = $region92
            $region91: #{gcn_forward.1} parent=87 // pred_region
              loop: start=0, step=1, limit=1
              $region93: #{gcn_forward.1} parent=91 // loop_pre_header
                _
              $region94: #{gcn_forward.1} parent=91 // loop_header
                %s3291 = sphi 0, %s3295
                %p3292 = scmp.ge.s32.totalorder %s3291, 1
                %s3296 = sphi %s3279, %s3279
                %s3297 = sphi %s3285, %s3285
              $region95: #{gcn_forward.1} parent=91 // loop_header_branch
                %3294 = sbr.rel (%p3292) target = $region99
              $region96: #{gcn_forward.1} parent=91 // loop_body
                %v3298 = vld [vmem:[%s3296] sm:$0xff]
                %3299 = vst [vmem:[%s3297] sm:$0xff] %v3298
                %v3300 = vld [vmem:[%s3296 + $0x8] sm:$0xff]
                %3301 = vst [vmem:[%s3297 + $0x8] sm:$0xff] %v3300
                %v3302 = vld [vmem:[%s3296 + $0x10] sm:$0xff]
                %3303 = vst [vmem:[%s3297 + $0x10] sm:$0xff] %v3302
                %v3304 = vld [vmem:[%s3296 + $0x18] sm:$0xff]
                %3305 = vst [vmem:[%s3297 + $0x30] sm:$0xff] %v3304
                %v3306 = vld [vmem:[%s3296 + $0x20] sm:$0xff]
                %3307 = vst [vmem:[%s3297 + $0x38] sm:$0xff] %v3306
                %v3308 = vld [vmem:[%s3296 + $0x28] sm:$0xff]
                %3309 = vst [vmem:[%s3297 + $0x40] sm:$0xff] %v3308
                %v3310 = vld [vmem:[%s3296 + $0x30] sm:$0xff]
                %3311 = vst [vmem:[%s3297 + $0x60] sm:$0xff] %v3310
                %v3312 = vld [vmem:[%s3296 + $0x38] sm:$0xff]
                %3313 = vst [vmem:[%s3297 + $0x68] sm:$0xff] %v3312
                %v3314 = vld [vmem:[%s3296 + $0x40] sm:$0xff]
                %3315 = vst [vmem:[%s3297 + $0x70] sm:$0xff] %v3314
                %v3316 = vld [vmem:[%s3296 + $0x48] sm:$0xff]
                %3317 = vst [vmem:[%s3297 + $0x90] sm:$0xff] %v3316
                %v3318 = vld [vmem:[%s3296 + $0x50] sm:$0xff]
                %3319 = vst [vmem:[%s3297 + $0x98] sm:$0xff] %v3318
                %v3320 = vld [vmem:[%s3296 + $0x58] sm:$0xff]
                %3321 = vst [vmem:[%s3297 + $0xa0] sm:$0xff] %v3320
                %v3322 = vld [vmem:[%s3296 + $0x60] sm:$0xff]
                %3323 = vst [vmem:[%s3297 + $0xc0] sm:$0xff] %v3322
                %v3324 = vld [vmem:[%s3296 + $0x68] sm:$0xff]
                %3325 = vst [vmem:[%s3297 + $0xc8] sm:$0xff] %v3324
                %v3326 = vld [vmem:[%s3296 + $0x70] sm:$0xff]
                %3327 = vst [vmem:[%s3297 + $0xd0] sm:$0xff] %v3326
                %v3328 = vld [vmem:[%s3296 + $0x78] sm:$0xff]
                %3329 = vst [vmem:[%s3297 + $0xf0] sm:$0xff] %v3328
                %v3330 = vld [vmem:[%s3296 + $0x80] sm:$0xff]
                %3331 = vst [vmem:[%s3297 + $0xf8] sm:$0xff] %v3330
                %v3332 = vld [vmem:[%s3296 + $0x88] sm:$0xff]
                %3333 = vst [vmem:[%s3297 + $0x100] sm:$0xff] %v3332
                %v3334 = vld [vmem:[%s3296 + $0x90] sm:$0xff]
                %3335 = vst [vmem:[%s3297 + $0x120] sm:$0xff] %v3334
                %v3336 = vld [vmem:[%s3296 + $0x98] sm:$0xff]
                %3337 = vst [vmem:[%s3297 + $0x128] sm:$0xff] %v3336
                %v3338 = vld [vmem:[%s3296 + $0xa0] sm:$0xff]
                %3339 = vst [vmem:[%s3297 + $0x130] sm:$0xff] %v3338
                %v3340 = vld [vmem:[%s3296 + $0xa8] sm:$0xff]
                %3341 = vst [vmem:[%s3297 + $0x150] sm:$0xff] %v3340
                %v3342 = vld [vmem:[%s3296 + $0xb0] sm:$0xff]
                %3343 = vst [vmem:[%s3297 + $0x158] sm:$0xff] %v3342
                %v3344 = vld [vmem:[%s3296 + $0xb8] sm:$0xff]
                %3345 = vst [vmem:[%s3297 + $0x160] sm:$0xff] %v3344
                %v3346 = vld [vmem:[%s3296 + $0xc0] sm:$0xff]
                %3347 = vst [vmem:[%s3297 + $0x180] sm:$0xff] %v3346
                %v3348 = vld [vmem:[%s3296 + $0xc8] sm:$0xff]
                %3349 = vst [vmem:[%s3297 + $0x188] sm:$0xff] %v3348
                %v3350 = vld [vmem:[%s3296 + $0xd0] sm:$0xff]
                %3351 = vst [vmem:[%s3297 + $0x190] sm:$0xff] %v3350
                %v3352 = vld [vmem:[%s3296 + $0xd8] sm:$0xff]
                %3353 = vst [vmem:[%s3297 + $0x1b0] sm:$0xff] %v3352
                %v3354 = vld [vmem:[%s3296 + $0xe0] sm:$0xff]
                %3355 = vst [vmem:[%s3297 + $0x1b8] sm:$0xff] %v3354
                %v3356 = vld [vmem:[%s3296 + $0xe8] sm:$0xff]
                %3357 = vst [vmem:[%s3297 + $0x1c0] sm:$0xff] %v3356
                %v3358 = vld [vmem:[%s3296 + $0xf0] sm:$0xff]
                %3359 = vst [vmem:[%s3297 + $0x1e0] sm:$0xff] %v3358
                %v3360 = vld [vmem:[%s3296 + $0xf8] sm:$0xff]
                %3361 = vst [vmem:[%s3297 + $0x1e8] sm:$0xff] %v3360
                %v3362 = vld [vmem:[%s3296 + $0x100] sm:$0xff]
                %3363 = vst [vmem:[%s3297 + $0x1f0] sm:$0xff] %v3362
                %v3364 = vld [vmem:[%s3296 + $0x108] sm:$0xff]
                %3365 = vst [vmem:[%s3297 + $0x210] sm:$0xff] %v3364
                %v3366 = vld [vmem:[%s3296 + $0x110] sm:$0xff]
                %3367 = vst [vmem:[%s3297 + $0x218] sm:$0xff] %v3366
                %v3368 = vld [vmem:[%s3296 + $0x118] sm:$0xff]
                %3369 = vst [vmem:[%s3297 + $0x220] sm:$0xff] %v3368
                %v3370 = vld [vmem:[%s3296 + $0x120] sm:$0xff]
                %3371 = vst [vmem:[%s3297 + $0x240] sm:$0xff] %v3370
                %v3372 = vld [vmem:[%s3296 + $0x128] sm:$0xff]
                %3373 = vst [vmem:[%s3297 + $0x248] sm:$0xff] %v3372
                %v3374 = vld [vmem:[%s3296 + $0x130] sm:$0xff]
                %3375 = vst [vmem:[%s3297 + $0x250] sm:$0xff] %v3374
                %v3376 = vld [vmem:[%s3296 + $0x138] sm:$0xff]
                %3377 = vst [vmem:[%s3297 + $0x270] sm:$0xff] %v3376
                %v3378 = vld [vmem:[%s3296 + $0x140] sm:$0xff]
                %3379 = vst [vmem:[%s3297 + $0x278] sm:$0xff] %v3378
                %v3380 = vld [vmem:[%s3296 + $0x148] sm:$0xff]
                %3381 = vst [vmem:[%s3297 + $0x280] sm:$0xff] %v3380
                %v3382 = vld [vmem:[%s3296 + $0x150] sm:$0xff]
                %3383 = vst [vmem:[%s3297 + $0x2a0] sm:$0xff] %v3382
                %v3384 = vld [vmem:[%s3296 + $0x158] sm:$0xff]
                %3385 = vst [vmem:[%s3297 + $0x2a8] sm:$0xff] %v3384
                %v3386 = vld [vmem:[%s3296 + $0x160] sm:$0xff]
                %3387 = vst [vmem:[%s3297 + $0x2b0] sm:$0xff] %v3386
                %v3388 = vld [vmem:[%s3296 + $0x168] sm:$0xff]
                %3389 = vst [vmem:[%s3297 + $0x2d0] sm:$0xff] %v3388
                %v3390 = vld [vmem:[%s3296 + $0x170] sm:$0xff]
                %3391 = vst [vmem:[%s3297 + $0x2d8] sm:$0xff] %v3390
                %v3392 = vld [vmem:[%s3296 + $0x178] sm:$0xff]
                %3393 = vst [vmem:[%s3297 + $0x2e0] sm:$0xff] %v3392
              $region97: #{gcn_forward.1} parent=91 // loop_footer
                %s3295 = sadd.s32 1, %s3291
              $region98: #{gcn_forward.1} parent=91 // loop_footer_branch
                %3290 = sbr.rel target = $region94
              $region99: #{gcn_forward.1} parent=91 // loop_exit
                _
            $region92: #{gcn_forward.1} parent=87 // pred_fallthru
              _
            // Predicated region
            $region100: #{gcn_forward.1} parent=87 // pred_check
              _
            $region101: #{gcn_forward.1} parent=87 // pred_check_branch
              %3395 = sbr.rel target = $region103
            $region102: #{gcn_forward.1} parent=87 // pred_region
              _
            $region103: #{gcn_forward.1} parent=87 // pred_fallthru
              _
          $region88: #{gcn_forward.1} parent=83 // pred_fallthru
            _
          %3396 = vnop
        $region84: #{gcn_forward.1} parent=55 // pred_fallthru
          _
      $region56: #{gcn_forward.1} parent=5 // pred_fallthru
        _
      %p3397 = scmp.le.s32.totalorder 2, %s18
      // Predicated region
      $region104: #{gcn_forward.1} parent=5 // pred_check
        %p3398 = pneg %p3397
      $region105: #{gcn_forward.1} parent=5 // pred_check_branch
        %3400 = sbr.rel (%p3398) target = $region107
      $region106: #{gcn_forward.1} parent=5 // pred_region
        %s3401 = ssub.s32 %s18, 2
        // Predicated region
        $region108: #{gcn_forward.1} parent=106 // pred_check
          %p3402 = pneg %p246
        $region109: #{gcn_forward.1} parent=106 // pred_check_branch
          %3404 = sbr.rel (%p3402) target = $region111
        $region110: #{gcn_forward.1} parent=106 // pred_region
          %s3405 = sand.u32 %s231, 1
          %s3406 = sand.u32 %s231, 1
          %s3407 = smul.addr %s3406, 384
          %s3408 = scalar_lea.vmem [#allocation11], %s3407
        $region111: #{gcn_forward.1} parent=106 // pred_fallthru
          _
      $region107: #{gcn_forward.1} parent=5 // pred_fallthru
        _
    $region6: #{gcn_forward.1} parent=1 // loop_footer
      %s22 = sadd.s32 1, %s18
    $region7: #{gcn_forward.1} parent=1 // loop_footer_branch
      %17 = sbr.rel target = $region3
    $region8: #{gcn_forward.1} parent=1 // loop_exit
      _
    %3409 = vsyncpa [#allocation3], 1
    %s3410 = scalar_lea.sflag [#allocation3], 1
    %3411 = vsyncpa %s3410, 1
    %3412 = vsyncpa [#allocation5], 1
    %3413 = vsyncpa [#allocation8], 1

</llo_original>
